<compile_context>
chip_gen: v5e
topology: v5e:2x2
jax: 0.10.0
libtpu: 0.0.40
codegen_flags: <defaults>
</compile_context>

<pallas_src>
import jax
import jax.numpy as jnp
from jax.experimental import pallas as pl
from jax.experimental.pallas import tpu as pltpu

# ---- model geometry (Linear(224, 32) implies input length 41) ----
L_IN = 41          # input length
C_IN = 4
L1 = L_IN - 3      # 38 valid rows after Conv1d(4->16, k=4)
L2 = L1 - 4        # 34 after MaxPool1d(k=5, s=1)
L3 = L2 - 3        # 31 after Conv1d(16->32, k=4)
L4 = 7             # windows after MaxPool1d(k=4, s=4)

# ---- padded in-kernel lengths (padded tail rows never reach a valid output) --
L3P = 32           # >= L3
L2P = L3P + 3      # 35
L1P = 40           # >= L2P + 4
X_LP = L1P + 3     # 43: zero-padded input length used for the wrapper im2col

TB = 128           # samples per grid step == lane width


def _elu(v):
    # PyTorch ELU (alpha=1): v if v > 0 else exp(v) - 1
    return jnp.where(v > 0, v, jnp.exp(jnp.minimum(v, 0.0)) - 1.0)


def cnn_kernel(x_ref, w1_ref, b1_ref, w2_ref, b2_ref, w3_ref, b3_ref,
               w4_ref, b4_ref, out_ref):
    # x_ref: (1, 16, L1P*TB) conv1 im2col, batch-on-lanes (lane = l*TB + b).
    x1 = x_ref[0]                                            # (16, L1P*TB)

    # Conv1d(4->16, k=4): one (16,16)@(16, L1P*TB) MXU matmul; output is
    # already lane-dense (C_out on sublanes, (l, b) on lanes).
    y1 = jnp.dot(w1_ref[...], x1, preferred_element_type=jnp.float32)
    y1 = _elu(y1 + b1_ref[...])                              # (16, L1P*TB)

    # MaxPool1d(kernel=5, stride=1): a shift of one L step is a shift of
    # TB=128 lanes (a full tile column) -> elementwise max, no relayout.
    p1 = y1[:, 0:L2P * TB]
    for s in range(1, 5):
        p1 = jnp.maximum(p1, y1[:, s * TB:(s + L2P) * TB])   # (16, L2P*TB)

    # Conv1d(16->32, k=4): im2col = stack 4 lane-shifted views on the sublane
    # axis (16 sublanes each -> tile aligned), then one (32,64)@(64, L3P*TB).
    x2 = jnp.concatenate(
        [p1[:, k * TB:(k + L3P) * TB] for k in range(4)], axis=0)   # (64, L3P*TB)
    y2 = jnp.dot(w2_ref[...], x2, preferred_element_type=jnp.float32)
    y2 = _elu(y2 + b2_ref[...])                              # (32, L3P*TB)

    # MaxPool1d(k=4, s=4) + Flatten: each window is a max of 4 tile-aligned
    # lane slices; stacking the 7 (32, TB) results on the sublane axis gives
    # the (224, TB) feature matrix (row = t*32 + c; w3 is pre-reordered in the
    # wrapper to match torch's c*7 + t flatten order).
    # TODO(synk): Dropout(0.1) is identity here (inference / eval mode).
    pooled = []
    for t in range(L4):
        win = y2[:, (4 * t) * TB:(4 * t + 1) * TB]
        for j in range(1, 4):
            win = jnp.maximum(win, y2[:, (4 * t + j) * TB:(4 * t + j + 1) * TB])
        pooled.append(win)                                   # (32, TB)
    pooled = jnp.concatenate(pooled, axis=0)                 # (224, TB)

    # Linear(224->32) + ELU: (32,224)@(224,TB) -> (32, TB), lane-dense.
    h = _elu(jnp.dot(w3_ref[...], pooled, preferred_element_type=jnp.float32)
             + b3_ref[...])

    # Linear(32->1) + Sigmoid: (1,32)@(32,TB) -> lane-dense (1, TB) output row.
    logit = jnp.dot(w4_ref[...], h, preferred_element_type=jnp.float32)
    out_ref[...] = jax.nn.sigmoid(logit + b4_ref[0])


def cnn_forward(x_ncl, params):
    """x_ncl: (N, 4, 41) float32, PyTorch NCL convention. Returns (N, 1)."""
    w1, b1, w2, b2, w3, b3, w4, b4 = params        # torch-layout parameters
    n = x_ncl.shape[0]
    n_blocks = max(1, -(-n // TB))
    n_pad = n_blocks * TB

    # Wrapper-side conv1 im2col + batch-on-lanes re-layout (one tiny HBM pass,
    # ~2.5 KiB/sample).  Feature index = k*4 + c; lane index = l*TB + b.
    # TODO(synk): accept the (n_blocks, 16, L1P*TB) layout directly from the
    # data pipeline to remove this extra HBM pass for large-N inference.
    xp = jnp.pad(x_ncl.astype(jnp.float32),
                 ((0, n_pad - n), (0, 0), (0, X_LP - L_IN)))     # (n_pad, 4, 43)
    im = jnp.stack([xp[:, :, k:k + L1P] for k in range(4)], axis=1)
    im = im.reshape(n_pad, 4 * C_IN, L1P)                        # (n_pad, 16, 40)
    x_in = jnp.transpose(im.reshape(n_blocks, TB, 4 * C_IN, L1P),
                         (0, 2, 3, 1)).reshape(n_blocks, 4 * C_IN, L1P * TB)

    # Weight re-layouts matching the kernel's feature orderings.
    w1r = jnp.transpose(w1.astype(jnp.float32), (0, 2, 1)).reshape(16, 4 * C_IN)
    w2r = jnp.transpose(w2.astype(jnp.float32), (0, 2, 1)).reshape(32, 4 * 16)
    w3r = jnp.transpose(w3.astype(jnp.float32).reshape(32, 32, L4),
                        (0, 2, 1)).reshape(32, L4 * 32)          # col = t*32 + c
    w4r = w4.astype(jnp.float32).reshape(1, 32)
    b1r = b1.astype(jnp.float32).reshape(16, 1)
    b2r = b2.astype(jnp.float32).reshape(32, 1)
    b3r = b3.astype(jnp.float32).reshape(32, 1)
    b4r = b4.astype(jnp.float32).reshape(1)                      # SMEM scalar

    def const_spec(shape):
        rank = len(shape)
        return pl.BlockSpec(shape, lambda i: (0,) * rank)

    out = pl.pallas_call(
        cnn_kernel,
        out_shape=jax.ShapeDtypeStruct((1, n_pad), jnp.float32),
        grid=(n_blocks,),
        in_specs=[
            pl.BlockSpec((1, 4 * C_IN, L1P * TB), lambda i: (i, 0, 0)),   # x
            const_spec((16, 4 * C_IN)), const_spec((16, 1)),
            const_spec((32, 4 * 16)), const_spec((32, 1)),
            const_spec((32, L4 * 32)), const_spec((32, 1)),
            const_spec((1, 32)),
            pl.BlockSpec(memory_space=pltpu.MemorySpace.SMEM),            # b4
        ],
        out_specs=pl.BlockSpec((1, TB), lambda i: (0, i)),
        compiler_params=pltpu.CompilerParams(
            dimension_semantics=("parallel",)),
    )(x_in, w1r, b1r, w2r, b2r, w3r, b3r, w4r, b4r)

    return out[0, :n].reshape(n, 1)


def reference_forward(x_ncl, params):
    """Pure-JAX reference mirroring the PyTorch forward (eval mode)."""
    w1, b1, w2, b2, w3, b3, w4, b4 = params
    dn = ('NCH', 'OIH', 'NCH')
    y = jax.lax.conv_general_dilated(x_ncl, w1, (1,), 'VALID',
                                     dimension_numbers=dn)
    y = _elu(y + b1[None, :, None])
    y = jax.lax.reduce_window(y, -jnp.inf, jax.lax.max,
                              (1, 1, 5), (1, 1, 1), 'VALID')
    y = jax.lax.conv_general_dilated(y, w2, (1,), 'VALID',
                                     dimension_numbers=dn)
    y = _elu(y + b2[None, :, None])
    y = jax.lax.reduce_window(y, -jnp.inf, jax.lax.max,
                              (1, 1, 4), (1, 1, 4), 'VALID')
    f = y.reshape(y.shape[0], -1)                  # (N, 224), index = c*7 + t
    h = _elu(f @ w3.T + b3)
    return jax.nn.sigmoid(h @ w4.T + b4)


if __name__ == "__main__":
    key = jax.random.PRNGKey(0)
    keys = jax.random.split(key, 9)
    N = 2

    # Deterministic synthetic parameters (PyTorch layouts).
    x = jax.random.normal(keys[0], (N, C_IN, L_IN), jnp.float32)   # (2, 4, 41)
    w1 = 0.1 * jax.random.normal(keys[1], (16, 4, 4), jnp.float32)
    b1 = 0.1 * jax.random.normal(keys[2], (16,), jnp.float32)
    w2 = 0.1 * jax.random.normal(keys[3], (32, 16, 4), jnp.float32)
    b2 = 0.1 * jax.random.normal(keys[4], (32,), jnp.float32)
    w3 = 0.1 * jax.random.normal(keys[5], (32, 224), jnp.float32)
    b3 = 0.1 * jax.random.normal(keys[6], (32,), jnp.float32)
    w4 = 0.1 * jax.random.normal(keys[7], (1, 32), jnp.float32)
    b4 = 0.1 * jax.random.normal(keys[8], (1,), jnp.float32)
    params = (w1, b1, w2, b2, w3, b3, w4, b4)

    out = jax.block_until_ready(cnn_forward(x, params))
    ref = jax.block_until_ready(reference_forward(x, params))
    assert out.shape == (N, 1), out.shape
    if not jnp.allclose(out, ref, atol=1e-4, rtol=1e-4):
        raise AssertionError(f"kernel/reference mismatch:\n{out}\nvs\n{ref}")
    print("KERNEL_OK")
</pallas_src>

<mosaic_0001>
module attributes {stable_mosaic.version = 11 : i64} {
  func.func @cnn_kernel(%arg0: i32, %arg1: memref<1x16x5120xf32, #tpu.memory_space<vmem>>, %arg2: memref<16x16xf32, #tpu.memory_space<vmem>>, %arg3: memref<16x1xf32, #tpu.memory_space<vmem>>, %arg4: memref<32x64xf32, #tpu.memory_space<vmem>>, %arg5: memref<32x1xf32, #tpu.memory_space<vmem>>, %arg6: memref<32x224xf32, #tpu.memory_space<vmem>>, %arg7: memref<32x1xf32, #tpu.memory_space<vmem>>, %arg8: memref<1x32xf32, #tpu.memory_space<vmem>>, %arg9: memref<1xf32, #tpu.memory_space<smem>>, %arg10: memref<1x128xf32, #tpu.memory_space<vmem>>) attributes {dimension_semantics = [#tpu.dimension_semantics<parallel>], iteration_bounds = array<i64: 1>, scalar_prefetch = 0 : i64, scratch_operands = 0 : i64, tpu.core_type = #tpu.core_type<tc>, window_params = [{transform_indices = @transform_0, window_bounds = array<i64: 1, 16, 5120>}, {pipeline_mode = #tpu.pipeline_mode<synchronous>, transform_indices = @transform_1, window_bounds = array<i64: 16, 16>}, {pipeline_mode = #tpu.pipeline_mode<synchronous>, transform_indices = @transform_2, window_bounds = array<i64: 16, 1>}, {pipeline_mode = #tpu.pipeline_mode<synchronous>, transform_indices = @transform_3, window_bounds = array<i64: 32, 64>}, {pipeline_mode = #tpu.pipeline_mode<synchronous>, transform_indices = @transform_4, window_bounds = array<i64: 32, 1>}, {pipeline_mode = #tpu.pipeline_mode<synchronous>, transform_indices = @transform_5, window_bounds = array<i64: 32, 224>}, {pipeline_mode = #tpu.pipeline_mode<synchronous>, transform_indices = @transform_6, window_bounds = array<i64: 32, 1>}, {pipeline_mode = #tpu.pipeline_mode<synchronous>, transform_indices = @transform_7, window_bounds = array<i64: 1, 32>}, {transform_indices = @transform_8, window_bounds = array<i64: 1>}, {transform_indices = @transform_9, window_bounds = array<i64: 1, 128>}]} {
    %c0 = arith.constant 0 : index
    %c0_0 = arith.constant 0 : index
    %c0_1 = arith.constant 0 : index
    %0 = vector.load %arg1[%c0, %c0_0, %c0_1] : memref<1x16x5120xf32, #tpu.memory_space<vmem>>, vector<1x16x5120xf32>
    %1 = vector.shape_cast %0 : vector<1x16x5120xf32> to vector<16x5120xf32>
    %c0_2 = arith.constant 0 : index
    %c0_3 = arith.constant 0 : index
    %2 = vector.load %arg2[%c0_2, %c0_3] : memref<16x16xf32, #tpu.memory_space<vmem>>, vector<16x16xf32>
    %cst = arith.constant dense<0.000000e+00> : vector<16x5120xf32>
    %3 = tpu.matmul %2, %1, %cst {dimension_numbers = #tpu.dot_dimension_numbers<[1], [0], [0], [1], [0, 0, 1, 1], [], []>} : vector<16x16xf32>, vector<16x5120xf32>, vector<16x5120xf32> -> vector<16x5120xf32>
    %c0_4 = arith.constant 0 : index
    %c0_5 = arith.constant 0 : index
    %4 = vector.load %arg3[%c0_4, %c0_5] : memref<16x1xf32, #tpu.memory_space<vmem>>, vector<16x1xf32>
    %5 = vector.broadcast %4 : vector<16x1xf32> to vector<16x5120xf32>
    %6 = arith.addf %3, %5 : vector<16x5120xf32>
    %cst_6 = arith.constant 0.000000e+00 : f32
    %7 = vector.broadcast %cst_6 : f32 to vector<16x5120xf32>
    %8 = arith.cmpf ogt, %6, %7 : vector<16x5120xf32>
    %cst_7 = arith.constant 0.000000e+00 : f32
    %9 = vector.broadcast %cst_7 : f32 to vector<16x5120xf32>
    %10 = arith.minimumf %6, %9 : vector<16x5120xf32>
    %11 = math.exp %10 : vector<16x5120xf32>
    %cst_8 = arith.constant 1.000000e+00 : f32
    %12 = vector.broadcast %cst_8 : f32 to vector<16x5120xf32>
    %13 = arith.subf %11, %12 : vector<16x5120xf32>
    %14 = arith.select %8, %6, %13 : vector<16x5120xi1>, vector<16x5120xf32>
    %15 = vector.extract_strided_slice %14 {offsets = [0, 0], sizes = [16, 4480], strides = [1, 1]} : vector<16x5120xf32> to vector<16x4480xf32>
    %16 = vector.extract_strided_slice %14 {offsets = [0, 128], sizes = [16, 4480], strides = [1, 1]} : vector<16x5120xf32> to vector<16x4480xf32>
    %17 = arith.maximumf %15, %16 : vector<16x4480xf32>
    %18 = vector.extract_strided_slice %14 {offsets = [0, 256], sizes = [16, 4480], strides = [1, 1]} : vector<16x5120xf32> to vector<16x4480xf32>
    %19 = arith.maximumf %17, %18 : vector<16x4480xf32>
    %20 = vector.extract_strided_slice %14 {offsets = [0, 384], sizes = [16, 4480], strides = [1, 1]} : vector<16x5120xf32> to vector<16x4480xf32>
    %21 = arith.maximumf %19, %20 : vector<16x4480xf32>
    %22 = vector.extract_strided_slice %14 {offsets = [0, 512], sizes = [16, 4480], strides = [1, 1]} : vector<16x5120xf32> to vector<16x4480xf32>
    %23 = arith.maximumf %21, %22 : vector<16x4480xf32>
    %24 = vector.extract_strided_slice %23 {offsets = [0, 0], sizes = [16, 4096], strides = [1, 1]} : vector<16x4480xf32> to vector<16x4096xf32>
    %25 = vector.extract_strided_slice %23 {offsets = [0, 128], sizes = [16, 4096], strides = [1, 1]} : vector<16x4480xf32> to vector<16x4096xf32>
    %26 = vector.extract_strided_slice %23 {offsets = [0, 256], sizes = [16, 4096], strides = [1, 1]} : vector<16x4480xf32> to vector<16x4096xf32>
    %27 = vector.extract_strided_slice %23 {offsets = [0, 384], sizes = [16, 4096], strides = [1, 1]} : vector<16x4480xf32> to vector<16x4096xf32>
    %28 = tpu.concatenate %24, %25, %26, %27 in 0 : vector<16x4096xf32>, vector<16x4096xf32>, vector<16x4096xf32>, vector<16x4096xf32> -> vector<64x4096xf32>
    %c0_9 = arith.constant 0 : index
    %c0_10 = arith.constant 0 : index
    %29 = vector.load %arg4[%c0_9, %c0_10] : memref<32x64xf32, #tpu.memory_space<vmem>>, vector<32x64xf32>
    %cst_11 = arith.constant dense<0.000000e+00> : vector<32x4096xf32>
    %30 = tpu.matmul %29, %28, %cst_11 {dimension_numbers = #tpu.dot_dimension_numbers<[1], [0], [0], [1], [0, 0, 1, 1], [], []>} : vector<32x64xf32>, vector<64x4096xf32>, vector<32x4096xf32> -> vector<32x4096xf32>
    %c0_12 = arith.constant 0 : index
    %c0_13 = arith.constant 0 : index
    %31 = vector.load %arg5[%c0_12, %c0_13] : memref<32x1xf32, #tpu.memory_space<vmem>>, vector<32x1xf32>
    %32 = vector.broadcast %31 : vector<32x1xf32> to vector<32x4096xf32>
    %33 = arith.addf %30, %32 : vector<32x4096xf32>
    %cst_14 = arith.constant 0.000000e+00 : f32
    %34 = vector.broadcast %cst_14 : f32 to vector<32x4096xf32>
    %35 = arith.cmpf ogt, %33, %34 : vector<32x4096xf32>
    %cst_15 = arith.constant 0.000000e+00 : f32
    %36 = vector.broadcast %cst_15 : f32 to vector<32x4096xf32>
    %37 = arith.minimumf %33, %36 : vector<32x4096xf32>
    %38 = math.exp %37 : vector<32x4096xf32>
    %cst_16 = arith.constant 1.000000e+00 : f32
    %39 = vector.broadcast %cst_16 : f32 to vector<32x4096xf32>
    %40 = arith.subf %38, %39 : vector<32x4096xf32>
    %41 = arith.select %35, %33, %40 : vector<32x4096xi1>, vector<32x4096xf32>
    %42 = vector.extract_strided_slice %41 {offsets = [0, 0], sizes = [32, 128], strides = [1, 1]} : vector<32x4096xf32> to vector<32x128xf32>
    %43 = vector.extract_strided_slice %41 {offsets = [0, 128], sizes = [32, 128], strides = [1, 1]} : vector<32x4096xf32> to vector<32x128xf32>
    %44 = arith.maximumf %42, %43 : vector<32x128xf32>
    %45 = vector.extract_strided_slice %41 {offsets = [0, 256], sizes = [32, 128], strides = [1, 1]} : vector<32x4096xf32> to vector<32x128xf32>
    %46 = arith.maximumf %44, %45 : vector<32x128xf32>
    %47 = vector.extract_strided_slice %41 {offsets = [0, 384], sizes = [32, 128], strides = [1, 1]} : vector<32x4096xf32> to vector<32x128xf32>
    %48 = arith.maximumf %46, %47 : vector<32x128xf32>
    %49 = vector.extract_strided_slice %41 {offsets = [0, 512], sizes = [32, 128], strides = [1, 1]} : vector<32x4096xf32> to vector<32x128xf32>
    %50 = vector.extract_strided_slice %41 {offsets = [0, 640], sizes = [32, 128], strides = [1, 1]} : vector<32x4096xf32> to vector<32x128xf32>
    %51 = arith.maximumf %49, %50 : vector<32x128xf32>
    %52 = vector.extract_strided_slice %41 {offsets = [0, 768], sizes = [32, 128], strides = [1, 1]} : vector<32x4096xf32> to vector<32x128xf32>
    %53 = arith.maximumf %51, %52 : vector<32x128xf32>
    %54 = vector.extract_strided_slice %41 {offsets = [0, 896], sizes = [32, 128], strides = [1, 1]} : vector<32x4096xf32> to vector<32x128xf32>
    %55 = arith.maximumf %53, %54 : vector<32x128xf32>
    %56 = vector.extract_strided_slice %41 {offsets = [0, 1024], sizes = [32, 128], strides = [1, 1]} : vector<32x4096xf32> to vector<32x128xf32>
    %57 = vector.extract_strided_slice %41 {offsets = [0, 1152], sizes = [32, 128], strides = [1, 1]} : vector<32x4096xf32> to vector<32x128xf32>
    %58 = arith.maximumf %56, %57 : vector<32x128xf32>
    %59 = vector.extract_strided_slice %41 {offsets = [0, 1280], sizes = [32, 128], strides = [1, 1]} : vector<32x4096xf32> to vector<32x128xf32>
    %60 = arith.maximumf %58, %59 : vector<32x128xf32>
    %61 = vector.extract_strided_slice %41 {offsets = [0, 1408], sizes = [32, 128], strides = [1, 1]} : vector<32x4096xf32> to vector<32x128xf32>
    %62 = arith.maximumf %60, %61 : vector<32x128xf32>
    %63 = vector.extract_strided_slice %41 {offsets = [0, 1536], sizes = [32, 128], strides = [1, 1]} : vector<32x4096xf32> to vector<32x128xf32>
    %64 = vector.extract_strided_slice %41 {offsets = [0, 1664], sizes = [32, 128], strides = [1, 1]} : vector<32x4096xf32> to vector<32x128xf32>
    %65 = arith.maximumf %63, %64 : vector<32x128xf32>
    %66 = vector.extract_strided_slice %41 {offsets = [0, 1792], sizes = [32, 128], strides = [1, 1]} : vector<32x4096xf32> to vector<32x128xf32>
    %67 = arith.maximumf %65, %66 : vector<32x128xf32>
    %68 = vector.extract_strided_slice %41 {offsets = [0, 1920], sizes = [32, 128], strides = [1, 1]} : vector<32x4096xf32> to vector<32x128xf32>
    %69 = arith.maximumf %67, %68 : vector<32x128xf32>
    %70 = vector.extract_strided_slice %41 {offsets = [0, 2048], sizes = [32, 128], strides = [1, 1]} : vector<32x4096xf32> to vector<32x128xf32>
    %71 = vector.extract_strided_slice %41 {offsets = [0, 2176], sizes = [32, 128], strides = [1, 1]} : vector<32x4096xf32> to vector<32x128xf32>
    %72 = arith.maximumf %70, %71 : vector<32x128xf32>
    %73 = vector.extract_strided_slice %41 {offsets = [0, 2304], sizes = [32, 128], strides = [1, 1]} : vector<32x4096xf32> to vector<32x128xf32>
    %74 = arith.maximumf %72, %73 : vector<32x128xf32>
    %75 = vector.extract_strided_slice %41 {offsets = [0, 2432], sizes = [32, 128], strides = [1, 1]} : vector<32x4096xf32> to vector<32x128xf32>
    %76 = arith.maximumf %74, %75 : vector<32x128xf32>
    %77 = vector.extract_strided_slice %41 {offsets = [0, 2560], sizes = [32, 128], strides = [1, 1]} : vector<32x4096xf32> to vector<32x128xf32>
    %78 = vector.extract_strided_slice %41 {offsets = [0, 2688], sizes = [32, 128], strides = [1, 1]} : vector<32x4096xf32> to vector<32x128xf32>
    %79 = arith.maximumf %77, %78 : vector<32x128xf32>
    %80 = vector.extract_strided_slice %41 {offsets = [0, 2816], sizes = [32, 128], strides = [1, 1]} : vector<32x4096xf32> to vector<32x128xf32>
    %81 = arith.maximumf %79, %80 : vector<32x128xf32>
    %82 = vector.extract_strided_slice %41 {offsets = [0, 2944], sizes = [32, 128], strides = [1, 1]} : vector<32x4096xf32> to vector<32x128xf32>
    %83 = arith.maximumf %81, %82 : vector<32x128xf32>
    %84 = vector.extract_strided_slice %41 {offsets = [0, 3072], sizes = [32, 128], strides = [1, 1]} : vector<32x4096xf32> to vector<32x128xf32>
    %85 = vector.extract_strided_slice %41 {offsets = [0, 3200], sizes = [32, 128], strides = [1, 1]} : vector<32x4096xf32> to vector<32x128xf32>
    %86 = arith.maximumf %84, %85 : vector<32x128xf32>
    %87 = vector.extract_strided_slice %41 {offsets = [0, 3328], sizes = [32, 128], strides = [1, 1]} : vector<32x4096xf32> to vector<32x128xf32>
    %88 = arith.maximumf %86, %87 : vector<32x128xf32>
    %89 = vector.extract_strided_slice %41 {offsets = [0, 3456], sizes = [32, 128], strides = [1, 1]} : vector<32x4096xf32> to vector<32x128xf32>
    %90 = arith.maximumf %88, %89 : vector<32x128xf32>
    %91 = tpu.concatenate %48, %55, %62, %69, %76, %83, %90 in 0 : vector<32x128xf32>, vector<32x128xf32>, vector<32x128xf32>, vector<32x128xf32>, vector<32x128xf32>, vector<32x128xf32>, vector<32x128xf32> -> vector<224x128xf32>
    %c0_17 = arith.constant 0 : index
    %c0_18 = arith.constant 0 : index
    %92 = vector.load %arg6[%c0_17, %c0_18] : memref<32x224xf32, #tpu.memory_space<vmem>>, vector<32x224xf32>
    %cst_19 = arith.constant dense<0.000000e+00> : vector<32x128xf32>
    %93 = tpu.matmul %92, %91, %cst_19 {dimension_numbers = #tpu.dot_dimension_numbers<[1], [0], [0], [1], [0, 0, 1, 1], [], []>} : vector<32x224xf32>, vector<224x128xf32>, vector<32x128xf32> -> vector<32x128xf32>
    %c0_20 = arith.constant 0 : index
    %c0_21 = arith.constant 0 : index
    %94 = vector.load %arg7[%c0_20, %c0_21] : memref<32x1xf32, #tpu.memory_space<vmem>>, vector<32x1xf32>
    %95 = vector.broadcast %94 : vector<32x1xf32> to vector<32x128xf32>
    %96 = arith.addf %93, %95 : vector<32x128xf32>
    %cst_22 = arith.constant 0.000000e+00 : f32
    %97 = vector.broadcast %cst_22 : f32 to vector<32x128xf32>
    %98 = arith.cmpf ogt, %96, %97 : vector<32x128xf32>
    %cst_23 = arith.constant 0.000000e+00 : f32
    %99 = vector.broadcast %cst_23 : f32 to vector<32x128xf32>
    %100 = arith.minimumf %96, %99 : vector<32x128xf32>
    %101 = math.exp %100 : vector<32x128xf32>
    %cst_24 = arith.constant 1.000000e+00 : f32
    %102 = vector.broadcast %cst_24 : f32 to vector<32x128xf32>
    %103 = arith.subf %101, %102 : vector<32x128xf32>
    %104 = arith.select %98, %96, %103 : vector<32x128xi1>, vector<32x128xf32>
    %c0_25 = arith.constant 0 : index
    %c0_26 = arith.constant 0 : index
    %105 = vector.load %arg8[%c0_25, %c0_26] : memref<1x32xf32, #tpu.memory_space<vmem>>, vector<1x32xf32>
    %cst_27 = arith.constant dense<0.000000e+00> : vector<1x128xf32>
    %106 = tpu.matmul %105, %104, %cst_27 {dimension_numbers = #tpu.dot_dimension_numbers<[1], [0], [0], [1], [0, 0, 1, 1], [], []>} : vector<1x32xf32>, vector<32x128xf32>, vector<1x128xf32> -> vector<1x128xf32>
    %c0_28 = arith.constant 0 : index
    %107 = memref.load %arg9[%c0_28] : memref<1xf32, #tpu.memory_space<smem>>
    %108 = vector.broadcast %107 : f32 to vector<1x128xf32>
    %109 = arith.addf %106, %108 : vector<1x128xf32>
    %110 = arith.negf %109 : vector<1x128xf32>
    %111 = math.exp %110 : vector<1x128xf32>
    %cst_29 = arith.constant 1.000000e+00 : f32
    %112 = vector.broadcast %cst_29 : f32 to vector<1x128xf32>
    %113 = arith.addf %112, %111 : vector<1x128xf32>
    %114 = arith.divf %112, %113 : vector<1x128xf32>
    %c0_30 = arith.constant 0 : index
    %c0_31 = arith.constant 0 : index
    %115 = vector.load %arg10[%c0_30, %c0_31] : memref<1x128xf32, #tpu.memory_space<vmem>>, vector<1x128xf32>
    tpu.vector_store %arg10[%c0_30, %c0_31], %114 {strides = array<i32>} : memref<1x128xf32, #tpu.memory_space<vmem>>, vector<1x128xf32>,
    return
  }
  func.func @transform_0(%arg0: i32) -> (i32, i32, i32) {
    %c0_i32 = arith.constant 0 : i32
    %c0_i32_0 = arith.constant 0 : i32
    %c0_i32_1 = arith.constant 0 : i32
    return %arg0, %c0_i32, %c0_i32_0 : i32, i32, i32
  }
  func.func @transform_1(%arg0: i32) -> (i32, i32) {
    %c0_i32 = arith.constant 0 : i32
    %c0_i32_0 = arith.constant 0 : i32
    %c0_i32_1 = arith.constant 0 : i32
    return %c0_i32, %c0_i32_0 : i32, i32
  }
  func.func @transform_2(%arg0: i32) -> (i32, i32) {
    %c0_i32 = arith.constant 0 : i32
    %c0_i32_0 = arith.constant 0 : i32
    %c0_i32_1 = arith.constant 0 : i32
    return %c0_i32, %c0_i32_0 : i32, i32
  }
  func.func @transform_3(%arg0: i32) -> (i32, i32) {
    %c0_i32 = arith.constant 0 : i32
    %c0_i32_0 = arith.constant 0 : i32
    %c0_i32_1 = arith.constant 0 : i32
    return %c0_i32, %c0_i32_0 : i32, i32
  }
  func.func @transform_4(%arg0: i32) -> (i32, i32) {
    %c0_i32 = arith.constant 0 : i32
    %c0_i32_0 = arith.constant 0 : i32
    %c0_i32_1 = arith.constant 0 : i32
    return %c0_i32, %c0_i32_0 : i32, i32
  }
  func.func @transform_5(%arg0: i32) -> (i32, i32) {
    %c0_i32 = arith.constant 0 : i32
    %c0_i32_0 = arith.constant 0 : i32
    %c0_i32_1 = arith.constant 0 : i32
    return %c0_i32, %c0_i32_0 : i32, i32
  }
  func.func @transform_6(%arg0: i32) -> (i32, i32) {
    %c0_i32 = arith.constant 0 : i32
    %c0_i32_0 = arith.constant 0 : i32
    %c0_i32_1 = arith.constant 0 : i32
    return %c0_i32, %c0_i32_0 : i32, i32
  }
  func.func @transform_7(%arg0: i32) -> (i32, i32) {
    %c0_i32 = arith.constant 0 : i32
    %c0_i32_0 = arith.constant 0 : i32
    %c0_i32_1 = arith.constant 0 : i32
    return %c0_i32, %c0_i32_0 : i32, i32
  }
  func.func @transform_8(%arg0: i32) -> i32 {
    %c0_i32 = arith.constant 0 : i32
    %c0_i32_0 = arith.constant 0 : i32
    return %c0_i32 : i32
  }
  func.func @transform_9(%arg0: i32) -> (i32, i32) {
    %c0_i32 = arith.constant 0 : i32
    %c0_i32_0 = arith.constant 0 : i32
    return %c0_i32, %arg0 : i32, i32
  }
}

</mosaic_0001>

<llo_original>
// kernel: tpu_custom_call.1
$region0: #{tpu_custom_call.1}
  #allocation0 [shape = 'u32[]', space=smem, size = 0x4, offset = 0x4, fixed_abs, tag = 'smem constant byte address 0x4 - core index']
  #allocation1 [shape = 'u32[72,128]{1,0:T(1,128)}', space=vmem, size = 0x9000, scoped, tag = 'internal scratch']
  #allocation2 [shape = 'f32[1]{0:T(128)S(6)}', space=smem, size = 0x200, scoped, tag = 'scoped memory for tpu_custom_call.1']
  %s0 = inlined_call_operand.hbm [shape: f32[1,16,5120], index: 0, kind: input, shape index: {}]
  %s1 = inlined_call_operand.vmem [shape: f32[16,16], index: 1, kind: input, shape index: {}]
  %s2 = inlined_call_operand.vmem [shape: f32[16,1], index: 2, kind: input, shape index: {}]
  %s3 = inlined_call_operand.hbm [shape: f32[32,64], index: 3, kind: input, shape index: {}]
  %s4 = inlined_call_operand.vmem [shape: f32[32,1], index: 4, kind: input, shape index: {}]
  %s5 = inlined_call_operand.vmem [shape: f32[32,224], index: 5, kind: input, shape index: {}]
  %s6 = inlined_call_operand.vmem [shape: f32[32,1], index: 6, kind: input, shape index: {}]
  %s7 = inlined_call_operand.vmem [shape: f32[1,32], index: 7, kind: input, shape index: {}]
  %s8 = inlined_call_operand.<no memory space> [shape: f32[1], index: 8, kind: input, shape index: {}]
  %s9 = inlined_call_operand.hbm [shape: f32[1,128], index: 9, kind: output, shape index: {}]
  %s10 = sld [smem:[#allocation0]]
  $region54: #{tpu_custom_call.1} parent=0
    _
  %s12 = ssub.s32 1, %s10
  %s13 = scalar_select 0, %s12, %s10
  %14 = sst [smem:[#allocation2]] %s8
  $region1: #{tpu_custom_call.1} parent=0
    #allocation3 [shape = 'u8[327680]{0}', space=vmem, size = 0x50000, scoped, tag = 'input window, operand 0, single buffered']
    #allocation4 [shape = 's32[1]{0}', space=sflag, size = 0x4, scoped, tag = 'scoped memory for tpu_custom_call.1']
    #allocation5 [shape = 's32[1]{0}', space=sflag, size = 0x4, scoped, tag = 'scoped memory for tpu_custom_call.1']
    #allocation6 [shape = 'u8[16384]{0}', space=vmem, size = 0x4000, scoped, tag = 'input window, operand 3, single buffered']
    #allocation7 [shape = 's32[1]{0}', space=sflag, size = 0x4, scoped, tag = 'scoped memory for tpu_custom_call.1']
    #allocation8 [shape = 'u8[512]{0}', space=vmem, size = 0x400, scoped, tag = 'output window, operand 0, single buffered']
    %15 = vsyncpa [#allocation4], 0
    %16 = vsyncpa [#allocation7], 0
    %17 = vsyncpa [#allocation5], 0
    // Predicated region
    $region2: #{tpu_custom_call.1} parent=1 // pred_check
      _
    $region3: #{tpu_custom_call.1} parent=1 // pred_check_branch
      %19 = sbr.rel (0) target = $region5
    $region4: #{tpu_custom_call.1} parent=1 // pred_region
      %21 = vsyncadd [#allocation4], 0
      %s22 = sshll.u32 %s0, 4
      %s23 = int_to_ptr.hbm [resolvable:$true] %s22
      %s24 = sshll.u32 [#allocation3], 4
      %s25 = int_to_ptr.vmem [resolvable:$true] %s24
      %30 = dma.hbm_to_vmem [thread:$0]  %s23, 10240, %s25, [#allocation4], 5120, 5120, 320
    $region5: #{tpu_custom_call.1} parent=1 // pred_fallthru
      _
    // Predicated region
    $region6: #{tpu_custom_call.1} parent=1 // pred_check
      _
    $region7: #{tpu_custom_call.1} parent=1 // pred_check_branch
      %32 = sbr.rel (0) target = $region9
    $region8: #{tpu_custom_call.1} parent=1 // pred_region
      _
    $region9: #{tpu_custom_call.1} parent=1 // pred_fallthru
      _
    // Predicated region
    $region10: #{tpu_custom_call.1} parent=1 // pred_check
      _
    $region11: #{tpu_custom_call.1} parent=1 // pred_check_branch
      %34 = sbr.rel (0) target = $region13
    $region12: #{tpu_custom_call.1} parent=1 // pred_region
      _
    $region13: #{tpu_custom_call.1} parent=1 // pred_fallthru
      _
    // Predicated region
    $region14: #{tpu_custom_call.1} parent=1 // pred_check
      _
    $region15: #{tpu_custom_call.1} parent=1 // pred_check_branch
      %36 = sbr.rel (0) target = $region17
    $region16: #{tpu_custom_call.1} parent=1 // pred_region
      %38 = vsyncadd [#allocation7], 0
      %s39 = sshll.u32 %s3, 4
      %s40 = int_to_ptr.hbm [resolvable:$true] %s39
      %s41 = sshll.u32 [#allocation6], 4
      %s42 = int_to_ptr.vmem [resolvable:$true] %s41
      %47 = dma.hbm_to_vmem [thread:$0]  %s40, 512, %s42, [#allocation7], 128, 128, 8
    $region17: #{tpu_custom_call.1} parent=1 // pred_fallthru
      _
    // Predicated region
    $region18: #{tpu_custom_call.1} parent=1 // pred_check
      _
    $region19: #{tpu_custom_call.1} parent=1 // pred_check_branch
      %49 = sbr.rel (0) target = $region21
    $region20: #{tpu_custom_call.1} parent=1 // pred_region
      _
    $region21: #{tpu_custom_call.1} parent=1 // pred_fallthru
      _
    // Predicated region
    $region22: #{tpu_custom_call.1} parent=1 // pred_check
      _
    $region23: #{tpu_custom_call.1} parent=1 // pred_check_branch
      %51 = sbr.rel (0) target = $region25
    $region24: #{tpu_custom_call.1} parent=1 // pred_region
      _
    $region25: #{tpu_custom_call.1} parent=1 // pred_fallthru
      _
    // Predicated region
    $region26: #{tpu_custom_call.1} parent=1 // pred_check
      _
    $region27: #{tpu_custom_call.1} parent=1 // pred_check_branch
      %53 = sbr.rel (0) target = $region29
    $region28: #{tpu_custom_call.1} parent=1 // pred_region
      _
    $region29: #{tpu_custom_call.1} parent=1 // pred_fallthru
      _
    // Predicated region
    $region30: #{tpu_custom_call.1} parent=1 // pred_check
      _
    $region31: #{tpu_custom_call.1} parent=1 // pred_check_branch
      %55 = sbr.rel (0) target = $region33
    $region32: #{tpu_custom_call.1} parent=1 // pred_region
      _
    $region33: #{tpu_custom_call.1} parent=1 // pred_fallthru
      _
    // Predicated region
    $region34: #{tpu_custom_call.1} parent=1 // pred_check
      _
    $region35: #{tpu_custom_call.1} parent=1 // pred_check_branch
      %57 = sbr.rel (0) target = $region37
    $region36: #{tpu_custom_call.1} parent=1 // pred_region
      _
    $region37: #{tpu_custom_call.1} parent=1 // pred_fallthru
      _
    // Predicated region
    $region38: #{tpu_custom_call.1} parent=1 // pred_check
      _
    $region39: #{tpu_custom_call.1} parent=1 // pred_check_branch
      %59 = sbr.rel (0) target = $region41
    $region40: #{tpu_custom_call.1} parent=1 // pred_region
      %61 = dma.done [#allocation4], 10240
    $region41: #{tpu_custom_call.1} parent=1 // pred_fallthru
      _
    // Predicated region
    $region42: #{tpu_custom_call.1} parent=1 // pred_check
      _
    $region43: #{tpu_custom_call.1} parent=1 // pred_check_branch
      %63 = sbr.rel (0) target = $region45
    $region44: #{tpu_custom_call.1} parent=1 // pred_region
      %65 = dma.done [#allocation7], 512
    $region45: #{tpu_custom_call.1} parent=1 // pred_fallthru
      _
    %v66 = vld [vmem:[#allocation3] sm:$0xff]
    %v67 = vld [vmem:[#allocation3 + $0x8] sm:$0xff]
    %v68 = vld [vmem:[#allocation3 + $0x10] sm:$0xff]
    %v69 = vld [vmem:[#allocation3 + $0x18] sm:$0xff]
    %v70 = vld [vmem:[#allocation3 + $0x20] sm:$0xff]
    %v71 = vld [vmem:[#allocation3 + $0x28] sm:$0xff]
    %v72 = vld [vmem:[#allocation3 + $0x30] sm:$0xff]
    %v73 = vld [vmem:[#allocation3 + $0x38] sm:$0xff]
    %v74 = vld [vmem:[#allocation3 + $0x40] sm:$0xff]
    %v75 = vld [vmem:[#allocation3 + $0x48] sm:$0xff]
    %v76 = vld [vmem:[#allocation3 + $0x50] sm:$0xff]
    %v77 = vld [vmem:[#allocation3 + $0x58] sm:$0xff]
    %v78 = vld [vmem:[#allocation3 + $0x60] sm:$0xff]
    %v79 = vld [vmem:[#allocation3 + $0x68] sm:$0xff]
    %v80 = vld [vmem:[#allocation3 + $0x70] sm:$0xff]
    %v81 = vld [vmem:[#allocation3 + $0x78] sm:$0xff]
    %v82 = vld [vmem:[#allocation3 + $0x80] sm:$0xff]
    %v83 = vld [vmem:[#allocation3 + $0x88] sm:$0xff]
    %v84 = vld [vmem:[#allocation3 + $0x90] sm:$0xff]
    %v85 = vld [vmem:[#allocation3 + $0x98] sm:$0xff]
    %v86 = vld [vmem:[#allocation3 + $0xa0] sm:$0xff]
    %v87 = vld [vmem:[#allocation3 + $0xa8] sm:$0xff]
    %v88 = vld [vmem:[#allocation3 + $0xb0] sm:$0xff]
    %v89 = vld [vmem:[#allocation3 + $0xb8] sm:$0xff]
    %v90 = vld [vmem:[#allocation3 + $0xc0] sm:$0xff]
    %v91 = vld [vmem:[#allocation3 + $0xc8] sm:$0xff]
    %v92 = vld [vmem:[#allocation3 + $0xd0] sm:$0xff]
    %v93 = vld [vmem:[#allocation3 + $0xd8] sm:$0xff]
    %v94 = vld [vmem:[#allocation3 + $0xe0] sm:$0xff]
    %v95 = vld [vmem:[#allocation3 + $0xe8] sm:$0xff]
    %v96 = vld [vmem:[#allocation3 + $0xf0] sm:$0xff]
    %v97 = vld [vmem:[#allocation3 + $0xf8] sm:$0xff]
    %v98 = vld [vmem:[#allocation3 + $0x100] sm:$0xff]
    %v99 = vld [vmem:[#allocation3 + $0x108] sm:$0xff]
    %v100 = vld [vmem:[#allocation3 + $0x110] sm:$0xff]
    %v101 = vld [vmem:[#allocation3 + $0x140] sm:$0xff]
    %v102 = vld [vmem:[#allocation3 + $0x148] sm:$0xff]
    %v103 = vld [vmem:[#allocation3 + $0x150] sm:$0xff]
    %v104 = vld [vmem:[#allocation3 + $0x158] sm:$0xff]
    %v105 = vld [vmem:[#allocation3 + $0x160] sm:$0xff]
    %v106 = vld [vmem:[#allocation3 + $0x168] sm:$0xff]
    %v107 = vld [vmem:[#allocation3 + $0x170] sm:$0xff]
    %v108 = vld [vmem:[#allocation3 + $0x178] sm:$0xff]
    %v109 = vld [vmem:[#allocation3 + $0x180] sm:$0xff]
    %v110 = vld [vmem:[#allocation3 + $0x188] sm:$0xff]
    %v111 = vld [vmem:[#allocation3 + $0x190] sm:$0xff]
    %v112 = vld [vmem:[#allocation3 + $0x198] sm:$0xff]
    %v113 = vld [vmem:[#allocation3 + $0x1a0] sm:$0xff]
    %v114 = vld [vmem:[#allocation3 + $0x1a8] sm:$0xff]
    %v115 = vld [vmem:[#allocation3 + $0x1b0] sm:$0xff]
    %v116 = vld [vmem:[#allocation3 + $0x1b8] sm:$0xff]
    %v117 = vld [vmem:[#allocation3 + $0x1c0] sm:$0xff]
    %v118 = vld [vmem:[#allocation3 + $0x1c8] sm:$0xff]
    %v119 = vld [vmem:[#allocation3 + $0x1d0] sm:$0xff]
    %v120 = vld [vmem:[#allocation3 + $0x1d8] sm:$0xff]
    %v121 = vld [vmem:[#allocation3 + $0x1e0] sm:$0xff]
    %v122 = vld [vmem:[#allocation3 + $0x1e8] sm:$0xff]
    %v123 = vld [vmem:[#allocation3 + $0x1f0] sm:$0xff]
    %v124 = vld [vmem:[#allocation3 + $0x1f8] sm:$0xff]
    %v125 = vld [vmem:[#allocation3 + $0x200] sm:$0xff]
    %v126 = vld [vmem:[#allocation3 + $0x208] sm:$0xff]
    %v127 = vld [vmem:[#allocation3 + $0x210] sm:$0xff]
    %v128 = vld [vmem:[#allocation3 + $0x218] sm:$0xff]
    %v129 = vld [vmem:[#allocation3 + $0x220] sm:$0xff]
    %v130 = vld [vmem:[#allocation3 + $0x228] sm:$0xff]
    %v131 = vld [vmem:[#allocation3 + $0x230] sm:$0xff]
    %v132 = vld [vmem:[#allocation3 + $0x238] sm:$0xff]
    %v133 = vld [vmem:[#allocation3 + $0x240] sm:$0xff]
    %v134 = vld [vmem:[#allocation3 + $0x248] sm:$0xff]
    %v135 = vld [vmem:[#allocation3 + $0x250] sm:$0xff]
    %v136 = vld [vmem:[%s1] sm:$0xff]
    %v137 = vld [vmem:[%s1 + $0x8] sm:$0xff]
    %v138 = vld [vmem:[%s2] sm:$0xff]
    %v139 = vld [vmem:[%s2 + $0x8] sm:$0xff]
    %141 = vset.pattern.permute.xlu0 0
    %142 = vperm.xlu0 %141, %v138
    %v143 = vpop.permute.xlu0 %142
    %146 = vset.pattern.permute.xlu0 0
    %147 = vperm.xlu0 %146, %v139
    %v148 = vpop.permute.xlu0 %147
    %vm150 = vcmask 130048
    %v152 = vsel %vm150, %v136, 0
    %v155 = vsel %vm150, %v137, 0
    %157 = vmatpush.msra.mxu0 0.0
    %158 = vmatpush.msra.mxu0 0.0
    %159 = vmatpush.msra.mxu0 0.0
    %160 = vmatpush.msra.mxu0 0.0
    %161 = vmatpush.msra.mxu0 0.0
    %162 = vmatpush.msra.mxu0 0.0
    %163 = vmatpush.msra.mxu0 0.0
    %164 = vmatpush.msra.mxu0 0.0
    %165 = vmatpush.msra.mxu0 0.0
    %166 = vmatpush.msra.mxu0 0.0
    %167 = vmatpush.msra.mxu0 0.0
    %168 = vmatpush.msra.mxu0 0.0
    %169 = vmatpush.msra.mxu0 0.0
    %170 = vmatpush.msra.mxu0 0.0
    %171 = vmatpush.msra.mxu0 %v101
    %172 = vmatpush.msra.mxu0 %v66
    %173 = vmatmul.f32.gmra.mxu0 %v152
    %v174 = vpop.f32.mrf.mxu0
    %v175 = vadd.f32 %v143, %v174
    %176 = vmatmul.f32.gmra.mxu0 %v155
    %v177 = vpop.f32.mrf.mxu0
    %v178 = vadd.f32 %v148, %v177
    %179 = vdwg.mxu0
    %180 = vmatpush.msra.mxu0 0.0
    %181 = vmatpush.msra.mxu0 0.0
    %182 = vmatpush.msra.mxu0 0.0
    %183 = vmatpush.msra.mxu0 0.0
    %184 = vmatpush.msra.mxu0 0.0
    %185 = vmatpush.msra.mxu0 0.0
    %186 = vmatpush.msra.mxu0 0.0
    %187 = vmatpush.msra.mxu0 0.0
    %188 = vmatpush.msra.mxu0 0.0
    %189 = vmatpush.msra.mxu0 0.0
    %190 = vmatpush.msra.mxu0 0.0
    %191 = vmatpush.msra.mxu0 0.0
    %192 = vmatpush.msra.mxu0 0.0
    %193 = vmatpush.msra.mxu0 0.0
    %194 = vmatpush.msra.mxu0 %v102
    %195 = vmatpush.msra.mxu0 %v67
    %196 = vmatmul.f32.gmra.mxu0 %v152
    %v197 = vpop.f32.mrf.mxu0
    %v198 = vadd.f32 %v143, %v197
    %199 = vmatmul.f32.gmra.mxu0 %v155
    %v200 = vpop.f32.mrf.mxu0
    %v201 = vadd.f32 %v148, %v200
    %202 = vdwg.mxu0
    %203 = vmatpush.msra.mxu0 0.0
    %204 = vmatpush.msra.mxu0 0.0
    %205 = vmatpush.msra.mxu0 0.0
    %206 = vmatpush.msra.mxu0 0.0
    %207 = vmatpush.msra.mxu0 0.0
    %208 = vmatpush.msra.mxu0 0.0
    %209 = vmatpush.msra.mxu0 0.0
    %210 = vmatpush.msra.mxu0 0.0
    %211 = vmatpush.msra.mxu0 0.0
    %212 = vmatpush.msra.mxu0 0.0
    %213 = vmatpush.msra.mxu0 0.0
    %214 = vmatpush.msra.mxu0 0.0
    %215 = vmatpush.msra.mxu0 0.0
    %216 = vmatpush.msra.mxu0 0.0
    %217 = vmatpush.msra.mxu0 %v103
    %218 = vmatpush.msra.mxu0 %v68
    %219 = vmatmul.f32.gmra.mxu0 %v152
    %v220 = vpop.f32.mrf.mxu0
    %v221 = vadd.f32 %v143, %v220
    %222 = vmatmul.f32.gmra.mxu0 %v155
    %v223 = vpop.f32.mrf.mxu0
    %v224 = vadd.f32 %v148, %v223
    %225 = vdwg.mxu0
    %226 = vmatpush.msra.mxu0 0.0
    %227 = vmatpush.msra.mxu0 0.0
    %228 = vmatpush.msra.mxu0 0.0
    %229 = vmatpush.msra.mxu0 0.0
    %230 = vmatpush.msra.mxu0 0.0
    %231 = vmatpush.msra.mxu0 0.0
    %232 = vmatpush.msra.mxu0 0.0
    %233 = vmatpush.msra.mxu0 0.0
    %234 = vmatpush.msra.mxu0 0.0
    %235 = vmatpush.msra.mxu0 0.0
    %236 = vmatpush.msra.mxu0 0.0
    %237 = vmatpush.msra.mxu0 0.0
    %238 = vmatpush.msra.mxu0 0.0
    %239 = vmatpush.msra.mxu0 0.0
    %240 = vmatpush.msra.mxu0 %v104
    %241 = vmatpush.msra.mxu0 %v69
    %242 = vmatmul.f32.gmra.mxu0 %v152
    %v243 = vpop.f32.mrf.mxu0
    %v244 = vadd.f32 %v143, %v243
    %245 = vmatmul.f32.gmra.mxu0 %v155
    %v246 = vpop.f32.mrf.mxu0
    %v247 = vadd.f32 %v148, %v246
    %248 = vdwg.mxu0
    %249 = vmatpush.msra.mxu0 0.0
    %250 = vmatpush.msra.mxu0 0.0
    %251 = vmatpush.msra.mxu0 0.0
    %252 = vmatpush.msra.mxu0 0.0
    %253 = vmatpush.msra.mxu0 0.0
    %254 = vmatpush.msra.mxu0 0.0
    %255 = vmatpush.msra.mxu0 0.0
    %256 = vmatpush.msra.mxu0 0.0
    %257 = vmatpush.msra.mxu0 0.0
    %258 = vmatpush.msra.mxu0 0.0
    %259 = vmatpush.msra.mxu0 0.0
    %260 = vmatpush.msra.mxu0 0.0
    %261 = vmatpush.msra.mxu0 0.0
    %262 = vmatpush.msra.mxu0 0.0
    %263 = vmatpush.msra.mxu0 %v105
    %264 = vmatpush.msra.mxu0 %v70
    %265 = vmatmul.f32.gmra.mxu0 %v152
    %v266 = vpop.f32.mrf.mxu0
    %v267 = vadd.f32 %v143, %v266
    %268 = vmatmul.f32.gmra.mxu0 %v155
    %v269 = vpop.f32.mrf.mxu0
    %v270 = vadd.f32 %v148, %v269
    %271 = vdwg.mxu0
    %272 = vmatpush.msra.mxu0 0.0
    %273 = vmatpush.msra.mxu0 0.0
    %274 = vmatpush.msra.mxu0 0.0
    %275 = vmatpush.msra.mxu0 0.0
    %276 = vmatpush.msra.mxu0 0.0
    %277 = vmatpush.msra.mxu0 0.0
    %278 = vmatpush.msra.mxu0 0.0
    %279 = vmatpush.msra.mxu0 0.0
    %280 = vmatpush.msra.mxu0 0.0
    %281 = vmatpush.msra.mxu0 0.0
    %282 = vmatpush.msra.mxu0 0.0
    %283 = vmatpush.msra.mxu0 0.0
    %284 = vmatpush.msra.mxu0 0.0
    %285 = vmatpush.msra.mxu0 0.0
    %286 = vmatpush.msra.mxu0 %v106
    %287 = vmatpush.msra.mxu0 %v71
    %288 = vmatmul.f32.gmra.mxu0 %v152
    %v289 = vpop.f32.mrf.mxu0
    %v290 = vadd.f32 %v143, %v289
    %291 = vmatmul.f32.gmra.mxu0 %v155
    %v292 = vpop.f32.mrf.mxu0
    %v293 = vadd.f32 %v148, %v292
    %294 = vdwg.mxu0
    %295 = vmatpush.msra.mxu0 0.0
    %296 = vmatpush.msra.mxu0 0.0
    %297 = vmatpush.msra.mxu0 0.0
    %298 = vmatpush.msra.mxu0 0.0
    %299 = vmatpush.msra.mxu0 0.0
    %300 = vmatpush.msra.mxu0 0.0
    %301 = vmatpush.msra.mxu0 0.0
    %302 = vmatpush.msra.mxu0 0.0
    %303 = vmatpush.msra.mxu0 0.0
    %304 = vmatpush.msra.mxu0 0.0
    %305 = vmatpush.msra.mxu0 0.0
    %306 = vmatpush.msra.mxu0 0.0
    %307 = vmatpush.msra.mxu0 0.0
    %308 = vmatpush.msra.mxu0 0.0
    %309 = vmatpush.msra.mxu0 %v107
    %310 = vmatpush.msra.mxu0 %v72
    %311 = vmatmul.f32.gmra.mxu0 %v152
    %v312 = vpop.f32.mrf.mxu0
    %v313 = vadd.f32 %v143, %v312
    %314 = vmatmul.f32.gmra.mxu0 %v155
    %v315 = vpop.f32.mrf.mxu0
    %v316 = vadd.f32 %v148, %v315
    %317 = vdwg.mxu0
    %318 = vmatpush.msra.mxu0 0.0
    %319 = vmatpush.msra.mxu0 0.0
    %320 = vmatpush.msra.mxu0 0.0
    %321 = vmatpush.msra.mxu0 0.0
    %322 = vmatpush.msra.mxu0 0.0
    %323 = vmatpush.msra.mxu0 0.0
    %324 = vmatpush.msra.mxu0 0.0
    %325 = vmatpush.msra.mxu0 0.0
    %326 = vmatpush.msra.mxu0 0.0
    %327 = vmatpush.msra.mxu0 0.0
    %328 = vmatpush.msra.mxu0 0.0
    %329 = vmatpush.msra.mxu0 0.0
    %330 = vmatpush.msra.mxu0 0.0
    %331 = vmatpush.msra.mxu0 0.0
    %332 = vmatpush.msra.mxu0 %v108
    %333 = vmatpush.msra.mxu0 %v73
    %334 = vmatmul.f32.gmra.mxu0 %v152
    %v335 = vpop.f32.mrf.mxu0
    %v336 = vadd.f32 %v143, %v335
    %337 = vmatmul.f32.gmra.mxu0 %v155
    %v338 = vpop.f32.mrf.mxu0
    %v339 = vadd.f32 %v148, %v338
    %340 = vdwg.mxu0
    %341 = vmatpush.msra.mxu0 0.0
    %342 = vmatpush.msra.mxu0 0.0
    %343 = vmatpush.msra.mxu0 0.0
    %344 = vmatpush.msra.mxu0 0.0
    %345 = vmatpush.msra.mxu0 0.0
    %346 = vmatpush.msra.mxu0 0.0
    %347 = vmatpush.msra.mxu0 0.0
    %348 = vmatpush.msra.mxu0 0.0
    %349 = vmatpush.msra.mxu0 0.0
    %350 = vmatpush.msra.mxu0 0.0
    %351 = vmatpush.msra.mxu0 0.0
    %352 = vmatpush.msra.mxu0 0.0
    %353 = vmatpush.msra.mxu0 0.0
    %354 = vmatpush.msra.mxu0 0.0
    %355 = vmatpush.msra.mxu0 %v109
    %356 = vmatpush.msra.mxu0 %v74
    %357 = vmatmul.f32.gmra.mxu0 %v152
    %v358 = vpop.f32.mrf.mxu0
    %v359 = vadd.f32 %v143, %v358
    %360 = vmatmul.f32.gmra.mxu0 %v155
    %v361 = vpop.f32.mrf.mxu0
    %v362 = vadd.f32 %v148, %v361
    %363 = vdwg.mxu0
    %364 = vmatpush.msra.mxu0 0.0
    %365 = vmatpush.msra.mxu0 0.0
    %366 = vmatpush.msra.mxu0 0.0
    %367 = vmatpush.msra.mxu0 0.0
    %368 = vmatpush.msra.mxu0 0.0
    %369 = vmatpush.msra.mxu0 0.0
    %370 = vmatpush.msra.mxu0 0.0
    %371 = vmatpush.msra.mxu0 0.0
    %372 = vmatpush.msra.mxu0 0.0
    %373 = vmatpush.msra.mxu0 0.0
    %374 = vmatpush.msra.mxu0 0.0
    %375 = vmatpush.msra.mxu0 0.0
    %376 = vmatpush.msra.mxu0 0.0
    %377 = vmatpush.msra.mxu0 0.0
    %378 = vmatpush.msra.mxu0 %v110
    %379 = vmatpush.msra.mxu0 %v75
    %380 = vmatmul.f32.gmra.mxu0 %v152
    %v381 = vpop.f32.mrf.mxu0
    %v382 = vadd.f32 %v143, %v381
    %383 = vmatmul.f32.gmra.mxu0 %v155
    %v384 = vpop.f32.mrf.mxu0
    %v385 = vadd.f32 %v148, %v384
    %386 = vdwg.mxu0
    %387 = vmatpush.msra.mxu0 0.0
    %388 = vmatpush.msra.mxu0 0.0
    %389 = vmatpush.msra.mxu0 0.0
    %390 = vmatpush.msra.mxu0 0.0
    %391 = vmatpush.msra.mxu0 0.0
    %392 = vmatpush.msra.mxu0 0.0
    %393 = vmatpush.msra.mxu0 0.0
    %394 = vmatpush.msra.mxu0 0.0
    %395 = vmatpush.msra.mxu0 0.0
    %396 = vmatpush.msra.mxu0 0.0
    %397 = vmatpush.msra.mxu0 0.0
    %398 = vmatpush.msra.mxu0 0.0
    %399 = vmatpush.msra.mxu0 0.0
    %400 = vmatpush.msra.mxu0 0.0
    %401 = vmatpush.msra.mxu0 %v111
    %402 = vmatpush.msra.mxu0 %v76
    %403 = vmatmul.f32.gmra.mxu0 %v152
    %v404 = vpop.f32.mrf.mxu0
    %v405 = vadd.f32 %v143, %v404
    %406 = vmatmul.f32.gmra.mxu0 %v155
    %v407 = vpop.f32.mrf.mxu0
    %v408 = vadd.f32 %v148, %v407
    %409 = vdwg.mxu0
    %410 = vmatpush.msra.mxu0 0.0
    %411 = vmatpush.msra.mxu0 0.0
    %412 = vmatpush.msra.mxu0 0.0
    %413 = vmatpush.msra.mxu0 0.0
    %414 = vmatpush.msra.mxu0 0.0
    %415 = vmatpush.msra.mxu0 0.0
    %416 = vmatpush.msra.mxu0 0.0
    %417 = vmatpush.msra.mxu0 0.0
    %418 = vmatpush.msra.mxu0 0.0
    %419 = vmatpush.msra.mxu0 0.0
    %420 = vmatpush.msra.mxu0 0.0
    %421 = vmatpush.msra.mxu0 0.0
    %422 = vmatpush.msra.mxu0 0.0
    %423 = vmatpush.msra.mxu0 0.0
    %424 = vmatpush.msra.mxu0 %v112
    %425 = vmatpush.msra.mxu0 %v77
    %426 = vmatmul.f32.gmra.mxu0 %v152
    %v427 = vpop.f32.mrf.mxu0
    %v428 = vadd.f32 %v143, %v427
    %429 = vmatmul.f32.gmra.mxu0 %v155
    %v430 = vpop.f32.mrf.mxu0
    %v431 = vadd.f32 %v148, %v430
    %432 = vdwg.mxu0
    %433 = vmatpush.msra.mxu0 0.0
    %434 = vmatpush.msra.mxu0 0.0
    %435 = vmatpush.msra.mxu0 0.0
    %436 = vmatpush.msra.mxu0 0.0
    %437 = vmatpush.msra.mxu0 0.0
    %438 = vmatpush.msra.mxu0 0.0
    %439 = vmatpush.msra.mxu0 0.0
    %440 = vmatpush.msra.mxu0 0.0
    %441 = vmatpush.msra.mxu0 0.0
    %442 = vmatpush.msra.mxu0 0.0
    %443 = vmatpush.msra.mxu0 0.0
    %444 = vmatpush.msra.mxu0 0.0
    %445 = vmatpush.msra.mxu0 0.0
    %446 = vmatpush.msra.mxu0 0.0
    %447 = vmatpush.msra.mxu0 %v113
    %448 = vmatpush.msra.mxu0 %v78
    %449 = vmatmul.f32.gmra.mxu0 %v152
    %v450 = vpop.f32.mrf.mxu0
    %v451 = vadd.f32 %v143, %v450
    %452 = vmatmul.f32.gmra.mxu0 %v155
    %v453 = vpop.f32.mrf.mxu0
    %v454 = vadd.f32 %v148, %v453
    %455 = vdwg.mxu0
    %456 = vmatpush.msra.mxu0 0.0
    %457 = vmatpush.msra.mxu0 0.0
    %458 = vmatpush.msra.mxu0 0.0
    %459 = vmatpush.msra.mxu0 0.0
    %460 = vmatpush.msra.mxu0 0.0
    %461 = vmatpush.msra.mxu0 0.0
    %462 = vmatpush.msra.mxu0 0.0
    %463 = vmatpush.msra.mxu0 0.0
    %464 = vmatpush.msra.mxu0 0.0
    %465 = vmatpush.msra.mxu0 0.0
    %466 = vmatpush.msra.mxu0 0.0
    %467 = vmatpush.msra.mxu0 0.0
    %468 = vmatpush.msra.mxu0 0.0
    %469 = vmatpush.msra.mxu0 0.0
    %470 = vmatpush.msra.mxu0 %v114
    %471 = vmatpush.msra.mxu0 %v79
    %472 = vmatmul.f32.gmra.mxu0 %v152
    %v473 = vpop.f32.mrf.mxu0
    %v474 = vadd.f32 %v143, %v473
    %475 = vmatmul.f32.gmra.mxu0 %v155
    %v476 = vpop.f32.mrf.mxu0
    %v477 = vadd.f32 %v148, %v476
    %478 = vdwg.mxu0
    %479 = vmatpush.msra.mxu0 0.0
    %480 = vmatpush.msra.mxu0 0.0
    %481 = vmatpush.msra.mxu0 0.0
    %482 = vmatpush.msra.mxu0 0.0
    %483 = vmatpush.msra.mxu0 0.0
    %484 = vmatpush.msra.mxu0 0.0
    %485 = vmatpush.msra.mxu0 0.0
    %486 = vmatpush.msra.mxu0 0.0
    %487 = vmatpush.msra.mxu0 0.0
    %488 = vmatpush.msra.mxu0 0.0
    %489 = vmatpush.msra.mxu0 0.0
    %490 = vmatpush.msra.mxu0 0.0
    %491 = vmatpush.msra.mxu0 0.0
    %492 = vmatpush.msra.mxu0 0.0
    %493 = vmatpush.msra.mxu0 %v115
    %494 = vmatpush.msra.mxu0 %v80
    %495 = vmatmul.f32.gmra.mxu0 %v152
    %v496 = vpop.f32.mrf.mxu0
    %v497 = vadd.f32 %v143, %v496
    %498 = vmatmul.f32.gmra.mxu0 %v155
    %v499 = vpop.f32.mrf.mxu0
    %v500 = vadd.f32 %v148, %v499
    %501 = vdwg.mxu0
    %502 = vmatpush.msra.mxu0 0.0
    %503 = vmatpush.msra.mxu0 0.0
    %504 = vmatpush.msra.mxu0 0.0
    %505 = vmatpush.msra.mxu0 0.0
    %506 = vmatpush.msra.mxu0 0.0
    %507 = vmatpush.msra.mxu0 0.0
    %508 = vmatpush.msra.mxu0 0.0
    %509 = vmatpush.msra.mxu0 0.0
    %510 = vmatpush.msra.mxu0 0.0
    %511 = vmatpush.msra.mxu0 0.0
    %512 = vmatpush.msra.mxu0 0.0
    %513 = vmatpush.msra.mxu0 0.0
    %514 = vmatpush.msra.mxu0 0.0
    %515 = vmatpush.msra.mxu0 0.0
    %516 = vmatpush.msra.mxu0 %v116
    %517 = vmatpush.msra.mxu0 %v81
    %518 = vmatmul.f32.gmra.mxu0 %v152
    %v519 = vpop.f32.mrf.mxu0
    %v520 = vadd.f32 %v143, %v519
    %521 = vmatmul.f32.gmra.mxu0 %v155
    %v522 = vpop.f32.mrf.mxu0
    %v523 = vadd.f32 %v148, %v522
    %524 = vdwg.mxu0
    %525 = vmatpush.msra.mxu0 0.0
    %526 = vmatpush.msra.mxu0 0.0
    %527 = vmatpush.msra.mxu0 0.0
    %528 = vmatpush.msra.mxu0 0.0
    %529 = vmatpush.msra.mxu0 0.0
    %530 = vmatpush.msra.mxu0 0.0
    %531 = vmatpush.msra.mxu0 0.0
    %532 = vmatpush.msra.mxu0 0.0
    %533 = vmatpush.msra.mxu0 0.0
    %534 = vmatpush.msra.mxu0 0.0
    %535 = vmatpush.msra.mxu0 0.0
    %536 = vmatpush.msra.mxu0 0.0
    %537 = vmatpush.msra.mxu0 0.0
    %538 = vmatpush.msra.mxu0 0.0
    %539 = vmatpush.msra.mxu0 %v117
    %540 = vmatpush.msra.mxu0 %v82
    %541 = vmatmul.f32.gmra.mxu0 %v152
    %v542 = vpop.f32.mrf.mxu0
    %v543 = vadd.f32 %v143, %v542
    %544 = vmatmul.f32.gmra.mxu0 %v155
    %v545 = vpop.f32.mrf.mxu0
    %v546 = vadd.f32 %v148, %v545
    %547 = vdwg.mxu0
    %548 = vmatpush.msra.mxu0 0.0
    %549 = vmatpush.msra.mxu0 0.0
    %550 = vmatpush.msra.mxu0 0.0
    %551 = vmatpush.msra.mxu0 0.0
    %552 = vmatpush.msra.mxu0 0.0
    %553 = vmatpush.msra.mxu0 0.0
    %554 = vmatpush.msra.mxu0 0.0
    %555 = vmatpush.msra.mxu0 0.0
    %556 = vmatpush.msra.mxu0 0.0
    %557 = vmatpush.msra.mxu0 0.0
    %558 = vmatpush.msra.mxu0 0.0
    %559 = vmatpush.msra.mxu0 0.0
    %560 = vmatpush.msra.mxu0 0.0
    %561 = vmatpush.msra.mxu0 0.0
    %562 = vmatpush.msra.mxu0 %v118
    %563 = vmatpush.msra.mxu0 %v83
    %564 = vmatmul.f32.gmra.mxu0 %v152
    %v565 = vpop.f32.mrf.mxu0
    %v566 = vadd.f32 %v143, %v565
    %567 = vmatmul.f32.gmra.mxu0 %v155
    %v568 = vpop.f32.mrf.mxu0
    %v569 = vadd.f32 %v148, %v568
    %570 = vdwg.mxu0
    %571 = vmatpush.msra.mxu0 0.0
    %572 = vmatpush.msra.mxu0 0.0
    %573 = vmatpush.msra.mxu0 0.0
    %574 = vmatpush.msra.mxu0 0.0
    %575 = vmatpush.msra.mxu0 0.0
    %576 = vmatpush.msra.mxu0 0.0
    %577 = vmatpush.msra.mxu0 0.0
    %578 = vmatpush.msra.mxu0 0.0
    %579 = vmatpush.msra.mxu0 0.0
    %580 = vmatpush.msra.mxu0 0.0
    %581 = vmatpush.msra.mxu0 0.0
    %582 = vmatpush.msra.mxu0 0.0
    %583 = vmatpush.msra.mxu0 0.0
    %584 = vmatpush.msra.mxu0 0.0
    %585 = vmatpush.msra.mxu0 %v119
    %586 = vmatpush.msra.mxu0 %v84
    %587 = vmatmul.f32.gmra.mxu0 %v152
    %v588 = vpop.f32.mrf.mxu0
    %v589 = vadd.f32 %v143, %v588
    %590 = vmatmul.f32.gmra.mxu0 %v155
    %v591 = vpop.f32.mrf.mxu0
    %v592 = vadd.f32 %v148, %v591
    %593 = vdwg.mxu0
    %594 = vmatpush.msra.mxu0 0.0
    %595 = vmatpush.msra.mxu0 0.0
    %596 = vmatpush.msra.mxu0 0.0
    %597 = vmatpush.msra.mxu0 0.0
    %598 = vmatpush.msra.mxu0 0.0
    %599 = vmatpush.msra.mxu0 0.0
    %600 = vmatpush.msra.mxu0 0.0
    %601 = vmatpush.msra.mxu0 0.0
    %602 = vmatpush.msra.mxu0 0.0
    %603 = vmatpush.msra.mxu0 0.0
    %604 = vmatpush.msra.mxu0 0.0
    %605 = vmatpush.msra.mxu0 0.0
    %606 = vmatpush.msra.mxu0 0.0
    %607 = vmatpush.msra.mxu0 0.0
    %608 = vmatpush.msra.mxu0 %v120
    %609 = vmatpush.msra.mxu0 %v85
    %610 = vmatmul.f32.gmra.mxu0 %v152
    %v611 = vpop.f32.mrf.mxu0
    %v612 = vadd.f32 %v143, %v611
    %613 = vmatmul.f32.gmra.mxu0 %v155
    %v614 = vpop.f32.mrf.mxu0
    %v615 = vadd.f32 %v148, %v614
    %616 = vdwg.mxu0
    %617 = vmatpush.msra.mxu0 0.0
    %618 = vmatpush.msra.mxu0 0.0
    %619 = vmatpush.msra.mxu0 0.0
    %620 = vmatpush.msra.mxu0 0.0
    %621 = vmatpush.msra.mxu0 0.0
    %622 = vmatpush.msra.mxu0 0.0
    %623 = vmatpush.msra.mxu0 0.0
    %624 = vmatpush.msra.mxu0 0.0
    %625 = vmatpush.msra.mxu0 0.0
    %626 = vmatpush.msra.mxu0 0.0
    %627 = vmatpush.msra.mxu0 0.0
    %628 = vmatpush.msra.mxu0 0.0
    %629 = vmatpush.msra.mxu0 0.0
    %630 = vmatpush.msra.mxu0 0.0
    %631 = vmatpush.msra.mxu0 %v121
    %632 = vmatpush.msra.mxu0 %v86
    %633 = vmatmul.f32.gmra.mxu0 %v152
    %v634 = vpop.f32.mrf.mxu0
    %v635 = vadd.f32 %v143, %v634
    %636 = vmatmul.f32.gmra.mxu0 %v155
    %v637 = vpop.f32.mrf.mxu0
    %v638 = vadd.f32 %v148, %v637
    %639 = vdwg.mxu0
    %640 = vmatpush.msra.mxu0 0.0
    %641 = vmatpush.msra.mxu0 0.0
    %642 = vmatpush.msra.mxu0 0.0
    %643 = vmatpush.msra.mxu0 0.0
    %644 = vmatpush.msra.mxu0 0.0
    %645 = vmatpush.msra.mxu0 0.0
    %646 = vmatpush.msra.mxu0 0.0
    %647 = vmatpush.msra.mxu0 0.0
    %648 = vmatpush.msra.mxu0 0.0
    %649 = vmatpush.msra.mxu0 0.0
    %650 = vmatpush.msra.mxu0 0.0
    %651 = vmatpush.msra.mxu0 0.0
    %652 = vmatpush.msra.mxu0 0.0
    %653 = vmatpush.msra.mxu0 0.0
    %654 = vmatpush.msra.mxu0 %v122
    %655 = vmatpush.msra.mxu0 %v87
    %656 = vmatmul.f32.gmra.mxu0 %v152
    %v657 = vpop.f32.mrf.mxu0
    %v658 = vadd.f32 %v143, %v657
    %659 = vmatmul.f32.gmra.mxu0 %v155
    %v660 = vpop.f32.mrf.mxu0
    %v661 = vadd.f32 %v148, %v660
    %662 = vdwg.mxu0
    %663 = vmatpush.msra.mxu0 0.0
    %664 = vmatpush.msra.mxu0 0.0
    %665 = vmatpush.msra.mxu0 0.0
    %666 = vmatpush.msra.mxu0 0.0
    %667 = vmatpush.msra.mxu0 0.0
    %668 = vmatpush.msra.mxu0 0.0
    %669 = vmatpush.msra.mxu0 0.0
    %670 = vmatpush.msra.mxu0 0.0
    %671 = vmatpush.msra.mxu0 0.0
    %672 = vmatpush.msra.mxu0 0.0
    %673 = vmatpush.msra.mxu0 0.0
    %674 = vmatpush.msra.mxu0 0.0
    %675 = vmatpush.msra.mxu0 0.0
    %676 = vmatpush.msra.mxu0 0.0
    %677 = vmatpush.msra.mxu0 %v123
    %678 = vmatpush.msra.mxu0 %v88
    %679 = vmatmul.f32.gmra.mxu0 %v152
    %v680 = vpop.f32.mrf.mxu0
    %v681 = vadd.f32 %v143, %v680
    %682 = vmatmul.f32.gmra.mxu0 %v155
    %v683 = vpop.f32.mrf.mxu0
    %v684 = vadd.f32 %v148, %v683
    %685 = vdwg.mxu0
    %686 = vmatpush.msra.mxu0 0.0
    %687 = vmatpush.msra.mxu0 0.0
    %688 = vmatpush.msra.mxu0 0.0
    %689 = vmatpush.msra.mxu0 0.0
    %690 = vmatpush.msra.mxu0 0.0
    %691 = vmatpush.msra.mxu0 0.0
    %692 = vmatpush.msra.mxu0 0.0
    %693 = vmatpush.msra.mxu0 0.0
    %694 = vmatpush.msra.mxu0 0.0
    %695 = vmatpush.msra.mxu0 0.0
    %696 = vmatpush.msra.mxu0 0.0
    %697 = vmatpush.msra.mxu0 0.0
    %698 = vmatpush.msra.mxu0 0.0
    %699 = vmatpush.msra.mxu0 0.0
    %700 = vmatpush.msra.mxu0 %v124
    %701 = vmatpush.msra.mxu0 %v89
    %702 = vmatmul.f32.gmra.mxu0 %v152
    %v703 = vpop.f32.mrf.mxu0
    %v704 = vadd.f32 %v143, %v703
    %705 = vmatmul.f32.gmra.mxu0 %v155
    %v706 = vpop.f32.mrf.mxu0
    %v707 = vadd.f32 %v148, %v706
    %708 = vdwg.mxu0
    %709 = vmatpush.msra.mxu0 0.0
    %710 = vmatpush.msra.mxu0 0.0
    %711 = vmatpush.msra.mxu0 0.0
    %712 = vmatpush.msra.mxu0 0.0
    %713 = vmatpush.msra.mxu0 0.0
    %714 = vmatpush.msra.mxu0 0.0
    %715 = vmatpush.msra.mxu0 0.0
    %716 = vmatpush.msra.mxu0 0.0
    %717 = vmatpush.msra.mxu0 0.0
    %718 = vmatpush.msra.mxu0 0.0
    %719 = vmatpush.msra.mxu0 0.0
    %720 = vmatpush.msra.mxu0 0.0
    %721 = vmatpush.msra.mxu0 0.0
    %722 = vmatpush.msra.mxu0 0.0
    %723 = vmatpush.msra.mxu0 %v125
    %724 = vmatpush.msra.mxu0 %v90
    %725 = vmatmul.f32.gmra.mxu0 %v152
    %v726 = vpop.f32.mrf.mxu0
    %v727 = vadd.f32 %v143, %v726
    %728 = vmatmul.f32.gmra.mxu0 %v155
    %v729 = vpop.f32.mrf.mxu0
    %v730 = vadd.f32 %v148, %v729
    %731 = vdwg.mxu0
    %732 = vmatpush.msra.mxu0 0.0
    %733 = vmatpush.msra.mxu0 0.0
    %734 = vmatpush.msra.mxu0 0.0
    %735 = vmatpush.msra.mxu0 0.0
    %736 = vmatpush.msra.mxu0 0.0
    %737 = vmatpush.msra.mxu0 0.0
    %738 = vmatpush.msra.mxu0 0.0
    %739 = vmatpush.msra.mxu0 0.0
    %740 = vmatpush.msra.mxu0 0.0
    %741 = vmatpush.msra.mxu0 0.0
    %742 = vmatpush.msra.mxu0 0.0
    %743 = vmatpush.msra.mxu0 0.0
    %744 = vmatpush.msra.mxu0 0.0
    %745 = vmatpush.msra.mxu0 0.0
    %746 = vmatpush.msra.mxu0 %v126
    %747 = vmatpush.msra.mxu0 %v91
    %748 = vmatmul.f32.gmra.mxu0 %v152
    %v749 = vpop.f32.mrf.mxu0
    %v750 = vadd.f32 %v143, %v749
    %751 = vmatmul.f32.gmra.mxu0 %v155
    %v752 = vpop.f32.mrf.mxu0
    %v753 = vadd.f32 %v148, %v752
    %754 = vdwg.mxu0
    %755 = vmatpush.msra.mxu0 0.0
    %756 = vmatpush.msra.mxu0 0.0
    %757 = vmatpush.msra.mxu0 0.0
    %758 = vmatpush.msra.mxu0 0.0
    %759 = vmatpush.msra.mxu0 0.0
    %760 = vmatpush.msra.mxu0 0.0
    %761 = vmatpush.msra.mxu0 0.0
    %762 = vmatpush.msra.mxu0 0.0
    %763 = vmatpush.msra.mxu0 0.0
    %764 = vmatpush.msra.mxu0 0.0
    %765 = vmatpush.msra.mxu0 0.0
    %766 = vmatpush.msra.mxu0 0.0
    %767 = vmatpush.msra.mxu0 0.0
    %768 = vmatpush.msra.mxu0 0.0
    %769 = vmatpush.msra.mxu0 %v127
    %770 = vmatpush.msra.mxu0 %v92
    %771 = vmatmul.f32.gmra.mxu0 %v152
    %v772 = vpop.f32.mrf.mxu0
    %v773 = vadd.f32 %v143, %v772
    %774 = vmatmul.f32.gmra.mxu0 %v155
    %v775 = vpop.f32.mrf.mxu0
    %v776 = vadd.f32 %v148, %v775
    %777 = vdwg.mxu0
    %778 = vmatpush.msra.mxu0 0.0
    %779 = vmatpush.msra.mxu0 0.0
    %780 = vmatpush.msra.mxu0 0.0
    %781 = vmatpush.msra.mxu0 0.0
    %782 = vmatpush.msra.mxu0 0.0
    %783 = vmatpush.msra.mxu0 0.0
    %784 = vmatpush.msra.mxu0 0.0
    %785 = vmatpush.msra.mxu0 0.0
    %786 = vmatpush.msra.mxu0 0.0
    %787 = vmatpush.msra.mxu0 0.0
    %788 = vmatpush.msra.mxu0 0.0
    %789 = vmatpush.msra.mxu0 0.0
    %790 = vmatpush.msra.mxu0 0.0
    %791 = vmatpush.msra.mxu0 0.0
    %792 = vmatpush.msra.mxu0 %v128
    %793 = vmatpush.msra.mxu0 %v93
    %794 = vmatmul.f32.gmra.mxu0 %v152
    %v795 = vpop.f32.mrf.mxu0
    %v796 = vadd.f32 %v143, %v795
    %797 = vmatmul.f32.gmra.mxu0 %v155
    %v798 = vpop.f32.mrf.mxu0
    %v799 = vadd.f32 %v148, %v798
    %800 = vdwg.mxu0
    %801 = vmatpush.msra.mxu0 0.0
    %802 = vmatpush.msra.mxu0 0.0
    %803 = vmatpush.msra.mxu0 0.0
    %804 = vmatpush.msra.mxu0 0.0
    %805 = vmatpush.msra.mxu0 0.0
    %806 = vmatpush.msra.mxu0 0.0
    %807 = vmatpush.msra.mxu0 0.0
    %808 = vmatpush.msra.mxu0 0.0
    %809 = vmatpush.msra.mxu0 0.0
    %810 = vmatpush.msra.mxu0 0.0
    %811 = vmatpush.msra.mxu0 0.0
    %812 = vmatpush.msra.mxu0 0.0
    %813 = vmatpush.msra.mxu0 0.0
    %814 = vmatpush.msra.mxu0 0.0
    %815 = vmatpush.msra.mxu0 %v129
    %816 = vmatpush.msra.mxu0 %v94
    %817 = vmatmul.f32.gmra.mxu0 %v152
    %v818 = vpop.f32.mrf.mxu0
    %v819 = vadd.f32 %v143, %v818
    %820 = vmatmul.f32.gmra.mxu0 %v155
    %v821 = vpop.f32.mrf.mxu0
    %v822 = vadd.f32 %v148, %v821
    %823 = vdwg.mxu0
    %824 = vmatpush.msra.mxu0 0.0
    %825 = vmatpush.msra.mxu0 0.0
    %826 = vmatpush.msra.mxu0 0.0
    %827 = vmatpush.msra.mxu0 0.0
    %828 = vmatpush.msra.mxu0 0.0
    %829 = vmatpush.msra.mxu0 0.0
    %830 = vmatpush.msra.mxu0 0.0
    %831 = vmatpush.msra.mxu0 0.0
    %832 = vmatpush.msra.mxu0 0.0
    %833 = vmatpush.msra.mxu0 0.0
    %834 = vmatpush.msra.mxu0 0.0
    %835 = vmatpush.msra.mxu0 0.0
    %836 = vmatpush.msra.mxu0 0.0
    %837 = vmatpush.msra.mxu0 0.0
    %838 = vmatpush.msra.mxu0 %v130
    %839 = vmatpush.msra.mxu0 %v95
    %840 = vmatmul.f32.gmra.mxu0 %v152
    %v841 = vpop.f32.mrf.mxu0
    %v842 = vadd.f32 %v143, %v841
    %843 = vmatmul.f32.gmra.mxu0 %v155
    %v844 = vpop.f32.mrf.mxu0
    %v845 = vadd.f32 %v148, %v844
    %846 = vdwg.mxu0
    %847 = vmatpush.msra.mxu0 0.0
    %848 = vmatpush.msra.mxu0 0.0
    %849 = vmatpush.msra.mxu0 0.0
    %850 = vmatpush.msra.mxu0 0.0
    %851 = vmatpush.msra.mxu0 0.0
    %852 = vmatpush.msra.mxu0 0.0
    %853 = vmatpush.msra.mxu0 0.0
    %854 = vmatpush.msra.mxu0 0.0
    %855 = vmatpush.msra.mxu0 0.0
    %856 = vmatpush.msra.mxu0 0.0
    %857 = vmatpush.msra.mxu0 0.0
    %858 = vmatpush.msra.mxu0 0.0
    %859 = vmatpush.msra.mxu0 0.0
    %860 = vmatpush.msra.mxu0 0.0
    %861 = vmatpush.msra.mxu0 %v131
    %862 = vmatpush.msra.mxu0 %v96
    %863 = vmatmul.f32.gmra.mxu0 %v152
    %v864 = vpop.f32.mrf.mxu0
    %v865 = vadd.f32 %v143, %v864
    %866 = vmatmul.f32.gmra.mxu0 %v155
    %v867 = vpop.f32.mrf.mxu0
    %v868 = vadd.f32 %v148, %v867
    %869 = vdwg.mxu0
    %870 = vmatpush.msra.mxu0 0.0
    %871 = vmatpush.msra.mxu0 0.0
    %872 = vmatpush.msra.mxu0 0.0
    %873 = vmatpush.msra.mxu0 0.0
    %874 = vmatpush.msra.mxu0 0.0
    %875 = vmatpush.msra.mxu0 0.0
    %876 = vmatpush.msra.mxu0 0.0
    %877 = vmatpush.msra.mxu0 0.0
    %878 = vmatpush.msra.mxu0 0.0
    %879 = vmatpush.msra.mxu0 0.0
    %880 = vmatpush.msra.mxu0 0.0
    %881 = vmatpush.msra.mxu0 0.0
    %882 = vmatpush.msra.mxu0 0.0
    %883 = vmatpush.msra.mxu0 0.0
    %884 = vmatpush.msra.mxu0 %v132
    %885 = vmatpush.msra.mxu0 %v97
    %886 = vmatmul.f32.gmra.mxu0 %v152
    %v887 = vpop.f32.mrf.mxu0
    %v888 = vadd.f32 %v143, %v887
    %889 = vmatmul.f32.gmra.mxu0 %v155
    %v890 = vpop.f32.mrf.mxu0
    %v891 = vadd.f32 %v148, %v890
    %892 = vdwg.mxu0
    %893 = vmatpush.msra.mxu0 0.0
    %894 = vmatpush.msra.mxu0 0.0
    %895 = vmatpush.msra.mxu0 0.0
    %896 = vmatpush.msra.mxu0 0.0
    %897 = vmatpush.msra.mxu0 0.0
    %898 = vmatpush.msra.mxu0 0.0
    %899 = vmatpush.msra.mxu0 0.0
    %900 = vmatpush.msra.mxu0 0.0
    %901 = vmatpush.msra.mxu0 0.0
    %902 = vmatpush.msra.mxu0 0.0
    %903 = vmatpush.msra.mxu0 0.0
    %904 = vmatpush.msra.mxu0 0.0
    %905 = vmatpush.msra.mxu0 0.0
    %906 = vmatpush.msra.mxu0 0.0
    %907 = vmatpush.msra.mxu0 %v133
    %908 = vmatpush.msra.mxu0 %v98
    %909 = vmatmul.f32.gmra.mxu0 %v152
    %v910 = vpop.f32.mrf.mxu0
    %v911 = vadd.f32 %v143, %v910
    %912 = vmatmul.f32.gmra.mxu0 %v155
    %v913 = vpop.f32.mrf.mxu0
    %v914 = vadd.f32 %v148, %v913
    %915 = vdwg.mxu0
    %916 = vmatpush.msra.mxu0 0.0
    %917 = vmatpush.msra.mxu0 0.0
    %918 = vmatpush.msra.mxu0 0.0
    %919 = vmatpush.msra.mxu0 0.0
    %920 = vmatpush.msra.mxu0 0.0
    %921 = vmatpush.msra.mxu0 0.0
    %922 = vmatpush.msra.mxu0 0.0
    %923 = vmatpush.msra.mxu0 0.0
    %924 = vmatpush.msra.mxu0 0.0
    %925 = vmatpush.msra.mxu0 0.0
    %926 = vmatpush.msra.mxu0 0.0
    %927 = vmatpush.msra.mxu0 0.0
    %928 = vmatpush.msra.mxu0 0.0
    %929 = vmatpush.msra.mxu0 0.0
    %930 = vmatpush.msra.mxu0 %v134
    %931 = vmatpush.msra.mxu0 %v99
    %932 = vmatmul.f32.gmra.mxu0 %v152
    %v933 = vpop.f32.mrf.mxu0
    %v934 = vadd.f32 %v143, %v933
    %935 = vmatmul.f32.gmra.mxu0 %v155
    %v936 = vpop.f32.mrf.mxu0
    %v937 = vadd.f32 %v148, %v936
    %938 = vdwg.mxu0
    %939 = vmatpush.msra.mxu0 0.0
    %940 = vmatpush.msra.mxu0 0.0
    %941 = vmatpush.msra.mxu0 0.0
    %942 = vmatpush.msra.mxu0 0.0
    %943 = vmatpush.msra.mxu0 0.0
    %944 = vmatpush.msra.mxu0 0.0
    %945 = vmatpush.msra.mxu0 0.0
    %946 = vmatpush.msra.mxu0 0.0
    %947 = vmatpush.msra.mxu0 0.0
    %948 = vmatpush.msra.mxu0 0.0
    %949 = vmatpush.msra.mxu0 0.0
    %950 = vmatpush.msra.mxu0 0.0
    %951 = vmatpush.msra.mxu0 0.0
    %952 = vmatpush.msra.mxu0 0.0
    %953 = vmatpush.msra.mxu0 %v135
    %954 = vmatpush.msra.mxu0 %v100
    %955 = vmatmul.f32.gmra.mxu0 %v152
    %v956 = vpop.f32.mrf.mxu0
    %v957 = vadd.f32 %v143, %v956
    %958 = vmatmul.f32.gmra.mxu0 %v155
    %v959 = vpop.f32.mrf.mxu0
    %v960 = vadd.f32 %v148, %v959
    %961 = vdwg.mxu0
    %vm962 = vcmp.gt.f32.partialorder %v175, 0.0
    %vm963 = vcmp.gt.f32.partialorder %v198, 0.0
    %vm964 = vcmp.gt.f32.partialorder %v221, 0.0
    %vm965 = vcmp.gt.f32.partialorder %v244, 0.0
    %vm966 = vcmp.gt.f32.partialorder %v267, 0.0
    %vm967 = vcmp.gt.f32.partialorder %v290, 0.0
    %vm968 = vcmp.gt.f32.partialorder %v313, 0.0
    %vm969 = vcmp.gt.f32.partialorder %v336, 0.0
    %vm970 = vcmp.gt.f32.partialorder %v359, 0.0
    %vm971 = vcmp.gt.f32.partialorder %v382, 0.0
    %vm972 = vcmp.gt.f32.partialorder %v405, 0.0
    %vm973 = vcmp.gt.f32.partialorder %v428, 0.0
    %vm974 = vcmp.gt.f32.partialorder %v451, 0.0
    %vm975 = vcmp.gt.f32.partialorder %v474, 0.0
    %vm976 = vcmp.gt.f32.partialorder %v497, 0.0
    %vm977 = vcmp.gt.f32.partialorder %v520, 0.0
    %vm978 = vcmp.gt.f32.partialorder %v543, 0.0
    %vm979 = vcmp.gt.f32.partialorder %v566, 0.0
    %vm980 = vcmp.gt.f32.partialorder %v589, 0.0
    %vm981 = vcmp.gt.f32.partialorder %v612, 0.0
    %vm982 = vcmp.gt.f32.partialorder %v635, 0.0
    %vm983 = vcmp.gt.f32.partialorder %v658, 0.0
    %vm984 = vcmp.gt.f32.partialorder %v681, 0.0
    %vm985 = vcmp.gt.f32.partialorder %v704, 0.0
    %vm986 = vcmp.gt.f32.partialorder %v727, 0.0
    %vm987 = vcmp.gt.f32.partialorder %v750, 0.0
    %vm988 = vcmp.gt.f32.partialorder %v773, 0.0
    %vm989 = vcmp.gt.f32.partialorder %v796, 0.0
    %vm990 = vcmp.gt.f32.partialorder %v819, 0.0
    %vm991 = vcmp.gt.f32.partialorder %v842, 0.0
    %vm992 = vcmp.gt.f32.partialorder %v865, 0.0
    %vm993 = vcmp.gt.f32.partialorder %v888, 0.0
    %vm994 = vcmp.gt.f32.partialorder %v911, 0.0
    %vm995 = vcmp.gt.f32.partialorder %v934, 0.0
    %vm996 = vcmp.gt.f32.partialorder %v957, 0.0
    %vm997 = vcmp.gt.f32.partialorder %v178, 0.0
    %vm998 = vcmp.gt.f32.partialorder %v201, 0.0
    %vm999 = vcmp.gt.f32.partialorder %v224, 0.0
    %vm1000 = vcmp.gt.f32.partialorder %v247, 0.0
    %vm1001 = vcmp.gt.f32.partialorder %v270, 0.0
    %vm1002 = vcmp.gt.f32.partialorder %v293, 0.0
    %vm1003 = vcmp.gt.f32.partialorder %v316, 0.0
    %vm1004 = vcmp.gt.f32.partialorder %v339, 0.0
    %vm1005 = vcmp.gt.f32.partialorder %v362, 0.0
    %vm1006 = vcmp.gt.f32.partialorder %v385, 0.0
    %vm1007 = vcmp.gt.f32.partialorder %v408, 0.0
    %vm1008 = vcmp.gt.f32.partialorder %v431, 0.0
    %vm1009 = vcmp.gt.f32.partialorder %v454, 0.0
    %vm1010 = vcmp.gt.f32.partialorder %v477, 0.0
    %vm1011 = vcmp.gt.f32.partialorder %v500, 0.0
    %vm1012 = vcmp.gt.f32.partialorder %v523, 0.0
    %vm1013 = vcmp.gt.f32.partialorder %v546, 0.0
    %vm1014 = vcmp.gt.f32.partialorder %v569, 0.0
    %vm1015 = vcmp.gt.f32.partialorder %v592, 0.0
    %vm1016 = vcmp.gt.f32.partialorder %v615, 0.0
    %vm1017 = vcmp.gt.f32.partialorder %v638, 0.0
    %vm1018 = vcmp.gt.f32.partialorder %v661, 0.0
    %vm1019 = vcmp.gt.f32.partialorder %v684, 0.0
    %vm1020 = vcmp.gt.f32.partialorder %v707, 0.0
    %vm1021 = vcmp.gt.f32.partialorder %v730, 0.0
    %vm1022 = vcmp.gt.f32.partialorder %v753, 0.0
    %vm1023 = vcmp.gt.f32.partialorder %v776, 0.0
    %vm1024 = vcmp.gt.f32.partialorder %v799, 0.0
    %vm1025 = vcmp.gt.f32.partialorder %v822, 0.0
    %vm1026 = vcmp.gt.f32.partialorder %v845, 0.0
    %vm1027 = vcmp.gt.f32.partialorder %v868, 0.0
    %vm1028 = vcmp.gt.f32.partialorder %v891, 0.0
    %vm1029 = vcmp.gt.f32.partialorder %v914, 0.0
    %vm1030 = vcmp.gt.f32.partialorder %v937, 0.0
    %vm1031 = vcmp.gt.f32.partialorder %v960, 0.0
    %v1032 = vmin.f32 %v175, 0.0
    %v1033 = vmin.f32 %v198, 0.0
    %v1034 = vmin.f32 %v221, 0.0
    %v1035 = vmin.f32 %v244, 0.0
    %v1036 = vmin.f32 %v267, 0.0
    %v1037 = vmin.f32 %v290, 0.0
    %v1038 = vmin.f32 %v313, 0.0
    %v1039 = vmin.f32 %v336, 0.0
    %v1040 = vmin.f32 %v359, 0.0
    %v1041 = vmin.f32 %v382, 0.0
    %v1042 = vmin.f32 %v405, 0.0
    %v1043 = vmin.f32 %v428, 0.0
    %v1044 = vmin.f32 %v451, 0.0
    %v1045 = vmin.f32 %v474, 0.0
    %v1046 = vmin.f32 %v497, 0.0
    %v1047 = vmin.f32 %v520, 0.0
    %v1048 = vmin.f32 %v543, 0.0
    %v1049 = vmin.f32 %v566, 0.0
    %v1050 = vmin.f32 %v589, 0.0
    %v1051 = vmin.f32 %v612, 0.0
    %v1052 = vmin.f32 %v635, 0.0
    %v1053 = vmin.f32 %v658, 0.0
    %v1054 = vmin.f32 %v681, 0.0
    %v1055 = vmin.f32 %v704, 0.0
    %v1056 = vmin.f32 %v727, 0.0
    %v1057 = vmin.f32 %v750, 0.0
    %v1058 = vmin.f32 %v773, 0.0
    %v1059 = vmin.f32 %v796, 0.0
    %v1060 = vmin.f32 %v819, 0.0
    %v1061 = vmin.f32 %v842, 0.0
    %v1062 = vmin.f32 %v865, 0.0
    %v1063 = vmin.f32 %v888, 0.0
    %v1064 = vmin.f32 %v911, 0.0
    %v1065 = vmin.f32 %v934, 0.0
    %v1066 = vmin.f32 %v957, 0.0
    %v1067 = vmin.f32 %v178, 0.0
    %v1068 = vmin.f32 %v201, 0.0
    %v1069 = vmin.f32 %v224, 0.0
    %v1070 = vmin.f32 %v247, 0.0
    %v1071 = vmin.f32 %v270, 0.0
    %v1072 = vmin.f32 %v293, 0.0
    %v1073 = vmin.f32 %v316, 0.0
    %v1074 = vmin.f32 %v339, 0.0
    %v1075 = vmin.f32 %v362, 0.0
    %v1076 = vmin.f32 %v385, 0.0
    %v1077 = vmin.f32 %v408, 0.0
    %v1078 = vmin.f32 %v431, 0.0
    %v1079 = vmin.f32 %v454, 0.0
    %v1080 = vmin.f32 %v477, 0.0
    %v1081 = vmin.f32 %v500, 0.0
    %v1082 = vmin.f32 %v523, 0.0
    %v1083 = vmin.f32 %v546, 0.0
    %v1084 = vmin.f32 %v569, 0.0
    %v1085 = vmin.f32 %v592, 0.0
    %v1086 = vmin.f32 %v615, 0.0
    %v1087 = vmin.f32 %v638, 0.0
    %v1088 = vmin.f32 %v661, 0.0
    %v1089 = vmin.f32 %v684, 0.0
    %v1090 = vmin.f32 %v707, 0.0
    %v1091 = vmin.f32 %v730, 0.0
    %v1092 = vmin.f32 %v753, 0.0
    %v1093 = vmin.f32 %v776, 0.0
    %v1094 = vmin.f32 %v799, 0.0
    %v1095 = vmin.f32 %v822, 0.0
    %v1096 = vmin.f32 %v845, 0.0
    %v1097 = vmin.f32 %v868, 0.0
    %v1098 = vmin.f32 %v891, 0.0
    %v1099 = vmin.f32 %v914, 0.0
    %v1100 = vmin.f32 %v937, 0.0
    %v1101 = vmin.f32 %v960, 0.0
    %v1102 = vmul.f32 %v1032, 1.442695
    %v1103 = vpow.pop %v1102
    %v1104 = vmul.f32 %v1033, 1.442695
    %v1105 = vpow.pop %v1104
    %v1106 = vmul.f32 %v1034, 1.442695
    %v1107 = vpow.pop %v1106
    %v1108 = vmul.f32 %v1035, 1.442695
    %v1109 = vpow.pop %v1108
    %v1110 = vmul.f32 %v1036, 1.442695
    %v1111 = vpow.pop %v1110
    %v1112 = vmul.f32 %v1037, 1.442695
    %v1113 = vpow.pop %v1112
    %v1114 = vmul.f32 %v1038, 1.442695
    %v1115 = vpow.pop %v1114
    %v1116 = vmul.f32 %v1039, 1.442695
    %v1117 = vpow.pop %v1116
    %v1118 = vmul.f32 %v1040, 1.442695
    %v1119 = vpow.pop %v1118
    %v1120 = vmul.f32 %v1041, 1.442695
    %v1121 = vpow.pop %v1120
    %v1122 = vmul.f32 %v1042, 1.442695
    %v1123 = vpow.pop %v1122
    %v1124 = vmul.f32 %v1043, 1.442695
    %v1125 = vpow.pop %v1124
    %v1126 = vmul.f32 %v1044, 1.442695
    %v1127 = vpow.pop %v1126
    %v1128 = vmul.f32 %v1045, 1.442695
    %v1129 = vpow.pop %v1128
    %v1130 = vmul.f32 %v1046, 1.442695
    %v1131 = vpow.pop %v1130
    %v1132 = vmul.f32 %v1047, 1.442695
    %v1133 = vpow.pop %v1132
    %v1134 = vmul.f32 %v1048, 1.442695
    %v1135 = vpow.pop %v1134
    %v1136 = vmul.f32 %v1049, 1.442695
    %v1137 = vpow.pop %v1136
    %v1138 = vmul.f32 %v1050, 1.442695
    %v1139 = vpow.pop %v1138
    %v1140 = vmul.f32 %v1051, 1.442695
    %v1141 = vpow.pop %v1140
    %v1142 = vmul.f32 %v1052, 1.442695
    %v1143 = vpow.pop %v1142
    %v1144 = vmul.f32 %v1053, 1.442695
    %v1145 = vpow.pop %v1144
    %v1146 = vmul.f32 %v1054, 1.442695
    %v1147 = vpow.pop %v1146
    %v1148 = vmul.f32 %v1055, 1.442695
    %v1149 = vpow.pop %v1148
    %v1150 = vmul.f32 %v1056, 1.442695
    %v1151 = vpow.pop %v1150
    %v1152 = vmul.f32 %v1057, 1.442695
    %v1153 = vpow.pop %v1152
    %v1154 = vmul.f32 %v1058, 1.442695
    %v1155 = vpow.pop %v1154
    %v1156 = vmul.f32 %v1059, 1.442695
    %v1157 = vpow.pop %v1156
    %v1158 = vmul.f32 %v1060, 1.442695
    %v1159 = vpow.pop %v1158
    %v1160 = vmul.f32 %v1061, 1.442695
    %v1161 = vpow.pop %v1160
    %v1162 = vmul.f32 %v1062, 1.442695
    %v1163 = vpow.pop %v1162
    %v1164 = vmul.f32 %v1063, 1.442695
    %v1165 = vpow.pop %v1164
    %v1166 = vmul.f32 %v1064, 1.442695
    %v1167 = vpow.pop %v1166
    %v1168 = vmul.f32 %v1065, 1.442695
    %v1169 = vpow.pop %v1168
    %v1170 = vmul.f32 %v1066, 1.442695
    %v1171 = vpow.pop %v1170
    %v1172 = vmul.f32 %v1067, 1.442695
    %v1173 = vpow.pop %v1172
    %v1174 = vmul.f32 %v1068, 1.442695
    %v1175 = vpow.pop %v1174
    %v1176 = vmul.f32 %v1069, 1.442695
    %v1177 = vpow.pop %v1176
    %v1178 = vmul.f32 %v1070, 1.442695
    %v1179 = vpow.pop %v1178
    %v1180 = vmul.f32 %v1071, 1.442695
    %v1181 = vpow.pop %v1180
    %v1182 = vmul.f32 %v1072, 1.442695
    %v1183 = vpow.pop %v1182
    %v1184 = vmul.f32 %v1073, 1.442695
    %v1185 = vpow.pop %v1184
    %v1186 = vmul.f32 %v1074, 1.442695
    %v1187 = vpow.pop %v1186
    %v1188 = vmul.f32 %v1075, 1.442695
    %v1189 = vpow.pop %v1188
    %v1190 = vmul.f32 %v1076, 1.442695
    %v1191 = vpow.pop %v1190
    %v1192 = vmul.f32 %v1077, 1.442695
    %v1193 = vpow.pop %v1192
    %v1194 = vmul.f32 %v1078, 1.442695
    %v1195 = vpow.pop %v1194
    %v1196 = vmul.f32 %v1079, 1.442695
    %v1197 = vpow.pop %v1196
    %v1198 = vmul.f32 %v1080, 1.442695
    %v1199 = vpow.pop %v1198
    %v1200 = vmul.f32 %v1081, 1.442695
    %v1201 = vpow.pop %v1200
    %v1202 = vmul.f32 %v1082, 1.442695
    %v1203 = vpow.pop %v1202
    %v1204 = vmul.f32 %v1083, 1.442695
    %v1205 = vpow.pop %v1204
    %v1206 = vmul.f32 %v1084, 1.442695
    %v1207 = vpow.pop %v1206
    %v1208 = vmul.f32 %v1085, 1.442695
    %v1209 = vpow.pop %v1208
    %v1210 = vmul.f32 %v1086, 1.442695
    %v1211 = vpow.pop %v1210
    %v1212 = vmul.f32 %v1087, 1.442695
    %v1213 = vpow.pop %v1212
    %v1214 = vmul.f32 %v1088, 1.442695
    %v1215 = vpow.pop %v1214
    %v1216 = vmul.f32 %v1089, 1.442695
    %v1217 = vpow.pop %v1216
    %v1218 = vmul.f32 %v1090, 1.442695
    %v1219 = vpow.pop %v1218
    %v1220 = vmul.f32 %v1091, 1.442695
    %v1221 = vpow.pop %v1220
    %v1222 = vmul.f32 %v1092, 1.442695
    %v1223 = vpow.pop %v1222
    %v1224 = vmul.f32 %v1093, 1.442695
    %v1225 = vpow.pop %v1224
    %v1226 = vmul.f32 %v1094, 1.442695
    %v1227 = vpow.pop %v1226
    %v1228 = vmul.f32 %v1095, 1.442695
    %v1229 = vpow.pop %v1228
    %v1230 = vmul.f32 %v1096, 1.442695
    %v1231 = vpow.pop %v1230
    %v1232 = vmul.f32 %v1097, 1.442695
    %v1233 = vpow.pop %v1232
    %v1234 = vmul.f32 %v1098, 1.442695
    %v1235 = vpow.pop %v1234
    %v1236 = vmul.f32 %v1099, 1.442695
    %v1237 = vpow.pop %v1236
    %v1238 = vmul.f32 %v1100, 1.442695
    %v1239 = vpow.pop %v1238
    %v1240 = vmul.f32 %v1101, 1.442695
    %v1241 = vpow.pop %v1240
    %v1242 = vsub.f32 %v1103, 1.0
    %v1243 = vsub.f32 %v1105, 1.0
    %v1244 = vsub.f32 %v1107, 1.0
    %v1245 = vsub.f32 %v1109, 1.0
    %v1246 = vsub.f32 %v1111, 1.0
    %v1247 = vsub.f32 %v1113, 1.0
    %v1248 = vsub.f32 %v1115, 1.0
    %v1249 = vsub.f32 %v1117, 1.0
    %v1250 = vsub.f32 %v1119, 1.0
    %v1251 = vsub.f32 %v1121, 1.0
    %v1252 = vsub.f32 %v1123, 1.0
    %v1253 = vsub.f32 %v1125, 1.0
    %v1254 = vsub.f32 %v1127, 1.0
    %v1255 = vsub.f32 %v1129, 1.0
    %v1256 = vsub.f32 %v1131, 1.0
    %v1257 = vsub.f32 %v1133, 1.0
    %v1258 = vsub.f32 %v1135, 1.0
    %v1259 = vsub.f32 %v1137, 1.0
    %v1260 = vsub.f32 %v1139, 1.0
    %v1261 = vsub.f32 %v1141, 1.0
    %v1262 = vsub.f32 %v1143, 1.0
    %v1263 = vsub.f32 %v1145, 1.0
    %v1264 = vsub.f32 %v1147, 1.0
    %v1265 = vsub.f32 %v1149, 1.0
    %v1266 = vsub.f32 %v1151, 1.0
    %v1267 = vsub.f32 %v1153, 1.0
    %v1268 = vsub.f32 %v1155, 1.0
    %v1269 = vsub.f32 %v1157, 1.0
    %v1270 = vsub.f32 %v1159, 1.0
    %v1271 = vsub.f32 %v1161, 1.0
    %v1272 = vsub.f32 %v1163, 1.0
    %v1273 = vsub.f32 %v1165, 1.0
    %v1274 = vsub.f32 %v1167, 1.0
    %v1275 = vsub.f32 %v1169, 1.0
    %v1276 = vsub.f32 %v1171, 1.0
    %v1277 = vsub.f32 %v1173, 1.0
    %v1278 = vsub.f32 %v1175, 1.0
    %v1279 = vsub.f32 %v1177, 1.0
    %v1280 = vsub.f32 %v1179, 1.0
    %v1281 = vsub.f32 %v1181, 1.0
    %v1282 = vsub.f32 %v1183, 1.0
    %v1283 = vsub.f32 %v1185, 1.0
    %v1284 = vsub.f32 %v1187, 1.0
    %v1285 = vsub.f32 %v1189, 1.0
    %v1286 = vsub.f32 %v1191, 1.0
    %v1287 = vsub.f32 %v1193, 1.0
    %v1288 = vsub.f32 %v1195, 1.0
    %v1289 = vsub.f32 %v1197, 1.0
    %v1290 = vsub.f32 %v1199, 1.0
    %v1291 = vsub.f32 %v1201, 1.0
    %v1292 = vsub.f32 %v1203, 1.0
    %v1293 = vsub.f32 %v1205, 1.0
    %v1294 = vsub.f32 %v1207, 1.0
    %v1295 = vsub.f32 %v1209, 1.0
    %v1296 = vsub.f32 %v1211, 1.0
    %v1297 = vsub.f32 %v1213, 1.0
    %v1298 = vsub.f32 %v1215, 1.0
    %v1299 = vsub.f32 %v1217, 1.0
    %v1300 = vsub.f32 %v1219, 1.0
    %v1301 = vsub.f32 %v1221, 1.0
    %v1302 = vsub.f32 %v1223, 1.0
    %v1303 = vsub.f32 %v1225, 1.0
    %v1304 = vsub.f32 %v1227, 1.0
    %v1305 = vsub.f32 %v1229, 1.0
    %v1306 = vsub.f32 %v1231, 1.0
    %v1307 = vsub.f32 %v1233, 1.0
    %v1308 = vsub.f32 %v1235, 1.0
    %v1309 = vsub.f32 %v1237, 1.0
    %v1310 = vsub.f32 %v1239, 1.0
    %v1311 = vsub.f32 %v1241, 1.0
    %v1312 = vsel %vm962, %v175, %v1242
    %v1313 = vsel %vm963, %v198, %v1243
    %v1314 = vsel %vm964, %v221, %v1244
    %v1315 = vsel %vm965, %v244, %v1245
    %v1316 = vsel %vm966, %v267, %v1246
    %v1317 = vsel %vm967, %v290, %v1247
    %v1318 = vsel %vm968, %v313, %v1248
    %v1319 = vsel %vm969, %v336, %v1249
    %v1320 = vsel %vm970, %v359, %v1250
    %v1321 = vsel %vm971, %v382, %v1251
    %v1322 = vsel %vm972, %v405, %v1252
    %v1323 = vsel %vm973, %v428, %v1253
    %v1324 = vsel %vm974, %v451, %v1254
    %v1325 = vsel %vm975, %v474, %v1255
    %v1326 = vsel %vm976, %v497, %v1256
    %v1327 = vsel %vm977, %v520, %v1257
    %v1328 = vsel %vm978, %v543, %v1258
    %v1329 = vsel %vm979, %v566, %v1259
    %v1330 = vsel %vm980, %v589, %v1260
    %v1331 = vsel %vm981, %v612, %v1261
    %v1332 = vsel %vm982, %v635, %v1262
    %v1333 = vsel %vm983, %v658, %v1263
    %v1334 = vsel %vm984, %v681, %v1264
    %v1335 = vsel %vm985, %v704, %v1265
    %v1336 = vsel %vm986, %v727, %v1266
    %v1337 = vsel %vm987, %v750, %v1267
    %v1338 = vsel %vm988, %v773, %v1268
    %v1339 = vsel %vm989, %v796, %v1269
    %v1340 = vsel %vm990, %v819, %v1270
    %v1341 = vsel %vm991, %v842, %v1271
    %v1342 = vsel %vm992, %v865, %v1272
    %v1343 = vsel %vm993, %v888, %v1273
    %v1344 = vsel %vm994, %v911, %v1274
    %v1345 = vsel %vm995, %v934, %v1275
    %v1346 = vsel %vm996, %v957, %v1276
    %v1347 = vsel %vm997, %v178, %v1277
    %v1348 = vsel %vm998, %v201, %v1278
    %v1349 = vsel %vm999, %v224, %v1279
    %v1350 = vsel %vm1000, %v247, %v1280
    %v1351 = vsel %vm1001, %v270, %v1281
    %v1352 = vsel %vm1002, %v293, %v1282
    %v1353 = vsel %vm1003, %v316, %v1283
    %v1354 = vsel %vm1004, %v339, %v1284
    %v1355 = vsel %vm1005, %v362, %v1285
    %v1356 = vsel %vm1006, %v385, %v1286
    %v1357 = vsel %vm1007, %v408, %v1287
    %v1358 = vsel %vm1008, %v431, %v1288
    %v1359 = vsel %vm1009, %v454, %v1289
    %v1360 = vsel %vm1010, %v477, %v1290
    %v1361 = vsel %vm1011, %v500, %v1291
    %v1362 = vsel %vm1012, %v523, %v1292
    %v1363 = vsel %vm1013, %v546, %v1293
    %v1364 = vsel %vm1014, %v569, %v1294
    %v1365 = vsel %vm1015, %v592, %v1295
    %v1366 = vsel %vm1016, %v615, %v1296
    %v1367 = vsel %vm1017, %v638, %v1297
    %v1368 = vsel %vm1018, %v661, %v1298
    %v1369 = vsel %vm1019, %v684, %v1299
    %v1370 = vsel %vm1020, %v707, %v1300
    %v1371 = vsel %vm1021, %v730, %v1301
    %v1372 = vsel %vm1022, %v753, %v1302
    %v1373 = vsel %vm1023, %v776, %v1303
    %v1374 = vsel %vm1024, %v799, %v1304
    %v1375 = vsel %vm1025, %v822, %v1305
    %v1376 = vsel %vm1026, %v845, %v1306
    %v1377 = vsel %vm1027, %v868, %v1307
    %v1378 = vsel %vm1028, %v891, %v1308
    %v1379 = vsel %vm1029, %v914, %v1309
    %v1380 = vsel %vm1030, %v937, %v1310
    %v1381 = vsel %vm1031, %v960, %v1311
    %v1382 = vmax.f32 %v1312, %v1313
    %v1383 = vmax.f32 %v1313, %v1314
    %v1384 = vmax.f32 %v1314, %v1315
    %v1385 = vmax.f32 %v1315, %v1316
    %v1386 = vmax.f32 %v1316, %v1317
    %v1387 = vmax.f32 %v1317, %v1318
    %v1388 = vmax.f32 %v1318, %v1319
    %v1389 = vmax.f32 %v1319, %v1320
    %v1390 = vmax.f32 %v1320, %v1321
    %v1391 = vmax.f32 %v1321, %v1322
    %v1392 = vmax.f32 %v1322, %v1323
    %v1393 = vmax.f32 %v1323, %v1324
    %v1394 = vmax.f32 %v1324, %v1325
    %v1395 = vmax.f32 %v1325, %v1326
    %v1396 = vmax.f32 %v1326, %v1327
    %v1397 = vmax.f32 %v1327, %v1328
    %v1398 = vmax.f32 %v1328, %v1329
    %v1399 = vmax.f32 %v1329, %v1330
    %v1400 = vmax.f32 %v1330, %v1331
    %v1401 = vmax.f32 %v1331, %v1332
    %v1402 = vmax.f32 %v1332, %v1333
    %v1403 = vmax.f32 %v1333, %v1334
    %v1404 = vmax.f32 %v1334, %v1335
    %v1405 = vmax.f32 %v1335, %v1336
    %v1406 = vmax.f32 %v1336, %v1337
    %v1407 = vmax.f32 %v1337, %v1338
    %v1408 = vmax.f32 %v1338, %v1339
    %v1409 = vmax.f32 %v1339, %v1340
    %v1410 = vmax.f32 %v1340, %v1341
    %v1411 = vmax.f32 %v1341, %v1342
    %v1412 = vmax.f32 %v1342, %v1343
    %v1413 = vmax.f32 %v1347, %v1348
    %v1414 = vmax.f32 %v1348, %v1349
    %v1415 = vmax.f32 %v1349, %v1350
    %v1416 = vmax.f32 %v1350, %v1351
    %v1417 = vmax.f32 %v1351, %v1352
    %v1418 = vmax.f32 %v1352, %v1353
    %v1419 = vmax.f32 %v1353, %v1354
    %v1420 = vmax.f32 %v1354, %v1355
    %v1421 = vmax.f32 %v1355, %v1356
    %v1422 = vmax.f32 %v1356, %v1357
    %v1423 = vmax.f32 %v1357, %v1358
    %v1424 = vmax.f32 %v1358, %v1359
    %v1425 = vmax.f32 %v1359, %v1360
    %v1426 = vmax.f32 %v1360, %v1361
    %v1427 = vmax.f32 %v1361, %v1362
    %v1428 = vmax.f32 %v1362, %v1363
    %v1429 = vmax.f32 %v1363, %v1364
    %v1430 = vmax.f32 %v1364, %v1365
    %v1431 = vmax.f32 %v1365, %v1366
    %v1432 = vmax.f32 %v1366, %v1367
    %v1433 = vmax.f32 %v1367, %v1368
    %v1434 = vmax.f32 %v1368, %v1369
    %v1435 = vmax.f32 %v1369, %v1370
    %v1436 = vmax.f32 %v1370, %v1371
    %v1437 = vmax.f32 %v1371, %v1372
    %v1438 = vmax.f32 %v1372, %v1373
    %v1439 = vmax.f32 %v1373, %v1374
    %v1440 = vmax.f32 %v1374, %v1375
    %v1441 = vmax.f32 %v1375, %v1376
    %v1442 = vmax.f32 %v1376, %v1377
    %v1443 = vmax.f32 %v1377, %v1378
    %v1444 = vmax.f32 %v1382, %v1314
    %v1445 = vmax.f32 %v1383, %v1315
    %v1446 = vmax.f32 %v1384, %v1316
    %v1447 = vmax.f32 %v1385, %v1317
    %v1448 = vmax.f32 %v1386, %v1318
    %v1449 = vmax.f32 %v1387, %v1319
    %v1450 = vmax.f32 %v1388, %v1320
    %v1451 = vmax.f32 %v1389, %v1321
    %v1452 = vmax.f32 %v1390, %v1322
    %v1453 = vmax.f32 %v1391, %v1323
    %v1454 = vmax.f32 %v1392, %v1324
    %v1455 = vmax.f32 %v1393, %v1325
    %v1456 = vmax.f32 %v1394, %v1326
    %v1457 = vmax.f32 %v1395, %v1327
    %v1458 = vmax.f32 %v1396, %v1328
    %v1459 = vmax.f32 %v1397, %v1329
    %v1460 = vmax.f32 %v1398, %v1330
    %v1461 = vmax.f32 %v1399, %v1331
    %v1462 = vmax.f32 %v1400, %v1332
    %v1463 = vmax.f32 %v1401, %v1333
    %v1464 = vmax.f32 %v1402, %v1334
    %v1465 = vmax.f32 %v1403, %v1335
    %v1466 = vmax.f32 %v1404, %v1336
    %v1467 = vmax.f32 %v1405, %v1337
    %v1468 = vmax.f32 %v1406, %v1338
    %v1469 = vmax.f32 %v1407, %v1339
    %v1470 = vmax.f32 %v1408, %v1340
    %v1471 = vmax.f32 %v1409, %v1341
    %v1472 = vmax.f32 %v1410, %v1342
    %v1473 = vmax.f32 %v1411, %v1343
    %v1474 = vmax.f32 %v1412, %v1344
    %v1475 = vmax.f32 %v1413, %v1349
    %v1476 = vmax.f32 %v1414, %v1350
    %v1477 = vmax.f32 %v1415, %v1351
    %v1478 = vmax.f32 %v1416, %v1352
    %v1479 = vmax.f32 %v1417, %v1353
    %v1480 = vmax.f32 %v1418, %v1354
    %v1481 = vmax.f32 %v1419, %v1355
    %v1482 = vmax.f32 %v1420, %v1356
    %v1483 = vmax.f32 %v1421, %v1357
    %v1484 = vmax.f32 %v1422, %v1358
    %v1485 = vmax.f32 %v1423, %v1359
    %v1486 = vmax.f32 %v1424, %v1360
    %v1487 = vmax.f32 %v1425, %v1361
    %v1488 = vmax.f32 %v1426, %v1362
    %v1489 = vmax.f32 %v1427, %v1363
    %v1490 = vmax.f32 %v1428, %v1364
    %v1491 = vmax.f32 %v1429, %v1365
    %v1492 = vmax.f32 %v1430, %v1366
    %v1493 = vmax.f32 %v1431, %v1367
    %v1494 = vmax.f32 %v1432, %v1368
    %v1495 = vmax.f32 %v1433, %v1369
    %v1496 = vmax.f32 %v1434, %v1370
    %v1497 = vmax.f32 %v1435, %v1371
    %v1498 = vmax.f32 %v1436, %v1372
    %v1499 = vmax.f32 %v1437, %v1373
    %v1500 = vmax.f32 %v1438, %v1374
    %v1501 = vmax.f32 %v1439, %v1375
    %v1502 = vmax.f32 %v1440, %v1376
    %v1503 = vmax.f32 %v1441, %v1377
    %v1504 = vmax.f32 %v1442, %v1378
    %v1505 = vmax.f32 %v1443, %v1379
    %v1506 = vmax.f32 %v1444, %v1315
    %v1507 = vmax.f32 %v1445, %v1316
    %v1508 = vmax.f32 %v1446, %v1317
    %v1509 = vmax.f32 %v1447, %v1318
    %v1510 = vmax.f32 %v1448, %v1319
    %v1511 = vmax.f32 %v1449, %v1320
    %v1512 = vmax.f32 %v1450, %v1321
    %v1513 = vmax.f32 %v1451, %v1322
    %v1514 = vmax.f32 %v1452, %v1323
    %v1515 = vmax.f32 %v1453, %v1324
    %v1516 = vmax.f32 %v1454, %v1325
    %v1517 = vmax.f32 %v1455, %v1326
    %v1518 = vmax.f32 %v1456, %v1327
    %v1519 = vmax.f32 %v1457, %v1328
    %v1520 = vmax.f32 %v1458, %v1329
    %v1521 = vmax.f32 %v1459, %v1330
    %v1522 = vmax.f32 %v1460, %v1331
    %v1523 = vmax.f32 %v1461, %v1332
    %v1524 = vmax.f32 %v1462, %v1333
    %v1525 = vmax.f32 %v1463, %v1334
    %v1526 = vmax.f32 %v1464, %v1335
    %v1527 = vmax.f32 %v1465, %v1336
    %v1528 = vmax.f32 %v1466, %v1337
    %v1529 = vmax.f32 %v1467, %v1338
    %v1530 = vmax.f32 %v1468, %v1339
    %v1531 = vmax.f32 %v1469, %v1340
    %v1532 = vmax.f32 %v1470, %v1341
    %v1533 = vmax.f32 %v1471, %v1342
    %v1534 = vmax.f32 %v1472, %v1343
    %v1535 = vmax.f32 %v1473, %v1344
    %v1536 = vmax.f32 %v1474, %v1345
    %v1537 = vmax.f32 %v1475, %v1350
    %v1538 = vmax.f32 %v1476, %v1351
    %v1539 = vmax.f32 %v1477, %v1352
    %v1540 = vmax.f32 %v1478, %v1353
    %v1541 = vmax.f32 %v1479, %v1354
    %v1542 = vmax.f32 %v1480, %v1355
    %v1543 = vmax.f32 %v1481, %v1356
    %v1544 = vmax.f32 %v1482, %v1357
    %v1545 = vmax.f32 %v1483, %v1358
    %v1546 = vmax.f32 %v1484, %v1359
    %v1547 = vmax.f32 %v1485, %v1360
    %v1548 = vmax.f32 %v1486, %v1361
    %v1549 = vmax.f32 %v1487, %v1362
    %v1550 = vmax.f32 %v1488, %v1363
    %v1551 = vmax.f32 %v1489, %v1364
    %v1552 = vmax.f32 %v1490, %v1365
    %v1553 = vmax.f32 %v1491, %v1366
    %v1554 = vmax.f32 %v1492, %v1367
    %v1555 = vmax.f32 %v1493, %v1368
    %v1556 = vmax.f32 %v1494, %v1369
    %v1557 = vmax.f32 %v1495, %v1370
    %v1558 = vmax.f32 %v1496, %v1371
    %v1559 = vmax.f32 %v1497, %v1372
    %v1560 = vmax.f32 %v1498, %v1373
    %v1561 = vmax.f32 %v1499, %v1374
    %v1562 = vmax.f32 %v1500, %v1375
    %v1563 = vmax.f32 %v1501, %v1376
    %v1564 = vmax.f32 %v1502, %v1377
    %v1565 = vmax.f32 %v1503, %v1378
    %v1566 = vmax.f32 %v1504, %v1379
    %v1567 = vmax.f32 %v1505, %v1380
    %v1568 = vmax.f32 %v1506, %v1316
    %v1569 = vmax.f32 %v1507, %v1317
    %v1570 = vmax.f32 %v1508, %v1318
    %v1571 = vmax.f32 %v1509, %v1319
    %v1572 = vmax.f32 %v1510, %v1320
    %v1573 = vmax.f32 %v1511, %v1321
    %v1574 = vmax.f32 %v1512, %v1322
    %v1575 = vmax.f32 %v1513, %v1323
    %v1576 = vmax.f32 %v1514, %v1324
    %v1577 = vmax.f32 %v1515, %v1325
    %v1578 = vmax.f32 %v1516, %v1326
    %v1579 = vmax.f32 %v1517, %v1327
    %v1580 = vmax.f32 %v1518, %v1328
    %v1581 = vmax.f32 %v1519, %v1329
    %v1582 = vmax.f32 %v1520, %v1330
    %v1583 = vmax.f32 %v1521, %v1331
    %v1584 = vmax.f32 %v1522, %v1332
    %v1585 = vmax.f32 %v1523, %v1333
    %v1586 = vmax.f32 %v1524, %v1334
    %v1587 = vmax.f32 %v1525, %v1335
    %v1588 = vmax.f32 %v1526, %v1336
    %v1589 = vmax.f32 %v1527, %v1337
    %v1590 = vmax.f32 %v1528, %v1338
    %v1591 = vmax.f32 %v1529, %v1339
    %v1592 = vmax.f32 %v1530, %v1340
    %v1593 = vmax.f32 %v1531, %v1341
    %v1594 = vmax.f32 %v1532, %v1342
    %v1595 = vmax.f32 %v1533, %v1343
    %v1596 = vmax.f32 %v1534, %v1344
    %v1597 = vmax.f32 %v1535, %v1345
    %v1598 = vmax.f32 %v1536, %v1346
    %v1599 = vmax.f32 %v1537, %v1351
    %v1600 = vmax.f32 %v1538, %v1352
    %v1601 = vmax.f32 %v1539, %v1353
    %v1602 = vmax.f32 %v1540, %v1354
    %v1603 = vmax.f32 %v1541, %v1355
    %v1604 = vmax.f32 %v1542, %v1356
    %v1605 = vmax.f32 %v1543, %v1357
    %v1606 = vmax.f32 %v1544, %v1358
    %v1607 = vmax.f32 %v1545, %v1359
    %v1608 = vmax.f32 %v1546, %v1360
    %v1609 = vmax.f32 %v1547, %v1361
    %v1610 = vmax.f32 %v1548, %v1362
    %v1611 = vmax.f32 %v1549, %v1363
    %v1612 = vmax.f32 %v1550, %v1364
    %v1613 = vmax.f32 %v1551, %v1365
    %v1614 = vmax.f32 %v1552, %v1366
    %v1615 = vmax.f32 %v1553, %v1367
    %v1616 = vmax.f32 %v1554, %v1368
    %v1617 = vmax.f32 %v1555, %v1369
    %v1618 = vmax.f32 %v1556, %v1370
    %v1619 = vmax.f32 %v1557, %v1371
    %v1620 = vmax.f32 %v1558, %v1372
    %v1621 = vmax.f32 %v1559, %v1373
    %v1622 = vmax.f32 %v1560, %v1374
    %v1623 = vmax.f32 %v1561, %v1375
    %v1624 = vmax.f32 %v1562, %v1376
    %v1625 = vmax.f32 %v1563, %v1377
    %v1626 = vmax.f32 %v1564, %v1378
    %v1627 = vmax.f32 %v1565, %v1379
    %v1628 = vmax.f32 %v1566, %v1380
    %v1629 = vmax.f32 %v1567, %v1381
    %v1630 = vld [vmem:[#allocation6] sm:$0xff]
    %v1631 = vld [vmem:[#allocation6 + $0x8] sm:$0xff]
    %v1632 = vld [vmem:[#allocation6 + $0x10] sm:$0xff]
    %v1633 = vld [vmem:[#allocation6 + $0x18] sm:$0xff]
    %v1634 = vld [vmem:[%s4] sm:$0xff]
    %v1635 = vld [vmem:[%s4 + $0x8] sm:$0xff]
    %v1636 = vld [vmem:[%s4 + $0x10] sm:$0xff]
    %v1637 = vld [vmem:[%s4 + $0x18] sm:$0xff]
    %1639 = vset.pattern.permute.xlu0 0
    %1640 = vperm.xlu0 %1639, %v1634
    %v1641 = vpop.permute.xlu0 %1640
    %1644 = vset.pattern.permute.xlu0 0
    %1645 = vperm.xlu0 %1644, %v1635
    %v1646 = vpop.permute.xlu0 %1645
    %1649 = vset.pattern.permute.xlu0 0
    %1650 = vperm.xlu0 %1649, %v1636
    %v1651 = vpop.permute.xlu0 %1650
    %1654 = vset.pattern.permute.xlu0 0
    %1655 = vperm.xlu0 %1654, %v1637
    %v1656 = vpop.permute.xlu0 %1655
    %vm1658 = vcmask 523264
    %v1660 = vsel %vm1658, %v1630, 0
    %v1663 = vsel %vm1658, %v1631, 0
    %v1666 = vsel %vm1658, %v1632, 0
    %v1669 = vsel %vm1658, %v1633, 0
    %1671 = vmatpush.msra.mxu0 0.0
    %1672 = vmatpush.msra.mxu0 0.0
    %1673 = vmatpush.msra.mxu0 0.0
    %1674 = vmatpush.msra.mxu0 0.0
    %1675 = vmatpush.msra.mxu0 0.0
    %1676 = vmatpush.msra.mxu0 0.0
    %1677 = vmatpush.msra.mxu0 0.0
    %1678 = vmatpush.msra.mxu0 0.0
    %1679 = vmatpush.msra.mxu0 %v1602
    %1680 = vmatpush.msra.mxu0 %v1571
    %1681 = vmatpush.msra.mxu0 %v1601
    %1682 = vmatpush.msra.mxu0 %v1570
    %1683 = vmatpush.msra.mxu0 %v1600
    %1684 = vmatpush.msra.mxu0 %v1569
    %1685 = vmatpush.msra.mxu0 %v1599
    %1686 = vmatpush.msra.mxu0 %v1568
    %1687 = vmatmul.f32.gmra.mxu0 %v1660
    %v1688 = vpop.f32.mrf.mxu0
    %v1689 = vadd.f32 %v1641, %v1688
    %1690 = vmatmul.f32.gmra.mxu0 %v1663
    %v1691 = vpop.f32.mrf.mxu0
    %v1692 = vadd.f32 %v1646, %v1691
    %1693 = vmatmul.f32.gmra.mxu0 %v1666
    %v1694 = vpop.f32.mrf.mxu0
    %v1695 = vadd.f32 %v1651, %v1694
    %1696 = vmatmul.f32.gmra.mxu0 %v1669
    %v1697 = vpop.f32.mrf.mxu0
    %v1698 = vadd.f32 %v1656, %v1697
    %1699 = vdwg.mxu0
    %1700 = vmatpush.msra.mxu0 0.0
    %1701 = vmatpush.msra.mxu0 0.0
    %1702 = vmatpush.msra.mxu0 0.0
    %1703 = vmatpush.msra.mxu0 0.0
    %1704 = vmatpush.msra.mxu0 0.0
    %1705 = vmatpush.msra.mxu0 0.0
    %1706 = vmatpush.msra.mxu0 0.0
    %1707 = vmatpush.msra.mxu0 0.0
    %1708 = vmatpush.msra.mxu0 %v1603
    %1709 = vmatpush.msra.mxu0 %v1572
    %1710 = vmatpush.msra.mxu0 %v1602
    %1711 = vmatpush.msra.mxu0 %v1571
    %1712 = vmatpush.msra.mxu0 %v1601
    %1713 = vmatpush.msra.mxu0 %v1570
    %1714 = vmatpush.msra.mxu0 %v1600
    %1715 = vmatpush.msra.mxu0 %v1569
    %1716 = vmatmul.f32.gmra.mxu0 %v1660
    %v1717 = vpop.f32.mrf.mxu0
    %v1718 = vadd.f32 %v1641, %v1717
    %1719 = vmatmul.f32.gmra.mxu0 %v1663
    %v1720 = vpop.f32.mrf.mxu0
    %v1721 = vadd.f32 %v1646, %v1720
    %1722 = vmatmul.f32.gmra.mxu0 %v1666
    %v1723 = vpop.f32.mrf.mxu0
    %v1724 = vadd.f32 %v1651, %v1723
    %1725 = vmatmul.f32.gmra.mxu0 %v1669
    %v1726 = vpop.f32.mrf.mxu0
    %v1727 = vadd.f32 %v1656, %v1726
    %1728 = vdwg.mxu0
    %1729 = vmatpush.msra.mxu0 0.0
    %1730 = vmatpush.msra.mxu0 0.0
    %1731 = vmatpush.msra.mxu0 0.0
    %1732 = vmatpush.msra.mxu0 0.0
    %1733 = vmatpush.msra.mxu0 0.0
    %1734 = vmatpush.msra.mxu0 0.0
    %1735 = vmatpush.msra.mxu0 0.0
    %1736 = vmatpush.msra.mxu0 0.0
    %1737 = vmatpush.msra.mxu0 %v1604
    %1738 = vmatpush.msra.mxu0 %v1573
    %1739 = vmatpush.msra.mxu0 %v1603
    %1740 = vmatpush.msra.mxu0 %v1572
    %1741 = vmatpush.msra.mxu0 %v1602
    %1742 = vmatpush.msra.mxu0 %v1571
    %1743 = vmatpush.msra.mxu0 %v1601
    %1744 = vmatpush.msra.mxu0 %v1570
    %1745 = vmatmul.f32.gmra.mxu0 %v1660
    %v1746 = vpop.f32.mrf.mxu0
    %v1747 = vadd.f32 %v1641, %v1746
    %1748 = vmatmul.f32.gmra.mxu0 %v1663
    %v1749 = vpop.f32.mrf.mxu0
    %v1750 = vadd.f32 %v1646, %v1749
    %1751 = vmatmul.f32.gmra.mxu0 %v1666
    %v1752 = vpop.f32.mrf.mxu0
    %v1753 = vadd.f32 %v1651, %v1752
    %1754 = vmatmul.f32.gmra.mxu0 %v1669
    %v1755 = vpop.f32.mrf.mxu0
    %v1756 = vadd.f32 %v1656, %v1755
    %1757 = vdwg.mxu0
    %1758 = vmatpush.msra.mxu0 0.0
    %1759 = vmatpush.msra.mxu0 0.0
    %1760 = vmatpush.msra.mxu0 0.0
    %1761 = vmatpush.msra.mxu0 0.0
    %1762 = vmatpush.msra.mxu0 0.0
    %1763 = vmatpush.msra.mxu0 0.0
    %1764 = vmatpush.msra.mxu0 0.0
    %1765 = vmatpush.msra.mxu0 0.0
    %1766 = vmatpush.msra.mxu0 %v1605
    %1767 = vmatpush.msra.mxu0 %v1574
    %1768 = vmatpush.msra.mxu0 %v1604
    %1769 = vmatpush.msra.mxu0 %v1573
    %1770 = vmatpush.msra.mxu0 %v1603
    %1771 = vmatpush.msra.mxu0 %v1572
    %1772 = vmatpush.msra.mxu0 %v1602
    %1773 = vmatpush.msra.mxu0 %v1571
    %1774 = vmatmul.f32.gmra.mxu0 %v1660
    %v1775 = vpop.f32.mrf.mxu0
    %v1776 = vadd.f32 %v1641, %v1775
    %1777 = vmatmul.f32.gmra.mxu0 %v1663
    %v1778 = vpop.f32.mrf.mxu0
    %v1779 = vadd.f32 %v1646, %v1778
    %1780 = vmatmul.f32.gmra.mxu0 %v1666
    %v1781 = vpop.f32.mrf.mxu0
    %v1782 = vadd.f32 %v1651, %v1781
    %1783 = vmatmul.f32.gmra.mxu0 %v1669
    %v1784 = vpop.f32.mrf.mxu0
    %v1785 = vadd.f32 %v1656, %v1784
    %1786 = vdwg.mxu0
    %1787 = vmatpush.msra.mxu0 0.0
    %1788 = vmatpush.msra.mxu0 0.0
    %1789 = vmatpush.msra.mxu0 0.0
    %1790 = vmatpush.msra.mxu0 0.0
    %1791 = vmatpush.msra.mxu0 0.0
    %1792 = vmatpush.msra.mxu0 0.0
    %1793 = vmatpush.msra.mxu0 0.0
    %1794 = vmatpush.msra.mxu0 0.0
    %1795 = vmatpush.msra.mxu0 %v1606
    %1796 = vmatpush.msra.mxu0 %v1575
    %1797 = vmatpush.msra.mxu0 %v1605
    %1798 = vmatpush.msra.mxu0 %v1574
    %1799 = vmatpush.msra.mxu0 %v1604
    %1800 = vmatpush.msra.mxu0 %v1573
    %1801 = vmatpush.msra.mxu0 %v1603
    %1802 = vmatpush.msra.mxu0 %v1572
    %1803 = vmatmul.f32.gmra.mxu0 %v1660
    %v1804 = vpop.f32.mrf.mxu0
    %v1805 = vadd.f32 %v1641, %v1804
    %1806 = vmatmul.f32.gmra.mxu0 %v1663
    %v1807 = vpop.f32.mrf.mxu0
    %v1808 = vadd.f32 %v1646, %v1807
    %1809 = vmatmul.f32.gmra.mxu0 %v1666
    %v1810 = vpop.f32.mrf.mxu0
    %v1811 = vadd.f32 %v1651, %v1810
    %1812 = vmatmul.f32.gmra.mxu0 %v1669
    %v1813 = vpop.f32.mrf.mxu0
    %v1814 = vadd.f32 %v1656, %v1813
    %1815 = vdwg.mxu0
    %1816 = vmatpush.msra.mxu0 0.0
    %1817 = vmatpush.msra.mxu0 0.0
    %1818 = vmatpush.msra.mxu0 0.0
    %1819 = vmatpush.msra.mxu0 0.0
    %1820 = vmatpush.msra.mxu0 0.0
    %1821 = vmatpush.msra.mxu0 0.0
    %1822 = vmatpush.msra.mxu0 0.0
    %1823 = vmatpush.msra.mxu0 0.0
    %1824 = vmatpush.msra.mxu0 %v1607
    %1825 = vmatpush.msra.mxu0 %v1576
    %1826 = vmatpush.msra.mxu0 %v1606
    %1827 = vmatpush.msra.mxu0 %v1575
    %1828 = vmatpush.msra.mxu0 %v1605
    %1829 = vmatpush.msra.mxu0 %v1574
    %1830 = vmatpush.msra.mxu0 %v1604
    %1831 = vmatpush.msra.mxu0 %v1573
    %1832 = vmatmul.f32.gmra.mxu0 %v1660
    %v1833 = vpop.f32.mrf.mxu0
    %v1834 = vadd.f32 %v1641, %v1833
    %1835 = vmatmul.f32.gmra.mxu0 %v1663
    %v1836 = vpop.f32.mrf.mxu0
    %v1837 = vadd.f32 %v1646, %v1836
    %1838 = vmatmul.f32.gmra.mxu0 %v1666
    %v1839 = vpop.f32.mrf.mxu0
    %v1840 = vadd.f32 %v1651, %v1839
    %1841 = vmatmul.f32.gmra.mxu0 %v1669
    %v1842 = vpop.f32.mrf.mxu0
    %v1843 = vadd.f32 %v1656, %v1842
    %1844 = vdwg.mxu0
    %1845 = vmatpush.msra.mxu0 0.0
    %1846 = vmatpush.msra.mxu0 0.0
    %1847 = vmatpush.msra.mxu0 0.0
    %1848 = vmatpush.msra.mxu0 0.0
    %1849 = vmatpush.msra.mxu0 0.0
    %1850 = vmatpush.msra.mxu0 0.0
    %1851 = vmatpush.msra.mxu0 0.0
    %1852 = vmatpush.msra.mxu0 0.0
    %1853 = vmatpush.msra.mxu0 %v1608
    %1854 = vmatpush.msra.mxu0 %v1577
    %1855 = vmatpush.msra.mxu0 %v1607
    %1856 = vmatpush.msra.mxu0 %v1576
    %1857 = vmatpush.msra.mxu0 %v1606
    %1858 = vmatpush.msra.mxu0 %v1575
    %1859 = vmatpush.msra.mxu0 %v1605
    %1860 = vmatpush.msra.mxu0 %v1574
    %1861 = vmatmul.f32.gmra.mxu0 %v1660
    %v1862 = vpop.f32.mrf.mxu0
    %v1863 = vadd.f32 %v1641, %v1862
    %1864 = vmatmul.f32.gmra.mxu0 %v1663
    %v1865 = vpop.f32.mrf.mxu0
    %v1866 = vadd.f32 %v1646, %v1865
    %1867 = vmatmul.f32.gmra.mxu0 %v1666
    %v1868 = vpop.f32.mrf.mxu0
    %v1869 = vadd.f32 %v1651, %v1868
    %1870 = vmatmul.f32.gmra.mxu0 %v1669
    %v1871 = vpop.f32.mrf.mxu0
    %v1872 = vadd.f32 %v1656, %v1871
    %1873 = vdwg.mxu0
    %1874 = vmatpush.msra.mxu0 0.0
    %1875 = vmatpush.msra.mxu0 0.0
    %1876 = vmatpush.msra.mxu0 0.0
    %1877 = vmatpush.msra.mxu0 0.0
    %1878 = vmatpush.msra.mxu0 0.0
    %1879 = vmatpush.msra.mxu0 0.0
    %1880 = vmatpush.msra.mxu0 0.0
    %1881 = vmatpush.msra.mxu0 0.0
    %1882 = vmatpush.msra.mxu0 %v1609
    %1883 = vmatpush.msra.mxu0 %v1578
    %1884 = vmatpush.msra.mxu0 %v1608
    %1885 = vmatpush.msra.mxu0 %v1577
    %1886 = vmatpush.msra.mxu0 %v1607
    %1887 = vmatpush.msra.mxu0 %v1576
    %1888 = vmatpush.msra.mxu0 %v1606
    %1889 = vmatpush.msra.mxu0 %v1575
    %1890 = vmatmul.f32.gmra.mxu0 %v1660
    %v1891 = vpop.f32.mrf.mxu0
    %v1892 = vadd.f32 %v1641, %v1891
    %1893 = vmatmul.f32.gmra.mxu0 %v1663
    %v1894 = vpop.f32.mrf.mxu0
    %v1895 = vadd.f32 %v1646, %v1894
    %1896 = vmatmul.f32.gmra.mxu0 %v1666
    %v1897 = vpop.f32.mrf.mxu0
    %v1898 = vadd.f32 %v1651, %v1897
    %1899 = vmatmul.f32.gmra.mxu0 %v1669
    %v1900 = vpop.f32.mrf.mxu0
    %v1901 = vadd.f32 %v1656, %v1900
    %1902 = vdwg.mxu0
    %1903 = vmatpush.msra.mxu0 0.0
    %1904 = vmatpush.msra.mxu0 0.0
    %1905 = vmatpush.msra.mxu0 0.0
    %1906 = vmatpush.msra.mxu0 0.0
    %1907 = vmatpush.msra.mxu0 0.0
    %1908 = vmatpush.msra.mxu0 0.0
    %1909 = vmatpush.msra.mxu0 0.0
    %1910 = vmatpush.msra.mxu0 0.0
    %1911 = vmatpush.msra.mxu0 %v1610
    %1912 = vmatpush.msra.mxu0 %v1579
    %1913 = vmatpush.msra.mxu0 %v1609
    %1914 = vmatpush.msra.mxu0 %v1578
    %1915 = vmatpush.msra.mxu0 %v1608
    %1916 = vmatpush.msra.mxu0 %v1577
    %1917 = vmatpush.msra.mxu0 %v1607
    %1918 = vmatpush.msra.mxu0 %v1576
    %1919 = vmatmul.f32.gmra.mxu0 %v1660
    %v1920 = vpop.f32.mrf.mxu0
    %v1921 = vadd.f32 %v1641, %v1920
    %1922 = vmatmul.f32.gmra.mxu0 %v1663
    %v1923 = vpop.f32.mrf.mxu0
    %v1924 = vadd.f32 %v1646, %v1923
    %1925 = vmatmul.f32.gmra.mxu0 %v1666
    %v1926 = vpop.f32.mrf.mxu0
    %v1927 = vadd.f32 %v1651, %v1926
    %1928 = vmatmul.f32.gmra.mxu0 %v1669
    %v1929 = vpop.f32.mrf.mxu0
    %v1930 = vadd.f32 %v1656, %v1929
    %1931 = vdwg.mxu0
    %1932 = vmatpush.msra.mxu0 0.0
    %1933 = vmatpush.msra.mxu0 0.0
    %1934 = vmatpush.msra.mxu0 0.0
    %1935 = vmatpush.msra.mxu0 0.0
    %1936 = vmatpush.msra.mxu0 0.0
    %1937 = vmatpush.msra.mxu0 0.0
    %1938 = vmatpush.msra.mxu0 0.0
    %1939 = vmatpush.msra.mxu0 0.0
    %1940 = vmatpush.msra.mxu0 %v1611
    %1941 = vmatpush.msra.mxu0 %v1580
    %1942 = vmatpush.msra.mxu0 %v1610
    %1943 = vmatpush.msra.mxu0 %v1579
    %1944 = vmatpush.msra.mxu0 %v1609
    %1945 = vmatpush.msra.mxu0 %v1578
    %1946 = vmatpush.msra.mxu0 %v1608
    %1947 = vmatpush.msra.mxu0 %v1577
    %1948 = vmatmul.f32.gmra.mxu0 %v1660
    %v1949 = vpop.f32.mrf.mxu0
    %v1950 = vadd.f32 %v1641, %v1949
    %1951 = vmatmul.f32.gmra.mxu0 %v1663
    %v1952 = vpop.f32.mrf.mxu0
    %v1953 = vadd.f32 %v1646, %v1952
    %1954 = vmatmul.f32.gmra.mxu0 %v1666
    %v1955 = vpop.f32.mrf.mxu0
    %v1956 = vadd.f32 %v1651, %v1955
    %1957 = vmatmul.f32.gmra.mxu0 %v1669
    %v1958 = vpop.f32.mrf.mxu0
    %v1959 = vadd.f32 %v1656, %v1958
    %1960 = vdwg.mxu0
    %1961 = vmatpush.msra.mxu0 0.0
    %1962 = vmatpush.msra.mxu0 0.0
    %1963 = vmatpush.msra.mxu0 0.0
    %1964 = vmatpush.msra.mxu0 0.0
    %1965 = vmatpush.msra.mxu0 0.0
    %1966 = vmatpush.msra.mxu0 0.0
    %1967 = vmatpush.msra.mxu0 0.0
    %1968 = vmatpush.msra.mxu0 0.0
    %1969 = vmatpush.msra.mxu0 %v1612
    %1970 = vmatpush.msra.mxu0 %v1581
    %1971 = vmatpush.msra.mxu0 %v1611
    %1972 = vmatpush.msra.mxu0 %v1580
    %1973 = vmatpush.msra.mxu0 %v1610
    %1974 = vmatpush.msra.mxu0 %v1579
    %1975 = vmatpush.msra.mxu0 %v1609
    %1976 = vmatpush.msra.mxu0 %v1578
    %1977 = vmatmul.f32.gmra.mxu0 %v1660
    %v1978 = vpop.f32.mrf.mxu0
    %v1979 = vadd.f32 %v1641, %v1978
    %1980 = vmatmul.f32.gmra.mxu0 %v1663
    %v1981 = vpop.f32.mrf.mxu0
    %v1982 = vadd.f32 %v1646, %v1981
    %1983 = vmatmul.f32.gmra.mxu0 %v1666
    %v1984 = vpop.f32.mrf.mxu0
    %v1985 = vadd.f32 %v1651, %v1984
    %1986 = vmatmul.f32.gmra.mxu0 %v1669
    %v1987 = vpop.f32.mrf.mxu0
    %v1988 = vadd.f32 %v1656, %v1987
    %1989 = vdwg.mxu0
    %1990 = vmatpush.msra.mxu0 0.0
    %1991 = vmatpush.msra.mxu0 0.0
    %1992 = vmatpush.msra.mxu0 0.0
    %1993 = vmatpush.msra.mxu0 0.0
    %1994 = vmatpush.msra.mxu0 0.0
    %1995 = vmatpush.msra.mxu0 0.0
    %1996 = vmatpush.msra.mxu0 0.0
    %1997 = vmatpush.msra.mxu0 0.0
    %1998 = vmatpush.msra.mxu0 %v1613
    %1999 = vmatpush.msra.mxu0 %v1582
    %2000 = vmatpush.msra.mxu0 %v1612
    %2001 = vmatpush.msra.mxu0 %v1581
    %2002 = vmatpush.msra.mxu0 %v1611
    %2003 = vmatpush.msra.mxu0 %v1580
    %2004 = vmatpush.msra.mxu0 %v1610
    %2005 = vmatpush.msra.mxu0 %v1579
    %2006 = vmatmul.f32.gmra.mxu0 %v1660
    %v2007 = vpop.f32.mrf.mxu0
    %v2008 = vadd.f32 %v1641, %v2007
    %2009 = vmatmul.f32.gmra.mxu0 %v1663
    %v2010 = vpop.f32.mrf.mxu0
    %v2011 = vadd.f32 %v1646, %v2010
    %2012 = vmatmul.f32.gmra.mxu0 %v1666
    %v2013 = vpop.f32.mrf.mxu0
    %v2014 = vadd.f32 %v1651, %v2013
    %2015 = vmatmul.f32.gmra.mxu0 %v1669
    %v2016 = vpop.f32.mrf.mxu0
    %v2017 = vadd.f32 %v1656, %v2016
    %2018 = vdwg.mxu0
    %2019 = vmatpush.msra.mxu0 0.0
    %2020 = vmatpush.msra.mxu0 0.0
    %2021 = vmatpush.msra.mxu0 0.0
    %2022 = vmatpush.msra.mxu0 0.0
    %2023 = vmatpush.msra.mxu0 0.0
    %2024 = vmatpush.msra.mxu0 0.0
    %2025 = vmatpush.msra.mxu0 0.0
    %2026 = vmatpush.msra.mxu0 0.0
    %2027 = vmatpush.msra.mxu0 %v1614
    %2028 = vmatpush.msra.mxu0 %v1583
    %2029 = vmatpush.msra.mxu0 %v1613
    %2030 = vmatpush.msra.mxu0 %v1582
    %2031 = vmatpush.msra.mxu0 %v1612
    %2032 = vmatpush.msra.mxu0 %v1581
    %2033 = vmatpush.msra.mxu0 %v1611
    %2034 = vmatpush.msra.mxu0 %v1580
    %2035 = vmatmul.f32.gmra.mxu0 %v1660
    %v2036 = vpop.f32.mrf.mxu0
    %v2037 = vadd.f32 %v1641, %v2036
    %2038 = vmatmul.f32.gmra.mxu0 %v1663
    %v2039 = vpop.f32.mrf.mxu0
    %v2040 = vadd.f32 %v1646, %v2039
    %2041 = vmatmul.f32.gmra.mxu0 %v1666
    %v2042 = vpop.f32.mrf.mxu0
    %v2043 = vadd.f32 %v1651, %v2042
    %2044 = vmatmul.f32.gmra.mxu0 %v1669
    %v2045 = vpop.f32.mrf.mxu0
    %v2046 = vadd.f32 %v1656, %v2045
    %2047 = vdwg.mxu0
    %2048 = vmatpush.msra.mxu0 0.0
    %2049 = vmatpush.msra.mxu0 0.0
    %2050 = vmatpush.msra.mxu0 0.0
    %2051 = vmatpush.msra.mxu0 0.0
    %2052 = vmatpush.msra.mxu0 0.0
    %2053 = vmatpush.msra.mxu0 0.0
    %2054 = vmatpush.msra.mxu0 0.0
    %2055 = vmatpush.msra.mxu0 0.0
    %2056 = vmatpush.msra.mxu0 %v1615
    %2057 = vmatpush.msra.mxu0 %v1584
    %2058 = vmatpush.msra.mxu0 %v1614
    %2059 = vmatpush.msra.mxu0 %v1583
    %2060 = vmatpush.msra.mxu0 %v1613
    %2061 = vmatpush.msra.mxu0 %v1582
    %2062 = vmatpush.msra.mxu0 %v1612
    %2063 = vmatpush.msra.mxu0 %v1581
    %2064 = vmatmul.f32.gmra.mxu0 %v1660
    %v2065 = vpop.f32.mrf.mxu0
    %v2066 = vadd.f32 %v1641, %v2065
    %2067 = vmatmul.f32.gmra.mxu0 %v1663
    %v2068 = vpop.f32.mrf.mxu0
    %v2069 = vadd.f32 %v1646, %v2068
    %2070 = vmatmul.f32.gmra.mxu0 %v1666
    %v2071 = vpop.f32.mrf.mxu0
    %v2072 = vadd.f32 %v1651, %v2071
    %2073 = vmatmul.f32.gmra.mxu0 %v1669
    %v2074 = vpop.f32.mrf.mxu0
    %v2075 = vadd.f32 %v1656, %v2074
    %2076 = vdwg.mxu0
    %2077 = vmatpush.msra.mxu0 0.0
    %2078 = vmatpush.msra.mxu0 0.0
    %2079 = vmatpush.msra.mxu0 0.0
    %2080 = vmatpush.msra.mxu0 0.0
    %2081 = vmatpush.msra.mxu0 0.0
    %2082 = vmatpush.msra.mxu0 0.0
    %2083 = vmatpush.msra.mxu0 0.0
    %2084 = vmatpush.msra.mxu0 0.0
    %2085 = vmatpush.msra.mxu0 %v1616
    %2086 = vmatpush.msra.mxu0 %v1585
    %2087 = vmatpush.msra.mxu0 %v1615
    %2088 = vmatpush.msra.mxu0 %v1584
    %2089 = vmatpush.msra.mxu0 %v1614
    %2090 = vmatpush.msra.mxu0 %v1583
    %2091 = vmatpush.msra.mxu0 %v1613
    %2092 = vmatpush.msra.mxu0 %v1582
    %2093 = vmatmul.f32.gmra.mxu0 %v1660
    %v2094 = vpop.f32.mrf.mxu0
    %v2095 = vadd.f32 %v1641, %v2094
    %2096 = vmatmul.f32.gmra.mxu0 %v1663
    %v2097 = vpop.f32.mrf.mxu0
    %v2098 = vadd.f32 %v1646, %v2097
    %2099 = vmatmul.f32.gmra.mxu0 %v1666
    %v2100 = vpop.f32.mrf.mxu0
    %v2101 = vadd.f32 %v1651, %v2100
    %2102 = vmatmul.f32.gmra.mxu0 %v1669
    %v2103 = vpop.f32.mrf.mxu0
    %v2104 = vadd.f32 %v1656, %v2103
    %2105 = vdwg.mxu0
    %2106 = vmatpush.msra.mxu0 0.0
    %2107 = vmatpush.msra.mxu0 0.0
    %2108 = vmatpush.msra.mxu0 0.0
    %2109 = vmatpush.msra.mxu0 0.0
    %2110 = vmatpush.msra.mxu0 0.0
    %2111 = vmatpush.msra.mxu0 0.0
    %2112 = vmatpush.msra.mxu0 0.0
    %2113 = vmatpush.msra.mxu0 0.0
    %2114 = vmatpush.msra.mxu0 %v1617
    %2115 = vmatpush.msra.mxu0 %v1586
    %2116 = vmatpush.msra.mxu0 %v1616
    %2117 = vmatpush.msra.mxu0 %v1585
    %2118 = vmatpush.msra.mxu0 %v1615
    %2119 = vmatpush.msra.mxu0 %v1584
    %2120 = vmatpush.msra.mxu0 %v1614
    %2121 = vmatpush.msra.mxu0 %v1583
    %2122 = vmatmul.f32.gmra.mxu0 %v1660
    %v2123 = vpop.f32.mrf.mxu0
    %v2124 = vadd.f32 %v1641, %v2123
    %2125 = vmatmul.f32.gmra.mxu0 %v1663
    %v2126 = vpop.f32.mrf.mxu0
    %v2127 = vadd.f32 %v1646, %v2126
    %2128 = vmatmul.f32.gmra.mxu0 %v1666
    %v2129 = vpop.f32.mrf.mxu0
    %v2130 = vadd.f32 %v1651, %v2129
    %2131 = vmatmul.f32.gmra.mxu0 %v1669
    %v2132 = vpop.f32.mrf.mxu0
    %v2133 = vadd.f32 %v1656, %v2132
    %2134 = vdwg.mxu0
    %2135 = vmatpush.msra.mxu0 0.0
    %2136 = vmatpush.msra.mxu0 0.0
    %2137 = vmatpush.msra.mxu0 0.0
    %2138 = vmatpush.msra.mxu0 0.0
    %2139 = vmatpush.msra.mxu0 0.0
    %2140 = vmatpush.msra.mxu0 0.0
    %2141 = vmatpush.msra.mxu0 0.0
    %2142 = vmatpush.msra.mxu0 0.0
    %2143 = vmatpush.msra.mxu0 %v1618
    %2144 = vmatpush.msra.mxu0 %v1587
    %2145 = vmatpush.msra.mxu0 %v1617
    %2146 = vmatpush.msra.mxu0 %v1586
    %2147 = vmatpush.msra.mxu0 %v1616
    %2148 = vmatpush.msra.mxu0 %v1585
    %2149 = vmatpush.msra.mxu0 %v1615
    %2150 = vmatpush.msra.mxu0 %v1584
    %2151 = vmatmul.f32.gmra.mxu0 %v1660
    %v2152 = vpop.f32.mrf.mxu0
    %v2153 = vadd.f32 %v1641, %v2152
    %2154 = vmatmul.f32.gmra.mxu0 %v1663
    %v2155 = vpop.f32.mrf.mxu0
    %v2156 = vadd.f32 %v1646, %v2155
    %2157 = vmatmul.f32.gmra.mxu0 %v1666
    %v2158 = vpop.f32.mrf.mxu0
    %v2159 = vadd.f32 %v1651, %v2158
    %2160 = vmatmul.f32.gmra.mxu0 %v1669
    %v2161 = vpop.f32.mrf.mxu0
    %v2162 = vadd.f32 %v1656, %v2161
    %2163 = vdwg.mxu0
    %2164 = vmatpush.msra.mxu0 0.0
    %2165 = vmatpush.msra.mxu0 0.0
    %2166 = vmatpush.msra.mxu0 0.0
    %2167 = vmatpush.msra.mxu0 0.0
    %2168 = vmatpush.msra.mxu0 0.0
    %2169 = vmatpush.msra.mxu0 0.0
    %2170 = vmatpush.msra.mxu0 0.0
    %2171 = vmatpush.msra.mxu0 0.0
    %2172 = vmatpush.msra.mxu0 %v1619
    %2173 = vmatpush.msra.mxu0 %v1588
    %2174 = vmatpush.msra.mxu0 %v1618
    %2175 = vmatpush.msra.mxu0 %v1587
    %2176 = vmatpush.msra.mxu0 %v1617
    %2177 = vmatpush.msra.mxu0 %v1586
    %2178 = vmatpush.msra.mxu0 %v1616
    %2179 = vmatpush.msra.mxu0 %v1585
    %2180 = vmatmul.f32.gmra.mxu0 %v1660
    %v2181 = vpop.f32.mrf.mxu0
    %v2182 = vadd.f32 %v1641, %v2181
    %2183 = vmatmul.f32.gmra.mxu0 %v1663
    %v2184 = vpop.f32.mrf.mxu0
    %v2185 = vadd.f32 %v1646, %v2184
    %2186 = vmatmul.f32.gmra.mxu0 %v1666
    %v2187 = vpop.f32.mrf.mxu0
    %v2188 = vadd.f32 %v1651, %v2187
    %2189 = vmatmul.f32.gmra.mxu0 %v1669
    %v2190 = vpop.f32.mrf.mxu0
    %v2191 = vadd.f32 %v1656, %v2190
    %2192 = vdwg.mxu0
    %2193 = vmatpush.msra.mxu0 0.0
    %2194 = vmatpush.msra.mxu0 0.0
    %2195 = vmatpush.msra.mxu0 0.0
    %2196 = vmatpush.msra.mxu0 0.0
    %2197 = vmatpush.msra.mxu0 0.0
    %2198 = vmatpush.msra.mxu0 0.0
    %2199 = vmatpush.msra.mxu0 0.0
    %2200 = vmatpush.msra.mxu0 0.0
    %2201 = vmatpush.msra.mxu0 %v1620
    %2202 = vmatpush.msra.mxu0 %v1589
    %2203 = vmatpush.msra.mxu0 %v1619
    %2204 = vmatpush.msra.mxu0 %v1588
    %2205 = vmatpush.msra.mxu0 %v1618
    %2206 = vmatpush.msra.mxu0 %v1587
    %2207 = vmatpush.msra.mxu0 %v1617
    %2208 = vmatpush.msra.mxu0 %v1586
    %2209 = vmatmul.f32.gmra.mxu0 %v1660
    %v2210 = vpop.f32.mrf.mxu0
    %v2211 = vadd.f32 %v1641, %v2210
    %2212 = vmatmul.f32.gmra.mxu0 %v1663
    %v2213 = vpop.f32.mrf.mxu0
    %v2214 = vadd.f32 %v1646, %v2213
    %2215 = vmatmul.f32.gmra.mxu0 %v1666
    %v2216 = vpop.f32.mrf.mxu0
    %v2217 = vadd.f32 %v1651, %v2216
    %2218 = vmatmul.f32.gmra.mxu0 %v1669
    %v2219 = vpop.f32.mrf.mxu0
    %v2220 = vadd.f32 %v1656, %v2219
    %2221 = vdwg.mxu0
    %2222 = vmatpush.msra.mxu0 0.0
    %2223 = vmatpush.msra.mxu0 0.0
    %2224 = vmatpush.msra.mxu0 0.0
    %2225 = vmatpush.msra.mxu0 0.0
    %2226 = vmatpush.msra.mxu0 0.0
    %2227 = vmatpush.msra.mxu0 0.0
    %2228 = vmatpush.msra.mxu0 0.0
    %2229 = vmatpush.msra.mxu0 0.0
    %2230 = vmatpush.msra.mxu0 %v1621
    %2231 = vmatpush.msra.mxu0 %v1590
    %2232 = vmatpush.msra.mxu0 %v1620
    %2233 = vmatpush.msra.mxu0 %v1589
    %2234 = vmatpush.msra.mxu0 %v1619
    %2235 = vmatpush.msra.mxu0 %v1588
    %2236 = vmatpush.msra.mxu0 %v1618
    %2237 = vmatpush.msra.mxu0 %v1587
    %2238 = vmatmul.f32.gmra.mxu0 %v1660
    %v2239 = vpop.f32.mrf.mxu0
    %v2240 = vadd.f32 %v1641, %v2239
    %2241 = vmatmul.f32.gmra.mxu0 %v1663
    %v2242 = vpop.f32.mrf.mxu0
    %v2243 = vadd.f32 %v1646, %v2242
    %2244 = vmatmul.f32.gmra.mxu0 %v1666
    %v2245 = vpop.f32.mrf.mxu0
    %v2246 = vadd.f32 %v1651, %v2245
    %2247 = vmatmul.f32.gmra.mxu0 %v1669
    %v2248 = vpop.f32.mrf.mxu0
    %v2249 = vadd.f32 %v1656, %v2248
    %2250 = vdwg.mxu0
    %2251 = vmatpush.msra.mxu0 0.0
    %2252 = vmatpush.msra.mxu0 0.0
    %2253 = vmatpush.msra.mxu0 0.0
    %2254 = vmatpush.msra.mxu0 0.0
    %2255 = vmatpush.msra.mxu0 0.0
    %2256 = vmatpush.msra.mxu0 0.0
    %2257 = vmatpush.msra.mxu0 0.0
    %2258 = vmatpush.msra.mxu0 0.0
    %2259 = vmatpush.msra.mxu0 %v1622
    %2260 = vmatpush.msra.mxu0 %v1591
    %2261 = vmatpush.msra.mxu0 %v1621
    %2262 = vmatpush.msra.mxu0 %v1590
    %2263 = vmatpush.msra.mxu0 %v1620
    %2264 = vmatpush.msra.mxu0 %v1589
    %2265 = vmatpush.msra.mxu0 %v1619
    %2266 = vmatpush.msra.mxu0 %v1588
    %2267 = vmatmul.f32.gmra.mxu0 %v1660
    %v2268 = vpop.f32.mrf.mxu0
    %v2269 = vadd.f32 %v1641, %v2268
    %2270 = vmatmul.f32.gmra.mxu0 %v1663
    %v2271 = vpop.f32.mrf.mxu0
    %v2272 = vadd.f32 %v1646, %v2271
    %2273 = vmatmul.f32.gmra.mxu0 %v1666
    %v2274 = vpop.f32.mrf.mxu0
    %v2275 = vadd.f32 %v1651, %v2274
    %2276 = vmatmul.f32.gmra.mxu0 %v1669
    %v2277 = vpop.f32.mrf.mxu0
    %v2278 = vadd.f32 %v1656, %v2277
    %2279 = vdwg.mxu0
    %2280 = vmatpush.msra.mxu0 0.0
    %2281 = vmatpush.msra.mxu0 0.0
    %2282 = vmatpush.msra.mxu0 0.0
    %2283 = vmatpush.msra.mxu0 0.0
    %2284 = vmatpush.msra.mxu0 0.0
    %2285 = vmatpush.msra.mxu0 0.0
    %2286 = vmatpush.msra.mxu0 0.0
    %2287 = vmatpush.msra.mxu0 0.0
    %2288 = vmatpush.msra.mxu0 %v1623
    %2289 = vmatpush.msra.mxu0 %v1592
    %2290 = vmatpush.msra.mxu0 %v1622
    %2291 = vmatpush.msra.mxu0 %v1591
    %2292 = vmatpush.msra.mxu0 %v1621
    %2293 = vmatpush.msra.mxu0 %v1590
    %2294 = vmatpush.msra.mxu0 %v1620
    %2295 = vmatpush.msra.mxu0 %v1589
    %2296 = vmatmul.f32.gmra.mxu0 %v1660
    %v2297 = vpop.f32.mrf.mxu0
    %v2298 = vadd.f32 %v1641, %v2297
    %2299 = vmatmul.f32.gmra.mxu0 %v1663
    %v2300 = vpop.f32.mrf.mxu0
    %v2301 = vadd.f32 %v1646, %v2300
    %2302 = vmatmul.f32.gmra.mxu0 %v1666
    %v2303 = vpop.f32.mrf.mxu0
    %v2304 = vadd.f32 %v1651, %v2303
    %2305 = vmatmul.f32.gmra.mxu0 %v1669
    %v2306 = vpop.f32.mrf.mxu0
    %v2307 = vadd.f32 %v1656, %v2306
    %2308 = vdwg.mxu0
    %2309 = vmatpush.msra.mxu0 0.0
    %2310 = vmatpush.msra.mxu0 0.0
    %2311 = vmatpush.msra.mxu0 0.0
    %2312 = vmatpush.msra.mxu0 0.0
    %2313 = vmatpush.msra.mxu0 0.0
    %2314 = vmatpush.msra.mxu0 0.0
    %2315 = vmatpush.msra.mxu0 0.0
    %2316 = vmatpush.msra.mxu0 0.0
    %2317 = vmatpush.msra.mxu0 %v1624
    %2318 = vmatpush.msra.mxu0 %v1593
    %2319 = vmatpush.msra.mxu0 %v1623
    %2320 = vmatpush.msra.mxu0 %v1592
    %2321 = vmatpush.msra.mxu0 %v1622
    %2322 = vmatpush.msra.mxu0 %v1591
    %2323 = vmatpush.msra.mxu0 %v1621
    %2324 = vmatpush.msra.mxu0 %v1590
    %2325 = vmatmul.f32.gmra.mxu0 %v1660
    %v2326 = vpop.f32.mrf.mxu0
    %v2327 = vadd.f32 %v1641, %v2326
    %2328 = vmatmul.f32.gmra.mxu0 %v1663
    %v2329 = vpop.f32.mrf.mxu0
    %v2330 = vadd.f32 %v1646, %v2329
    %2331 = vmatmul.f32.gmra.mxu0 %v1666
    %v2332 = vpop.f32.mrf.mxu0
    %v2333 = vadd.f32 %v1651, %v2332
    %2334 = vmatmul.f32.gmra.mxu0 %v1669
    %v2335 = vpop.f32.mrf.mxu0
    %v2336 = vadd.f32 %v1656, %v2335
    %2337 = vdwg.mxu0
    %2338 = vmatpush.msra.mxu0 0.0
    %2339 = vmatpush.msra.mxu0 0.0
    %2340 = vmatpush.msra.mxu0 0.0
    %2341 = vmatpush.msra.mxu0 0.0
    %2342 = vmatpush.msra.mxu0 0.0
    %2343 = vmatpush.msra.mxu0 0.0
    %2344 = vmatpush.msra.mxu0 0.0
    %2345 = vmatpush.msra.mxu0 0.0
    %2346 = vmatpush.msra.mxu0 %v1625
    %2347 = vmatpush.msra.mxu0 %v1594
    %2348 = vmatpush.msra.mxu0 %v1624
    %2349 = vmatpush.msra.mxu0 %v1593
    %2350 = vmatpush.msra.mxu0 %v1623
    %2351 = vmatpush.msra.mxu0 %v1592
    %2352 = vmatpush.msra.mxu0 %v1622
    %2353 = vmatpush.msra.mxu0 %v1591
    %2354 = vmatmul.f32.gmra.mxu0 %v1660
    %v2355 = vpop.f32.mrf.mxu0
    %v2356 = vadd.f32 %v1641, %v2355
    %2357 = vmatmul.f32.gmra.mxu0 %v1663
    %v2358 = vpop.f32.mrf.mxu0
    %v2359 = vadd.f32 %v1646, %v2358
    %2360 = vmatmul.f32.gmra.mxu0 %v1666
    %v2361 = vpop.f32.mrf.mxu0
    %v2362 = vadd.f32 %v1651, %v2361
    %2363 = vmatmul.f32.gmra.mxu0 %v1669
    %v2364 = vpop.f32.mrf.mxu0
    %v2365 = vadd.f32 %v1656, %v2364
    %2366 = vdwg.mxu0
    %2367 = vmatpush.msra.mxu0 0.0
    %2368 = vmatpush.msra.mxu0 0.0
    %2369 = vmatpush.msra.mxu0 0.0
    %2370 = vmatpush.msra.mxu0 0.0
    %2371 = vmatpush.msra.mxu0 0.0
    %2372 = vmatpush.msra.mxu0 0.0
    %2373 = vmatpush.msra.mxu0 0.0
    %2374 = vmatpush.msra.mxu0 0.0
    %2375 = vmatpush.msra.mxu0 %v1626
    %2376 = vmatpush.msra.mxu0 %v1595
    %2377 = vmatpush.msra.mxu0 %v1625
    %2378 = vmatpush.msra.mxu0 %v1594
    %2379 = vmatpush.msra.mxu0 %v1624
    %2380 = vmatpush.msra.mxu0 %v1593
    %2381 = vmatpush.msra.mxu0 %v1623
    %2382 = vmatpush.msra.mxu0 %v1592
    %2383 = vmatmul.f32.gmra.mxu0 %v1660
    %v2384 = vpop.f32.mrf.mxu0
    %v2385 = vadd.f32 %v1641, %v2384
    %2386 = vmatmul.f32.gmra.mxu0 %v1663
    %v2387 = vpop.f32.mrf.mxu0
    %v2388 = vadd.f32 %v1646, %v2387
    %2389 = vmatmul.f32.gmra.mxu0 %v1666
    %v2390 = vpop.f32.mrf.mxu0
    %v2391 = vadd.f32 %v1651, %v2390
    %2392 = vmatmul.f32.gmra.mxu0 %v1669
    %v2393 = vpop.f32.mrf.mxu0
    %v2394 = vadd.f32 %v1656, %v2393
    %2395 = vdwg.mxu0
    %2396 = vmatpush.msra.mxu0 0.0
    %2397 = vmatpush.msra.mxu0 0.0
    %2398 = vmatpush.msra.mxu0 0.0
    %2399 = vmatpush.msra.mxu0 0.0
    %2400 = vmatpush.msra.mxu0 0.0
    %2401 = vmatpush.msra.mxu0 0.0
    %2402 = vmatpush.msra.mxu0 0.0
    %2403 = vmatpush.msra.mxu0 0.0
    %2404 = vmatpush.msra.mxu0 %v1627
    %2405 = vmatpush.msra.mxu0 %v1596
    %2406 = vmatpush.msra.mxu0 %v1626
    %2407 = vmatpush.msra.mxu0 %v1595
    %2408 = vmatpush.msra.mxu0 %v1625
    %2409 = vmatpush.msra.mxu0 %v1594
    %2410 = vmatpush.msra.mxu0 %v1624
    %2411 = vmatpush.msra.mxu0 %v1593
    %2412 = vmatmul.f32.gmra.mxu0 %v1660
    %v2413 = vpop.f32.mrf.mxu0
    %v2414 = vadd.f32 %v1641, %v2413
    %2415 = vmatmul.f32.gmra.mxu0 %v1663
    %v2416 = vpop.f32.mrf.mxu0
    %v2417 = vadd.f32 %v1646, %v2416
    %2418 = vmatmul.f32.gmra.mxu0 %v1666
    %v2419 = vpop.f32.mrf.mxu0
    %v2420 = vadd.f32 %v1651, %v2419
    %2421 = vmatmul.f32.gmra.mxu0 %v1669
    %v2422 = vpop.f32.mrf.mxu0
    %v2423 = vadd.f32 %v1656, %v2422
    %2424 = vdwg.mxu0
    %2425 = vmatpush.msra.mxu0 0.0
    %2426 = vmatpush.msra.mxu0 0.0
    %2427 = vmatpush.msra.mxu0 0.0
    %2428 = vmatpush.msra.mxu0 0.0
    %2429 = vmatpush.msra.mxu0 0.0
    %2430 = vmatpush.msra.mxu0 0.0
    %2431 = vmatpush.msra.mxu0 0.0
    %2432 = vmatpush.msra.mxu0 0.0
    %2433 = vmatpush.msra.mxu0 %v1628
    %2434 = vmatpush.msra.mxu0 %v1597
    %2435 = vmatpush.msra.mxu0 %v1627
    %2436 = vmatpush.msra.mxu0 %v1596
    %2437 = vmatpush.msra.mxu0 %v1626
    %2438 = vmatpush.msra.mxu0 %v1595
    %2439 = vmatpush.msra.mxu0 %v1625
    %2440 = vmatpush.msra.mxu0 %v1594
    %2441 = vmatmul.f32.gmra.mxu0 %v1660
    %v2442 = vpop.f32.mrf.mxu0
    %v2443 = vadd.f32 %v1641, %v2442
    %2444 = vmatmul.f32.gmra.mxu0 %v1663
    %v2445 = vpop.f32.mrf.mxu0
    %v2446 = vadd.f32 %v1646, %v2445
    %2447 = vmatmul.f32.gmra.mxu0 %v1666
    %v2448 = vpop.f32.mrf.mxu0
    %v2449 = vadd.f32 %v1651, %v2448
    %2450 = vmatmul.f32.gmra.mxu0 %v1669
    %v2451 = vpop.f32.mrf.mxu0
    %v2452 = vadd.f32 %v1656, %v2451
    %2453 = vdwg.mxu0
    %2454 = vmatpush.msra.mxu0 0.0
    %2455 = vmatpush.msra.mxu0 0.0
    %2456 = vmatpush.msra.mxu0 0.0
    %2457 = vmatpush.msra.mxu0 0.0
    %2458 = vmatpush.msra.mxu0 0.0
    %2459 = vmatpush.msra.mxu0 0.0
    %2460 = vmatpush.msra.mxu0 0.0
    %2461 = vmatpush.msra.mxu0 0.0
    %2462 = vmatpush.msra.mxu0 %v1629
    %2463 = vmatpush.msra.mxu0 %v1598
    %2464 = vmatpush.msra.mxu0 %v1628
    %2465 = vmatpush.msra.mxu0 %v1597
    %2466 = vmatpush.msra.mxu0 %v1627
    %2467 = vmatpush.msra.mxu0 %v1596
    %2468 = vmatpush.msra.mxu0 %v1626
    %2469 = vmatpush.msra.mxu0 %v1595
    %2470 = vmatmul.f32.gmra.mxu0 %v1660
    %v2471 = vpop.f32.mrf.mxu0
    %v2472 = vadd.f32 %v1641, %v2471
    %2473 = vmatmul.f32.gmra.mxu0 %v1663
    %v2474 = vpop.f32.mrf.mxu0
    %v2475 = vadd.f32 %v1646, %v2474
    %2476 = vmatmul.f32.gmra.mxu0 %v1666
    %v2477 = vpop.f32.mrf.mxu0
    %v2478 = vadd.f32 %v1651, %v2477
    %2479 = vmatmul.f32.gmra.mxu0 %v1669
    %v2480 = vpop.f32.mrf.mxu0
    %v2481 = vadd.f32 %v1656, %v2480
    %2482 = vdwg.mxu0
    %vm2483 = vcmp.gt.f32.partialorder %v1689, 0.0
    %vm2484 = vcmp.gt.f32.partialorder %v1718, 0.0
    %vm2485 = vcmp.gt.f32.partialorder %v1747, 0.0
    %vm2486 = vcmp.gt.f32.partialorder %v1776, 0.0
    %vm2487 = vcmp.gt.f32.partialorder %v1805, 0.0
    %vm2488 = vcmp.gt.f32.partialorder %v1834, 0.0
    %vm2489 = vcmp.gt.f32.partialorder %v1863, 0.0
    %vm2490 = vcmp.gt.f32.partialorder %v1892, 0.0
    %vm2491 = vcmp.gt.f32.partialorder %v1921, 0.0
    %vm2492 = vcmp.gt.f32.partialorder %v1950, 0.0
    %vm2493 = vcmp.gt.f32.partialorder %v1979, 0.0
    %vm2494 = vcmp.gt.f32.partialorder %v2008, 0.0
    %vm2495 = vcmp.gt.f32.partialorder %v2037, 0.0
    %vm2496 = vcmp.gt.f32.partialorder %v2066, 0.0
    %vm2497 = vcmp.gt.f32.partialorder %v2095, 0.0
    %vm2498 = vcmp.gt.f32.partialorder %v2124, 0.0
    %vm2499 = vcmp.gt.f32.partialorder %v2153, 0.0
    %vm2500 = vcmp.gt.f32.partialorder %v2182, 0.0
    %vm2501 = vcmp.gt.f32.partialorder %v2211, 0.0
    %vm2502 = vcmp.gt.f32.partialorder %v2240, 0.0
    %vm2503 = vcmp.gt.f32.partialorder %v2269, 0.0
    %vm2504 = vcmp.gt.f32.partialorder %v2298, 0.0
    %vm2505 = vcmp.gt.f32.partialorder %v2327, 0.0
    %vm2506 = vcmp.gt.f32.partialorder %v2356, 0.0
    %vm2507 = vcmp.gt.f32.partialorder %v2385, 0.0
    %vm2508 = vcmp.gt.f32.partialorder %v2414, 0.0
    %vm2509 = vcmp.gt.f32.partialorder %v2443, 0.0
    %vm2510 = vcmp.gt.f32.partialorder %v2472, 0.0
    %vm2511 = vcmp.gt.f32.partialorder %v1692, 0.0
    %vm2512 = vcmp.gt.f32.partialorder %v1721, 0.0
    %vm2513 = vcmp.gt.f32.partialorder %v1750, 0.0
    %vm2514 = vcmp.gt.f32.partialorder %v1779, 0.0
    %vm2515 = vcmp.gt.f32.partialorder %v1808, 0.0
    %vm2516 = vcmp.gt.f32.partialorder %v1837, 0.0
    %vm2517 = vcmp.gt.f32.partialorder %v1866, 0.0
    %vm2518 = vcmp.gt.f32.partialorder %v1895, 0.0
    %vm2519 = vcmp.gt.f32.partialorder %v1924, 0.0
    %vm2520 = vcmp.gt.f32.partialorder %v1953, 0.0
    %vm2521 = vcmp.gt.f32.partialorder %v1982, 0.0
    %vm2522 = vcmp.gt.f32.partialorder %v2011, 0.0
    %vm2523 = vcmp.gt.f32.partialorder %v2040, 0.0
    %vm2524 = vcmp.gt.f32.partialorder %v2069, 0.0
    %vm2525 = vcmp.gt.f32.partialorder %v2098, 0.0
    %vm2526 = vcmp.gt.f32.partialorder %v2127, 0.0
    %vm2527 = vcmp.gt.f32.partialorder %v2156, 0.0
    %vm2528 = vcmp.gt.f32.partialorder %v2185, 0.0
    %vm2529 = vcmp.gt.f32.partialorder %v2214, 0.0
    %vm2530 = vcmp.gt.f32.partialorder %v2243, 0.0
    %vm2531 = vcmp.gt.f32.partialorder %v2272, 0.0
    %vm2532 = vcmp.gt.f32.partialorder %v2301, 0.0
    %vm2533 = vcmp.gt.f32.partialorder %v2330, 0.0
    %vm2534 = vcmp.gt.f32.partialorder %v2359, 0.0
    %vm2535 = vcmp.gt.f32.partialorder %v2388, 0.0
    %vm2536 = vcmp.gt.f32.partialorder %v2417, 0.0
    %vm2537 = vcmp.gt.f32.partialorder %v2446, 0.0
    %vm2538 = vcmp.gt.f32.partialorder %v2475, 0.0
    %vm2539 = vcmp.gt.f32.partialorder %v1695, 0.0
    %vm2540 = vcmp.gt.f32.partialorder %v1724, 0.0
    %vm2541 = vcmp.gt.f32.partialorder %v1753, 0.0
    %vm2542 = vcmp.gt.f32.partialorder %v1782, 0.0
    %vm2543 = vcmp.gt.f32.partialorder %v1811, 0.0
    %vm2544 = vcmp.gt.f32.partialorder %v1840, 0.0
    %vm2545 = vcmp.gt.f32.partialorder %v1869, 0.0
    %vm2546 = vcmp.gt.f32.partialorder %v1898, 0.0
    %vm2547 = vcmp.gt.f32.partialorder %v1927, 0.0
    %vm2548 = vcmp.gt.f32.partialorder %v1956, 0.0
    %vm2549 = vcmp.gt.f32.partialorder %v1985, 0.0
    %vm2550 = vcmp.gt.f32.partialorder %v2014, 0.0
    %vm2551 = vcmp.gt.f32.partialorder %v2043, 0.0
    %vm2552 = vcmp.gt.f32.partialorder %v2072, 0.0
    %vm2553 = vcmp.gt.f32.partialorder %v2101, 0.0
    %vm2554 = vcmp.gt.f32.partialorder %v2130, 0.0
    %vm2555 = vcmp.gt.f32.partialorder %v2159, 0.0
    %vm2556 = vcmp.gt.f32.partialorder %v2188, 0.0
    %vm2557 = vcmp.gt.f32.partialorder %v2217, 0.0
    %vm2558 = vcmp.gt.f32.partialorder %v2246, 0.0
    %vm2559 = vcmp.gt.f32.partialorder %v2275, 0.0
    %vm2560 = vcmp.gt.f32.partialorder %v2304, 0.0
    %vm2561 = vcmp.gt.f32.partialorder %v2333, 0.0
    %vm2562 = vcmp.gt.f32.partialorder %v2362, 0.0
    %vm2563 = vcmp.gt.f32.partialorder %v2391, 0.0
    %vm2564 = vcmp.gt.f32.partialorder %v2420, 0.0
    %vm2565 = vcmp.gt.f32.partialorder %v2449, 0.0
    %vm2566 = vcmp.gt.f32.partialorder %v2478, 0.0
    %vm2567 = vcmp.gt.f32.partialorder %v1698, 0.0
    %vm2568 = vcmp.gt.f32.partialorder %v1727, 0.0
    %vm2569 = vcmp.gt.f32.partialorder %v1756, 0.0
    %vm2570 = vcmp.gt.f32.partialorder %v1785, 0.0
    %vm2571 = vcmp.gt.f32.partialorder %v1814, 0.0
    %vm2572 = vcmp.gt.f32.partialorder %v1843, 0.0
    %vm2573 = vcmp.gt.f32.partialorder %v1872, 0.0
    %vm2574 = vcmp.gt.f32.partialorder %v1901, 0.0
    %vm2575 = vcmp.gt.f32.partialorder %v1930, 0.0
    %vm2576 = vcmp.gt.f32.partialorder %v1959, 0.0
    %vm2577 = vcmp.gt.f32.partialorder %v1988, 0.0
    %vm2578 = vcmp.gt.f32.partialorder %v2017, 0.0
    %vm2579 = vcmp.gt.f32.partialorder %v2046, 0.0
    %vm2580 = vcmp.gt.f32.partialorder %v2075, 0.0
    %vm2581 = vcmp.gt.f32.partialorder %v2104, 0.0
    %vm2582 = vcmp.gt.f32.partialorder %v2133, 0.0
    %vm2583 = vcmp.gt.f32.partialorder %v2162, 0.0
    %vm2584 = vcmp.gt.f32.partialorder %v2191, 0.0
    %vm2585 = vcmp.gt.f32.partialorder %v2220, 0.0
    %vm2586 = vcmp.gt.f32.partialorder %v2249, 0.0
    %vm2587 = vcmp.gt.f32.partialorder %v2278, 0.0
    %vm2588 = vcmp.gt.f32.partialorder %v2307, 0.0
    %vm2589 = vcmp.gt.f32.partialorder %v2336, 0.0
    %vm2590 = vcmp.gt.f32.partialorder %v2365, 0.0
    %vm2591 = vcmp.gt.f32.partialorder %v2394, 0.0
    %vm2592 = vcmp.gt.f32.partialorder %v2423, 0.0
    %vm2593 = vcmp.gt.f32.partialorder %v2452, 0.0
    %vm2594 = vcmp.gt.f32.partialorder %v2481, 0.0
    %v2595 = vmin.f32 %v1689, 0.0
    %v2596 = vmin.f32 %v1718, 0.0
    %v2597 = vmin.f32 %v1747, 0.0
    %v2598 = vmin.f32 %v1776, 0.0
    %v2599 = vmin.f32 %v1805, 0.0
    %v2600 = vmin.f32 %v1834, 0.0
    %v2601 = vmin.f32 %v1863, 0.0
    %v2602 = vmin.f32 %v1892, 0.0
    %v2603 = vmin.f32 %v1921, 0.0
    %v2604 = vmin.f32 %v1950, 0.0
    %v2605 = vmin.f32 %v1979, 0.0
    %v2606 = vmin.f32 %v2008, 0.0
    %v2607 = vmin.f32 %v2037, 0.0
    %v2608 = vmin.f32 %v2066, 0.0
    %v2609 = vmin.f32 %v2095, 0.0
    %v2610 = vmin.f32 %v2124, 0.0
    %v2611 = vmin.f32 %v2153, 0.0
    %v2612 = vmin.f32 %v2182, 0.0
    %v2613 = vmin.f32 %v2211, 0.0
    %v2614 = vmin.f32 %v2240, 0.0
    %v2615 = vmin.f32 %v2269, 0.0
    %v2616 = vmin.f32 %v2298, 0.0
    %v2617 = vmin.f32 %v2327, 0.0
    %v2618 = vmin.f32 %v2356, 0.0
    %v2619 = vmin.f32 %v2385, 0.0
    %v2620 = vmin.f32 %v2414, 0.0
    %v2621 = vmin.f32 %v2443, 0.0
    %v2622 = vmin.f32 %v2472, 0.0
    %v2623 = vmin.f32 %v1692, 0.0
    %v2624 = vmin.f32 %v1721, 0.0
    %v2625 = vmin.f32 %v1750, 0.0
    %v2626 = vmin.f32 %v1779, 0.0
    %v2627 = vmin.f32 %v1808, 0.0
    %v2628 = vmin.f32 %v1837, 0.0
    %v2629 = vmin.f32 %v1866, 0.0
    %v2630 = vmin.f32 %v1895, 0.0
    %v2631 = vmin.f32 %v1924, 0.0
    %v2632 = vmin.f32 %v1953, 0.0
    %v2633 = vmin.f32 %v1982, 0.0
    %v2634 = vmin.f32 %v2011, 0.0
    %v2635 = vmin.f32 %v2040, 0.0
    %v2636 = vmin.f32 %v2069, 0.0
    %v2637 = vmin.f32 %v2098, 0.0
    %v2638 = vmin.f32 %v2127, 0.0
    %v2639 = vmin.f32 %v2156, 0.0
    %v2640 = vmin.f32 %v2185, 0.0
    %v2641 = vmin.f32 %v2214, 0.0
    %v2642 = vmin.f32 %v2243, 0.0
    %v2643 = vmin.f32 %v2272, 0.0
    %v2644 = vmin.f32 %v2301, 0.0
    %v2645 = vmin.f32 %v2330, 0.0
    %v2646 = vmin.f32 %v2359, 0.0
    %v2647 = vmin.f32 %v2388, 0.0
    %v2648 = vmin.f32 %v2417, 0.0
    %v2649 = vmin.f32 %v2446, 0.0
    %v2650 = vmin.f32 %v2475, 0.0
    %v2651 = vmin.f32 %v1695, 0.0
    %v2652 = vmin.f32 %v1724, 0.0
    %v2653 = vmin.f32 %v1753, 0.0
    %v2654 = vmin.f32 %v1782, 0.0
    %v2655 = vmin.f32 %v1811, 0.0
    %v2656 = vmin.f32 %v1840, 0.0
    %v2657 = vmin.f32 %v1869, 0.0
    %v2658 = vmin.f32 %v1898, 0.0
    %v2659 = vmin.f32 %v1927, 0.0
    %v2660 = vmin.f32 %v1956, 0.0
    %v2661 = vmin.f32 %v1985, 0.0
    %v2662 = vmin.f32 %v2014, 0.0
    %v2663 = vmin.f32 %v2043, 0.0
    %v2664 = vmin.f32 %v2072, 0.0
    %v2665 = vmin.f32 %v2101, 0.0
    %v2666 = vmin.f32 %v2130, 0.0
    %v2667 = vmin.f32 %v2159, 0.0
    %v2668 = vmin.f32 %v2188, 0.0
    %v2669 = vmin.f32 %v2217, 0.0
    %v2670 = vmin.f32 %v2246, 0.0
    %v2671 = vmin.f32 %v2275, 0.0
    %v2672 = vmin.f32 %v2304, 0.0
    %v2673 = vmin.f32 %v2333, 0.0
    %v2674 = vmin.f32 %v2362, 0.0
    %v2675 = vmin.f32 %v2391, 0.0
    %v2676 = vmin.f32 %v2420, 0.0
    %v2677 = vmin.f32 %v2449, 0.0
    %v2678 = vmin.f32 %v2478, 0.0
    %v2679 = vmin.f32 %v1698, 0.0
    %v2680 = vmin.f32 %v1727, 0.0
    %v2681 = vmin.f32 %v1756, 0.0
    %v2682 = vmin.f32 %v1785, 0.0
    %v2683 = vmin.f32 %v1814, 0.0
    %v2684 = vmin.f32 %v1843, 0.0
    %v2685 = vmin.f32 %v1872, 0.0
    %v2686 = vmin.f32 %v1901, 0.0
    %v2687 = vmin.f32 %v1930, 0.0
    %v2688 = vmin.f32 %v1959, 0.0
    %v2689 = vmin.f32 %v1988, 0.0
    %v2690 = vmin.f32 %v2017, 0.0
    %v2691 = vmin.f32 %v2046, 0.0
    %v2692 = vmin.f32 %v2075, 0.0
    %v2693 = vmin.f32 %v2104, 0.0
    %v2694 = vmin.f32 %v2133, 0.0
    %v2695 = vmin.f32 %v2162, 0.0
    %v2696 = vmin.f32 %v2191, 0.0
    %v2697 = vmin.f32 %v2220, 0.0
    %v2698 = vmin.f32 %v2249, 0.0
    %v2699 = vmin.f32 %v2278, 0.0
    %v2700 = vmin.f32 %v2307, 0.0
    %v2701 = vmin.f32 %v2336, 0.0
    %v2702 = vmin.f32 %v2365, 0.0
    %v2703 = vmin.f32 %v2394, 0.0
    %v2704 = vmin.f32 %v2423, 0.0
    %v2705 = vmin.f32 %v2452, 0.0
    %v2706 = vmin.f32 %v2481, 0.0
    %v2707 = vmul.f32 %v2595, 1.442695
    %v2708 = vpow.pop %v2707
    %v2709 = vmul.f32 %v2596, 1.442695
    %v2710 = vpow.pop %v2709
    %v2711 = vmul.f32 %v2597, 1.442695
    %v2712 = vpow.pop %v2711
    %v2713 = vmul.f32 %v2598, 1.442695
    %v2714 = vpow.pop %v2713
    %v2715 = vmul.f32 %v2599, 1.442695
    %v2716 = vpow.pop %v2715
    %v2717 = vmul.f32 %v2600, 1.442695
    %v2718 = vpow.pop %v2717
    %v2719 = vmul.f32 %v2601, 1.442695
    %v2720 = vpow.pop %v2719
    %v2721 = vmul.f32 %v2602, 1.442695
    %v2722 = vpow.pop %v2721
    %v2723 = vmul.f32 %v2603, 1.442695
    %v2724 = vpow.pop %v2723
    %v2725 = vmul.f32 %v2604, 1.442695
    %v2726 = vpow.pop %v2725
    %v2727 = vmul.f32 %v2605, 1.442695
    %v2728 = vpow.pop %v2727
    %v2729 = vmul.f32 %v2606, 1.442695
    %v2730 = vpow.pop %v2729
    %v2731 = vmul.f32 %v2607, 1.442695
    %v2732 = vpow.pop %v2731
    %v2733 = vmul.f32 %v2608, 1.442695
    %v2734 = vpow.pop %v2733
    %v2735 = vmul.f32 %v2609, 1.442695
    %v2736 = vpow.pop %v2735
    %v2737 = vmul.f32 %v2610, 1.442695
    %v2738 = vpow.pop %v2737
    %v2739 = vmul.f32 %v2611, 1.442695
    %v2740 = vpow.pop %v2739
    %v2741 = vmul.f32 %v2612, 1.442695
    %v2742 = vpow.pop %v2741
    %v2743 = vmul.f32 %v2613, 1.442695
    %v2744 = vpow.pop %v2743
    %v2745 = vmul.f32 %v2614, 1.442695
    %v2746 = vpow.pop %v2745
    %v2747 = vmul.f32 %v2615, 1.442695
    %v2748 = vpow.pop %v2747
    %v2749 = vmul.f32 %v2616, 1.442695
    %v2750 = vpow.pop %v2749
    %v2751 = vmul.f32 %v2617, 1.442695
    %v2752 = vpow.pop %v2751
    %v2753 = vmul.f32 %v2618, 1.442695
    %v2754 = vpow.pop %v2753
    %v2755 = vmul.f32 %v2619, 1.442695
    %v2756 = vpow.pop %v2755
    %v2757 = vmul.f32 %v2620, 1.442695
    %v2758 = vpow.pop %v2757
    %v2759 = vmul.f32 %v2621, 1.442695
    %v2760 = vpow.pop %v2759
    %v2761 = vmul.f32 %v2622, 1.442695
    %v2762 = vpow.pop %v2761
    %v2763 = vmul.f32 %v2623, 1.442695
    %v2764 = vpow.pop %v2763
    %v2765 = vmul.f32 %v2624, 1.442695
    %v2766 = vpow.pop %v2765
    %v2767 = vmul.f32 %v2625, 1.442695
    %v2768 = vpow.pop %v2767
    %v2769 = vmul.f32 %v2626, 1.442695
    %v2770 = vpow.pop %v2769
    %v2771 = vmul.f32 %v2627, 1.442695
    %v2772 = vpow.pop %v2771
    %v2773 = vmul.f32 %v2628, 1.442695
    %v2774 = vpow.pop %v2773
    %v2775 = vmul.f32 %v2629, 1.442695
    %v2776 = vpow.pop %v2775
    %v2777 = vmul.f32 %v2630, 1.442695
    %v2778 = vpow.pop %v2777
    %v2779 = vmul.f32 %v2631, 1.442695
    %v2780 = vpow.pop %v2779
    %v2781 = vmul.f32 %v2632, 1.442695
    %v2782 = vpow.pop %v2781
    %v2783 = vmul.f32 %v2633, 1.442695
    %v2784 = vpow.pop %v2783
    %v2785 = vmul.f32 %v2634, 1.442695
    %v2786 = vpow.pop %v2785
    %v2787 = vmul.f32 %v2635, 1.442695
    %v2788 = vpow.pop %v2787
    %v2789 = vmul.f32 %v2636, 1.442695
    %v2790 = vpow.pop %v2789
    %v2791 = vmul.f32 %v2637, 1.442695
    %v2792 = vpow.pop %v2791
    %v2793 = vmul.f32 %v2638, 1.442695
    %v2794 = vpow.pop %v2793
    %v2795 = vmul.f32 %v2639, 1.442695
    %v2796 = vpow.pop %v2795
    %v2797 = vmul.f32 %v2640, 1.442695
    %v2798 = vpow.pop %v2797
    %v2799 = vmul.f32 %v2641, 1.442695
    %v2800 = vpow.pop %v2799
    %v2801 = vmul.f32 %v2642, 1.442695
    %v2802 = vpow.pop %v2801
    %v2803 = vmul.f32 %v2643, 1.442695
    %v2804 = vpow.pop %v2803
    %v2805 = vmul.f32 %v2644, 1.442695
    %v2806 = vpow.pop %v2805
    %v2807 = vmul.f32 %v2645, 1.442695
    %v2808 = vpow.pop %v2807
    %v2809 = vmul.f32 %v2646, 1.442695
    %v2810 = vpow.pop %v2809
    %v2811 = vmul.f32 %v2647, 1.442695
    %v2812 = vpow.pop %v2811
    %v2813 = vmul.f32 %v2648, 1.442695
    %v2814 = vpow.pop %v2813
    %v2815 = vmul.f32 %v2649, 1.442695
    %v2816 = vpow.pop %v2815
    %v2817 = vmul.f32 %v2650, 1.442695
    %v2818 = vpow.pop %v2817
    %v2819 = vmul.f32 %v2651, 1.442695
    %v2820 = vpow.pop %v2819
    %v2821 = vmul.f32 %v2652, 1.442695
    %v2822 = vpow.pop %v2821
    %v2823 = vmul.f32 %v2653, 1.442695
    %v2824 = vpow.pop %v2823
    %v2825 = vmul.f32 %v2654, 1.442695
    %v2826 = vpow.pop %v2825
    %v2827 = vmul.f32 %v2655, 1.442695
    %v2828 = vpow.pop %v2827
    %v2829 = vmul.f32 %v2656, 1.442695
    %v2830 = vpow.pop %v2829
    %v2831 = vmul.f32 %v2657, 1.442695
    %v2832 = vpow.pop %v2831
    %v2833 = vmul.f32 %v2658, 1.442695
    %v2834 = vpow.pop %v2833
    %v2835 = vmul.f32 %v2659, 1.442695
    %v2836 = vpow.pop %v2835
    %v2837 = vmul.f32 %v2660, 1.442695
    %v2838 = vpow.pop %v2837
    %v2839 = vmul.f32 %v2661, 1.442695
    %v2840 = vpow.pop %v2839
    %v2841 = vmul.f32 %v2662, 1.442695
    %v2842 = vpow.pop %v2841
    %v2843 = vmul.f32 %v2663, 1.442695
    %v2844 = vpow.pop %v2843
    %v2845 = vmul.f32 %v2664, 1.442695
    %v2846 = vpow.pop %v2845
    %v2847 = vmul.f32 %v2665, 1.442695
    %v2848 = vpow.pop %v2847
    %v2849 = vmul.f32 %v2666, 1.442695
    %v2850 = vpow.pop %v2849
    %v2851 = vmul.f32 %v2667, 1.442695
    %v2852 = vpow.pop %v2851
    %v2853 = vmul.f32 %v2668, 1.442695
    %v2854 = vpow.pop %v2853
    %v2855 = vmul.f32 %v2669, 1.442695
    %v2856 = vpow.pop %v2855
    %v2857 = vmul.f32 %v2670, 1.442695
    %v2858 = vpow.pop %v2857
    %v2859 = vmul.f32 %v2671, 1.442695
    %v2860 = vpow.pop %v2859
    %v2861 = vmul.f32 %v2672, 1.442695
    %v2862 = vpow.pop %v2861
    %v2863 = vmul.f32 %v2673, 1.442695
    %v2864 = vpow.pop %v2863
    %v2865 = vmul.f32 %v2674, 1.442695
    %v2866 = vpow.pop %v2865
    %v2867 = vmul.f32 %v2675, 1.442695
    %v2868 = vpow.pop %v2867
    %v2869 = vmul.f32 %v2676, 1.442695
    %v2870 = vpow.pop %v2869
    %v2871 = vmul.f32 %v2677, 1.442695
    %v2872 = vpow.pop %v2871
    %v2873 = vmul.f32 %v2678, 1.442695
    %v2874 = vpow.pop %v2873
    %v2875 = vmul.f32 %v2679, 1.442695
    %v2876 = vpow.pop %v2875
    %v2877 = vmul.f32 %v2680, 1.442695
    %v2878 = vpow.pop %v2877
    %v2879 = vmul.f32 %v2681, 1.442695
    %v2880 = vpow.pop %v2879
    %v2881 = vmul.f32 %v2682, 1.442695
    %v2882 = vpow.pop %v2881
    %v2883 = vmul.f32 %v2683, 1.442695
    %v2884 = vpow.pop %v2883
    %v2885 = vmul.f32 %v2684, 1.442695
    %v2886 = vpow.pop %v2885
    %v2887 = vmul.f32 %v2685, 1.442695
    %v2888 = vpow.pop %v2887
    %v2889 = vmul.f32 %v2686, 1.442695
    %v2890 = vpow.pop %v2889
    %v2891 = vmul.f32 %v2687, 1.442695
    %v2892 = vpow.pop %v2891
    %v2893 = vmul.f32 %v2688, 1.442695
    %v2894 = vpow.pop %v2893
    %v2895 = vmul.f32 %v2689, 1.442695
    %v2896 = vpow.pop %v2895
    %v2897 = vmul.f32 %v2690, 1.442695
    %v2898 = vpow.pop %v2897
    %v2899 = vmul.f32 %v2691, 1.442695
    %v2900 = vpow.pop %v2899
    %v2901 = vmul.f32 %v2692, 1.442695
    %v2902 = vpow.pop %v2901
    %v2903 = vmul.f32 %v2693, 1.442695
    %v2904 = vpow.pop %v2903
    %v2905 = vmul.f32 %v2694, 1.442695
    %v2906 = vpow.pop %v2905
    %v2907 = vmul.f32 %v2695, 1.442695
    %v2908 = vpow.pop %v2907
    %v2909 = vmul.f32 %v2696, 1.442695
    %v2910 = vpow.pop %v2909
    %v2911 = vmul.f32 %v2697, 1.442695
    %v2912 = vpow.pop %v2911
    %v2913 = vmul.f32 %v2698, 1.442695
    %v2914 = vpow.pop %v2913
    %v2915 = vmul.f32 %v2699, 1.442695
    %v2916 = vpow.pop %v2915
    %v2917 = vmul.f32 %v2700, 1.442695
    %v2918 = vpow.pop %v2917
    %v2919 = vmul.f32 %v2701, 1.442695
    %v2920 = vpow.pop %v2919
    %v2921 = vmul.f32 %v2702, 1.442695
    %v2922 = vpow.pop %v2921
    %v2923 = vmul.f32 %v2703, 1.442695
    %v2924 = vpow.pop %v2923
    %v2925 = vmul.f32 %v2704, 1.442695
    %v2926 = vpow.pop %v2925
    %v2927 = vmul.f32 %v2705, 1.442695
    %v2928 = vpow.pop %v2927
    %v2929 = vmul.f32 %v2706, 1.442695
    %v2930 = vpow.pop %v2929
    %v2931 = vsub.f32 %v2708, 1.0
    %v2932 = vsub.f32 %v2710, 1.0
    %v2933 = vsub.f32 %v2712, 1.0
    %v2934 = vsub.f32 %v2714, 1.0
    %v2935 = vsub.f32 %v2716, 1.0
    %v2936 = vsub.f32 %v2718, 1.0
    %v2937 = vsub.f32 %v2720, 1.0
    %v2938 = vsub.f32 %v2722, 1.0
    %v2939 = vsub.f32 %v2724, 1.0
    %v2940 = vsub.f32 %v2726, 1.0
    %v2941 = vsub.f32 %v2728, 1.0
    %v2942 = vsub.f32 %v2730, 1.0
    %v2943 = vsub.f32 %v2732, 1.0
    %v2944 = vsub.f32 %v2734, 1.0
    %v2945 = vsub.f32 %v2736, 1.0
    %v2946 = vsub.f32 %v2738, 1.0
    %v2947 = vsub.f32 %v2740, 1.0
    %v2948 = vsub.f32 %v2742, 1.0
    %v2949 = vsub.f32 %v2744, 1.0
    %v2950 = vsub.f32 %v2746, 1.0
    %v2951 = vsub.f32 %v2748, 1.0
    %v2952 = vsub.f32 %v2750, 1.0
    %v2953 = vsub.f32 %v2752, 1.0
    %v2954 = vsub.f32 %v2754, 1.0
    %v2955 = vsub.f32 %v2756, 1.0
    %v2956 = vsub.f32 %v2758, 1.0
    %v2957 = vsub.f32 %v2760, 1.0
    %v2958 = vsub.f32 %v2762, 1.0
    %v2959 = vsub.f32 %v2764, 1.0
    %v2960 = vsub.f32 %v2766, 1.0
    %v2961 = vsub.f32 %v2768, 1.0
    %v2962 = vsub.f32 %v2770, 1.0
    %v2963 = vsub.f32 %v2772, 1.0
    %v2964 = vsub.f32 %v2774, 1.0
    %v2965 = vsub.f32 %v2776, 1.0
    %v2966 = vsub.f32 %v2778, 1.0
    %v2967 = vsub.f32 %v2780, 1.0
    %v2968 = vsub.f32 %v2782, 1.0
    %v2969 = vsub.f32 %v2784, 1.0
    %v2970 = vsub.f32 %v2786, 1.0
    %v2971 = vsub.f32 %v2788, 1.0
    %v2972 = vsub.f32 %v2790, 1.0
    %v2973 = vsub.f32 %v2792, 1.0
    %v2974 = vsub.f32 %v2794, 1.0
    %v2975 = vsub.f32 %v2796, 1.0
    %v2976 = vsub.f32 %v2798, 1.0
    %v2977 = vsub.f32 %v2800, 1.0
    %v2978 = vsub.f32 %v2802, 1.0
    %v2979 = vsub.f32 %v2804, 1.0
    %v2980 = vsub.f32 %v2806, 1.0
    %v2981 = vsub.f32 %v2808, 1.0
    %v2982 = vsub.f32 %v2810, 1.0
    %v2983 = vsub.f32 %v2812, 1.0
    %v2984 = vsub.f32 %v2814, 1.0
    %v2985 = vsub.f32 %v2816, 1.0
    %v2986 = vsub.f32 %v2818, 1.0
    %v2987 = vsub.f32 %v2820, 1.0
    %v2988 = vsub.f32 %v2822, 1.0
    %v2989 = vsub.f32 %v2824, 1.0
    %v2990 = vsub.f32 %v2826, 1.0
    %v2991 = vsub.f32 %v2828, 1.0
    %v2992 = vsub.f32 %v2830, 1.0
    %v2993 = vsub.f32 %v2832, 1.0
    %v2994 = vsub.f32 %v2834, 1.0
    %v2995 = vsub.f32 %v2836, 1.0
    %v2996 = vsub.f32 %v2838, 1.0
    %v2997 = vsub.f32 %v2840, 1.0
    %v2998 = vsub.f32 %v2842, 1.0
    %v2999 = vsub.f32 %v2844, 1.0
    %v3000 = vsub.f32 %v2846, 1.0
    %v3001 = vsub.f32 %v2848, 1.0
    %v3002 = vsub.f32 %v2850, 1.0
    %v3003 = vsub.f32 %v2852, 1.0
    %v3004 = vsub.f32 %v2854, 1.0
    %v3005 = vsub.f32 %v2856, 1.0
    %v3006 = vsub.f32 %v2858, 1.0
    %v3007 = vsub.f32 %v2860, 1.0
    %v3008 = vsub.f32 %v2862, 1.0
    %v3009 = vsub.f32 %v2864, 1.0
    %v3010 = vsub.f32 %v2866, 1.0
    %v3011 = vsub.f32 %v2868, 1.0
    %v3012 = vsub.f32 %v2870, 1.0
    %v3013 = vsub.f32 %v2872, 1.0
    %v3014 = vsub.f32 %v2874, 1.0
    %v3015 = vsub.f32 %v2876, 1.0
    %v3016 = vsub.f32 %v2878, 1.0
    %v3017 = vsub.f32 %v2880, 1.0
    %v3018 = vsub.f32 %v2882, 1.0
    %v3019 = vsub.f32 %v2884, 1.0
    %v3020 = vsub.f32 %v2886, 1.0
    %v3021 = vsub.f32 %v2888, 1.0
    %v3022 = vsub.f32 %v2890, 1.0
    %v3023 = vsub.f32 %v2892, 1.0
    %v3024 = vsub.f32 %v2894, 1.0
    %v3025 = vsub.f32 %v2896, 1.0
    %v3026 = vsub.f32 %v2898, 1.0
    %v3027 = vsub.f32 %v2900, 1.0
    %v3028 = vsub.f32 %v2902, 1.0
    %v3029 = vsub.f32 %v2904, 1.0
    %v3030 = vsub.f32 %v2906, 1.0
    %v3031 = vsub.f32 %v2908, 1.0
    %v3032 = vsub.f32 %v2910, 1.0
    %v3033 = vsub.f32 %v2912, 1.0
    %v3034 = vsub.f32 %v2914, 1.0
    %v3035 = vsub.f32 %v2916, 1.0
    %v3036 = vsub.f32 %v2918, 1.0
    %v3037 = vsub.f32 %v2920, 1.0
    %v3038 = vsub.f32 %v2922, 1.0
    %v3039 = vsub.f32 %v2924, 1.0
    %v3040 = vsub.f32 %v2926, 1.0
    %v3041 = vsub.f32 %v2928, 1.0
    %v3042 = vsub.f32 %v2930, 1.0
    %v3043 = vsel %vm2483, %v1689, %v2931
    %v3044 = vsel %vm2484, %v1718, %v2932
    %v3045 = vsel %vm2485, %v1747, %v2933
    %v3046 = vsel %vm2486, %v1776, %v2934
    %v3047 = vsel %vm2487, %v1805, %v2935
    %v3048 = vsel %vm2488, %v1834, %v2936
    %v3049 = vsel %vm2489, %v1863, %v2937
    %v3050 = vsel %vm2490, %v1892, %v2938
    %v3051 = vsel %vm2491, %v1921, %v2939
    %v3052 = vsel %vm2492, %v1950, %v2940
    %v3053 = vsel %vm2493, %v1979, %v2941
    %v3054 = vsel %vm2494, %v2008, %v2942
    %v3055 = vsel %vm2495, %v2037, %v2943
    %v3056 = vsel %vm2496, %v2066, %v2944
    %v3057 = vsel %vm2497, %v2095, %v2945
    %v3058 = vsel %vm2498, %v2124, %v2946
    %v3059 = vsel %vm2499, %v2153, %v2947
    %v3060 = vsel %vm2500, %v2182, %v2948
    %v3061 = vsel %vm2501, %v2211, %v2949
    %v3062 = vsel %vm2502, %v2240, %v2950
    %v3063 = vsel %vm2503, %v2269, %v2951
    %v3064 = vsel %vm2504, %v2298, %v2952
    %v3065 = vsel %vm2505, %v2327, %v2953
    %v3066 = vsel %vm2506, %v2356, %v2954
    %v3067 = vsel %vm2507, %v2385, %v2955
    %v3068 = vsel %vm2508, %v2414, %v2956
    %v3069 = vsel %vm2509, %v2443, %v2957
    %v3070 = vsel %vm2510, %v2472, %v2958
    %v3071 = vsel %vm2511, %v1692, %v2959
    %v3072 = vsel %vm2512, %v1721, %v2960
    %v3073 = vsel %vm2513, %v1750, %v2961
    %v3074 = vsel %vm2514, %v1779, %v2962
    %v3075 = vsel %vm2515, %v1808, %v2963
    %v3076 = vsel %vm2516, %v1837, %v2964
    %v3077 = vsel %vm2517, %v1866, %v2965
    %v3078 = vsel %vm2518, %v1895, %v2966
    %v3079 = vsel %vm2519, %v1924, %v2967
    %v3080 = vsel %vm2520, %v1953, %v2968
    %v3081 = vsel %vm2521, %v1982, %v2969
    %v3082 = vsel %vm2522, %v2011, %v2970
    %v3083 = vsel %vm2523, %v2040, %v2971
    %v3084 = vsel %vm2524, %v2069, %v2972
    %v3085 = vsel %vm2525, %v2098, %v2973
    %v3086 = vsel %vm2526, %v2127, %v2974
    %v3087 = vsel %vm2527, %v2156, %v2975
    %v3088 = vsel %vm2528, %v2185, %v2976
    %v3089 = vsel %vm2529, %v2214, %v2977
    %v3090 = vsel %vm2530, %v2243, %v2978
    %v3091 = vsel %vm2531, %v2272, %v2979
    %v3092 = vsel %vm2532, %v2301, %v2980
    %v3093 = vsel %vm2533, %v2330, %v2981
    %v3094 = vsel %vm2534, %v2359, %v2982
    %v3095 = vsel %vm2535, %v2388, %v2983
    %v3096 = vsel %vm2536, %v2417, %v2984
    %v3097 = vsel %vm2537, %v2446, %v2985
    %v3098 = vsel %vm2538, %v2475, %v2986
    %v3099 = vsel %vm2539, %v1695, %v2987
    %v3100 = vsel %vm2540, %v1724, %v2988
    %v3101 = vsel %vm2541, %v1753, %v2989
    %v3102 = vsel %vm2542, %v1782, %v2990
    %v3103 = vsel %vm2543, %v1811, %v2991
    %v3104 = vsel %vm2544, %v1840, %v2992
    %v3105 = vsel %vm2545, %v1869, %v2993
    %v3106 = vsel %vm2546, %v1898, %v2994
    %v3107 = vsel %vm2547, %v1927, %v2995
    %v3108 = vsel %vm2548, %v1956, %v2996
    %v3109 = vsel %vm2549, %v1985, %v2997
    %v3110 = vsel %vm2550, %v2014, %v2998
    %v3111 = vsel %vm2551, %v2043, %v2999
    %v3112 = vsel %vm2552, %v2072, %v3000
    %v3113 = vsel %vm2553, %v2101, %v3001
    %v3114 = vsel %vm2554, %v2130, %v3002
    %v3115 = vsel %vm2555, %v2159, %v3003
    %v3116 = vsel %vm2556, %v2188, %v3004
    %v3117 = vsel %vm2557, %v2217, %v3005
    %v3118 = vsel %vm2558, %v2246, %v3006
    %v3119 = vsel %vm2559, %v2275, %v3007
    %v3120 = vsel %vm2560, %v2304, %v3008
    %v3121 = vsel %vm2561, %v2333, %v3009
    %v3122 = vsel %vm2562, %v2362, %v3010
    %v3123 = vsel %vm2563, %v2391, %v3011
    %v3124 = vsel %vm2564, %v2420, %v3012
    %v3125 = vsel %vm2565, %v2449, %v3013
    %v3126 = vsel %vm2566, %v2478, %v3014
    %v3127 = vsel %vm2567, %v1698, %v3015
    %v3128 = vsel %vm2568, %v1727, %v3016
    %v3129 = vsel %vm2569, %v1756, %v3017
    %v3130 = vsel %vm2570, %v1785, %v3018
    %v3131 = vsel %vm2571, %v1814, %v3019
    %v3132 = vsel %vm2572, %v1843, %v3020
    %v3133 = vsel %vm2573, %v1872, %v3021
    %v3134 = vsel %vm2574, %v1901, %v3022
    %v3135 = vsel %vm2575, %v1930, %v3023
    %v3136 = vsel %vm2576, %v1959, %v3024
    %v3137 = vsel %vm2577, %v1988, %v3025
    %v3138 = vsel %vm2578, %v2017, %v3026
    %v3139 = vsel %vm2579, %v2046, %v3027
    %v3140 = vsel %vm2580, %v2075, %v3028
    %v3141 = vsel %vm2581, %v2104, %v3029
    %v3142 = vsel %vm2582, %v2133, %v3030
    %v3143 = vsel %vm2583, %v2162, %v3031
    %v3144 = vsel %vm2584, %v2191, %v3032
    %v3145 = vsel %vm2585, %v2220, %v3033
    %v3146 = vsel %vm2586, %v2249, %v3034
    %v3147 = vsel %vm2587, %v2278, %v3035
    %v3148 = vsel %vm2588, %v2307, %v3036
    %v3149 = vsel %vm2589, %v2336, %v3037
    %v3150 = vsel %vm2590, %v2365, %v3038
    %v3151 = vsel %vm2591, %v2394, %v3039
    %v3152 = vsel %vm2592, %v2423, %v3040
    %v3153 = vsel %vm2593, %v2452, %v3041
    %v3154 = vsel %vm2594, %v2481, %v3042
    %v3155 = vmax.f32 %v3043, %v3044
    %v3156 = vmax.f32 %v3071, %v3072
    %v3157 = vmax.f32 %v3099, %v3100
    %v3158 = vmax.f32 %v3127, %v3128
    %v3159 = vmax.f32 %v3155, %v3045
    %v3160 = vmax.f32 %v3156, %v3073
    %v3161 = vmax.f32 %v3157, %v3101
    %v3162 = vmax.f32 %v3158, %v3129
    %v3163 = vmax.f32 %v3159, %v3046
    %v3164 = vmax.f32 %v3160, %v3074
    %v3165 = vmax.f32 %v3161, %v3102
    %v3166 = vmax.f32 %v3162, %v3130
    %v3167 = vmax.f32 %v3047, %v3048
    %v3168 = vmax.f32 %v3075, %v3076
    %v3169 = vmax.f32 %v3103, %v3104
    %v3170 = vmax.f32 %v3131, %v3132
    %v3171 = vmax.f32 %v3167, %v3049
    %v3172 = vmax.f32 %v3168, %v3077
    %v3173 = vmax.f32 %v3169, %v3105
    %v3174 = vmax.f32 %v3170, %v3133
    %v3175 = vmax.f32 %v3171, %v3050
    %v3176 = vmax.f32 %v3172, %v3078
    %v3177 = vmax.f32 %v3173, %v3106
    %v3178 = vmax.f32 %v3174, %v3134
    %v3179 = vmax.f32 %v3051, %v3052
    %v3180 = vmax.f32 %v3079, %v3080
    %v3181 = vmax.f32 %v3107, %v3108
    %v3182 = vmax.f32 %v3135, %v3136
    %v3183 = vmax.f32 %v3179, %v3053
    %v3184 = vmax.f32 %v3180, %v3081
    %v3185 = vmax.f32 %v3181, %v3109
    %v3186 = vmax.f32 %v3182, %v3137
    %v3187 = vmax.f32 %v3183, %v3054
    %v3188 = vmax.f32 %v3184, %v3082
    %v3189 = vmax.f32 %v3185, %v3110
    %v3190 = vmax.f32 %v3186, %v3138
    %v3191 = vmax.f32 %v3055, %v3056
    %v3192 = vmax.f32 %v3083, %v3084
    %v3193 = vmax.f32 %v3111, %v3112
    %v3194 = vmax.f32 %v3139, %v3140
    %v3195 = vmax.f32 %v3191, %v3057
    %v3196 = vmax.f32 %v3192, %v3085
    %v3197 = vmax.f32 %v3193, %v3113
    %v3198 = vmax.f32 %v3194, %v3141
    %v3199 = vmax.f32 %v3195, %v3058
    %v3200 = vmax.f32 %v3196, %v3086
    %v3201 = vmax.f32 %v3197, %v3114
    %v3202 = vmax.f32 %v3198, %v3142
    %v3203 = vmax.f32 %v3059, %v3060
    %v3204 = vmax.f32 %v3087, %v3088
    %v3205 = vmax.f32 %v3115, %v3116
    %v3206 = vmax.f32 %v3143, %v3144
    %v3207 = vmax.f32 %v3203, %v3061
    %v3208 = vmax.f32 %v3204, %v3089
    %v3209 = vmax.f32 %v3205, %v3117
    %v3210 = vmax.f32 %v3206, %v3145
    %v3211 = vmax.f32 %v3207, %v3062
    %v3212 = vmax.f32 %v3208, %v3090
    %v3213 = vmax.f32 %v3209, %v3118
    %v3214 = vmax.f32 %v3210, %v3146
    %v3215 = vmax.f32 %v3063, %v3064
    %v3216 = vmax.f32 %v3091, %v3092
    %v3217 = vmax.f32 %v3119, %v3120
    %v3218 = vmax.f32 %v3147, %v3148
    %v3219 = vmax.f32 %v3215, %v3065
    %v3220 = vmax.f32 %v3216, %v3093
    %v3221 = vmax.f32 %v3217, %v3121
    %v3222 = vmax.f32 %v3218, %v3149
    %v3223 = vmax.f32 %v3219, %v3066
    %v3224 = vmax.f32 %v3220, %v3094
    %v3225 = vmax.f32 %v3221, %v3122
    %v3226 = vmax.f32 %v3222, %v3150
    %v3227 = vmax.f32 %v3067, %v3068
    %v3228 = vmax.f32 %v3095, %v3096
    %v3229 = vmax.f32 %v3123, %v3124
    %v3230 = vmax.f32 %v3151, %v3152
    %v3231 = vmax.f32 %v3227, %v3069
    %v3232 = vmax.f32 %v3228, %v3097
    %v3233 = vmax.f32 %v3229, %v3125
    %v3234 = vmax.f32 %v3230, %v3153
    %v3235 = vmax.f32 %v3231, %v3070
    %v3236 = vmax.f32 %v3232, %v3098
    %v3237 = vmax.f32 %v3233, %v3126
    %v3238 = vmax.f32 %v3234, %v3154
    %v3239 = vld [vmem:[%s5] sm:$0xff]
    %v3240 = vld [vmem:[%s5 + $0x8] sm:$0xff]
    %v3241 = vld [vmem:[%s5 + $0x10] sm:$0xff]
    %v3242 = vld [vmem:[%s5 + $0x18] sm:$0xff]
    %v3243 = vld [vmem:[%s5 + $0x20] sm:$0xff]
    %v3244 = vld [vmem:[%s5 + $0x28] sm:$0xff]
    %v3245 = vld [vmem:[%s5 + $0x30] sm:$0xff]
    %v3246 = vld [vmem:[%s5 + $0x38] sm:$0xff]
    %v3247 = vld [vmem:[%s6] sm:$0xff]
    %v3248 = vld [vmem:[%s6 + $0x8] sm:$0xff]
    %v3249 = vld [vmem:[%s6 + $0x10] sm:$0xff]
    %v3250 = vld [vmem:[%s6 + $0x18] sm:$0xff]
    %3252 = vset.pattern.permute.xlu0 0
    %3253 = vperm.xlu0 %3252, %v3247
    %v3254 = vpop.permute.xlu0 %3253
    %3257 = vset.pattern.permute.xlu0 0
    %3258 = vperm.xlu0 %3257, %v3248
    %v3259 = vpop.permute.xlu0 %3258
    %3262 = vset.pattern.permute.xlu0 0
    %3263 = vperm.xlu0 %3262, %v3249
    %v3264 = vpop.permute.xlu0 %3263
    %3267 = vset.pattern.permute.xlu0 0
    %3268 = vperm.xlu0 %3267, %v3250
    %v3269 = vpop.permute.xlu0 %3268
    %vm3271 = vcmask 785408
    %v3273 = vsel %vm3271, %v3240, 0
    %v3276 = vsel %vm3271, %v3242, 0
    %v3279 = vsel %vm3271, %v3244, 0
    %v3282 = vsel %vm3271, %v3246, 0
    %3284 = vmatpush.msra.mxu0 %v3202
    %3285 = vmatpush.msra.mxu0 %v3201
    %3286 = vmatpush.msra.mxu0 %v3200
    %3287 = vmatpush.msra.mxu0 %v3199
    %3288 = vmatpush.msra.mxu0 %v3190
    %3289 = vmatpush.msra.mxu0 %v3189
    %3290 = vmatpush.msra.mxu0 %v3188
    %3291 = vmatpush.msra.mxu0 %v3187
    %3292 = vmatpush.msra.mxu0 %v3178
    %3293 = vmatpush.msra.mxu0 %v3177
    %3294 = vmatpush.msra.mxu0 %v3176
    %3295 = vmatpush.msra.mxu0 %v3175
    %3296 = vmatpush.msra.mxu0 %v3166
    %3297 = vmatpush.msra.mxu0 %v3165
    %3298 = vmatpush.msra.mxu0 %v3164
    %3299 = vmatpush.msra.mxu0 %v3163
    %3300 = vmatmul.f32.gmra.mxu0 %v3239
    %v3301 = vpop.f32.mrf.mxu0
    %v3302 = vadd.f32 %v3254, %v3301
    %3303 = vmatmul.f32.gmra.mxu0 %v3241
    %v3304 = vpop.f32.mrf.mxu0
    %v3305 = vadd.f32 %v3259, %v3304
    %3306 = vmatmul.f32.gmra.mxu0 %v3243
    %v3307 = vpop.f32.mrf.mxu0
    %v3308 = vadd.f32 %v3264, %v3307
    %3309 = vmatmul.f32.gmra.mxu0 %v3245
    %v3310 = vpop.f32.mrf.mxu0
    %v3311 = vadd.f32 %v3269, %v3310
    %3312 = vdwg.mxu0
    %3313 = vmatpush.msra.mxu0 0.0
    %3314 = vmatpush.msra.mxu0 0.0
    %3315 = vmatpush.msra.mxu0 0.0
    %3316 = vmatpush.msra.mxu0 0.0
    %3317 = vmatpush.msra.mxu0 %v3238
    %3318 = vmatpush.msra.mxu0 %v3237
    %3319 = vmatpush.msra.mxu0 %v3236
    %3320 = vmatpush.msra.mxu0 %v3235
    %3321 = vmatpush.msra.mxu0 %v3226
    %3322 = vmatpush.msra.mxu0 %v3225
    %3323 = vmatpush.msra.mxu0 %v3224
    %3324 = vmatpush.msra.mxu0 %v3223
    %3325 = vmatpush.msra.mxu0 %v3214
    %3326 = vmatpush.msra.mxu0 %v3213
    %3327 = vmatpush.msra.mxu0 %v3212
    %3328 = vmatpush.msra.mxu0 %v3211
    %3329 = vmatmul.f32.gmra.mxu0 %v3273
    %v3330 = vpop.f32.mrf.mxu0
    %v3331 = vadd.f32 %v3302, %v3330
    %3332 = vmatmul.f32.gmra.mxu0 %v3276
    %v3333 = vpop.f32.mrf.mxu0
    %v3334 = vadd.f32 %v3305, %v3333
    %3335 = vmatmul.f32.gmra.mxu0 %v3279
    %v3336 = vpop.f32.mrf.mxu0
    %v3337 = vadd.f32 %v3308, %v3336
    %3338 = vmatmul.f32.gmra.mxu0 %v3282
    %v3339 = vpop.f32.mrf.mxu0
    %v3340 = vadd.f32 %v3311, %v3339
    %3341 = vdwg.mxu0
    %vm3342 = vcmp.gt.f32.partialorder %v3331, 0.0
    %vm3343 = vcmp.gt.f32.partialorder %v3334, 0.0
    %vm3344 = vcmp.gt.f32.partialorder %v3337, 0.0
    %vm3345 = vcmp.gt.f32.partialorder %v3340, 0.0
    %v3346 = vmin.f32 %v3331, 0.0
    %v3347 = vmin.f32 %v3334, 0.0
    %v3348 = vmin.f32 %v3337, 0.0
    %v3349 = vmin.f32 %v3340, 0.0
    %v3350 = vmul.f32 %v3346, 1.442695
    %v3351 = vpow.pop %v3350
    %v3352 = vmul.f32 %v3347, 1.442695
    %v3353 = vpow.pop %v3352
    %v3354 = vmul.f32 %v3348, 1.442695
    %v3355 = vpow.pop %v3354
    %v3356 = vmul.f32 %v3349, 1.442695
    %v3357 = vpow.pop %v3356
    %v3358 = vsub.f32 %v3351, 1.0
    %v3359 = vsub.f32 %v3353, 1.0
    %v3360 = vsub.f32 %v3355, 1.0
    %v3361 = vsub.f32 %v3357, 1.0
    %v3362 = vsel %vm3342, %v3331, %v3358
    %v3363 = vsel %vm3343, %v3334, %v3359
    %v3364 = vsel %vm3344, %v3337, %v3360
    %v3365 = vsel %vm3345, %v3340, %v3361
    %v3366 = vld [vmem:[%s7] sm:$0x1]
    %s3367 = sld [smem:[#allocation2]]
    %v3368 = vstv %s3367
    %vm3369 = vcmask 261120
    %v3371 = vsel %vm3369, %v3366, 0
    %3373 = vmatpush.msra.mxu0 0.0
    %3374 = vmatpush.msra.mxu0 0.0
    %3375 = vmatpush.msra.mxu0 0.0
    %3376 = vmatpush.msra.mxu0 0.0
    %3377 = vmatpush.msra.mxu0 0.0
    %3378 = vmatpush.msra.mxu0 0.0
    %3379 = vmatpush.msra.mxu0 0.0
    %3380 = vmatpush.msra.mxu0 0.0
    %3381 = vmatpush.msra.mxu0 0.0
    %3382 = vmatpush.msra.mxu0 0.0
    %3383 = vmatpush.msra.mxu0 0.0
    %3384 = vmatpush.msra.mxu0 0.0
    %3385 = vmatpush.msra.mxu0 %v3365
    %3386 = vmatpush.msra.mxu0 %v3364
    %3387 = vmatpush.msra.mxu0 %v3363
    %3388 = vmatpush.msra.mxu0 %v3362
    %3389 = vmatmul.f32.gmra.mxu0 %v3371
    %v3390 = vpop.f32.mrf.mxu0
    %v3391 = vadd.f32 %v3368, %v3390
    %3392 = vdwg.mxu0
    %v3393 = vxor.u32 %v3391, 2147483648
    %v3394 = vmul.f32 %v3393, 1.442695
    %v3395 = vpow.pop %v3394
    %v3396 = vadd.f32 %v3395, 1.0
    %v3397 = vrcp.pop %v3396
    %v3398 = vmul.f32 %v3396, %v3397
    %v3399 = vsub.f32 1.0, %v3398
    %v3400 = vmul.f32 %v3397, %v3399
    %v3401 = vadd.f32 %v3397, %v3400
    %vm3402 = vweird.f32 %v3396
    %vm3403 = vweird.f32 %v3397
    %vm3404 = vmor %vm3402, %vm3403
    %v3405 = vsel %vm3404, %v3397, %v3401
    %v3406 = vand.u32 2147483647, %v3396
    %vm3407 = vcmp.eq.f32.partialorder %v3406, 8.507059e+37
    %v3408 = vand.u32 %v3396, 2147483648
    %v3409 = vor.u32 1.1754944e-38, %v3408
    %v3410 = vsel %vm3407, %v3409, %v3405
    %v3411 = vmul.f32 1.0, %v3410
    %3412 = vst [vmem:[#allocation8] sm:$0x1] %v3411
    // Predicated region
    $region46: #{tpu_custom_call.1} parent=1 // pred_check
      _
    $region47: #{tpu_custom_call.1} parent=1 // pred_check_branch
      %3414 = sbr.rel (0) target = $region49
    $region48: #{tpu_custom_call.1} parent=1 // pred_region
      %3416 = vsyncadd [#allocation5], 0
      %s3418 = sshll.u32 [#allocation8], 4
      %s3419 = int_to_ptr.vmem [resolvable:$true] %s3418
      %s3420 = sshll.u32 %s9, 4
      %s3421 = int_to_ptr.hbm [resolvable:$true] %s3420
      %3423 = dma.vmem_to_hbm [thread:$0]  %s3419, 16, %s3421, [#allocation5]
    $region49: #{tpu_custom_call.1} parent=1 // pred_fallthru
      _
    // Predicated region
    $region50: #{tpu_custom_call.1} parent=1 // pred_check
      _
    $region51: #{tpu_custom_call.1} parent=1 // pred_check_branch
      %3425 = sbr.rel (0) target = $region53
    $region52: #{tpu_custom_call.1} parent=1 // pred_region
      %3427 = dma.done [#allocation5], 16
    $region53: #{tpu_custom_call.1} parent=1 // pred_fallthru
      _
    %3428 = vsyncpa [#allocation4], 1
    %3429 = vsyncpa [#allocation7], 1
    %3430 = vsyncpa [#allocation5], 1

</llo_original>
